<compile_context>
chip_gen: v5e
topology: v5e:2x2
jax: 0.10.0
libtpu: 0.0.40
codegen_flags: <defaults>
</compile_context>

<pallas_src>
import functools

import jax
import jax.numpy as jnp
from jax import lax
from jax.experimental import pallas as pl
from jax.experimental.pallas import tpu as pltpu

LANE = 128


def _round_up(x, m):
    return ((x + m - 1) // m) * m


def _pad_last(x, n):
    pad = n - x.shape[-1]
    if pad == 0:
        return x
    return jnp.pad(x, [(0, 0)] * (x.ndim - 1) + [(0, pad)])


# ------------------------------ fused kernel ------------------------------- #

def _make_encoder_kernel(*, num_layers, h2, oh1, ow1, jp, feature_dim, eps):
    n_extra = num_layers - 1

    def kernel(*refs):
        x_ref = refs[0]                                   # (1, h2, w2, 4*C)
        w1_ref, b1_ref = refs[1], refs[2]
        conv_w = [refs[3 + 2 * i] for i in range(n_extra)]
        conv_b = [refs[4 + 2 * i] for i in range(n_extra)]
        wfc_ref, bfc_ref, g_ref, beta_ref = refs[3 + 2 * n_extra: 7 + 2 * n_extra]
        o_ref = refs[7 + 2 * n_extra]                     # (1, 1, jp)

        # ---- conv1: 3x3 stride-2 conv == 2x2 conv over the space-to-depth input.
        x_rows = [x_ref[0, r] for r in range(h2)]         # each (w2, 4*C)
        b1 = b1_ref[...]                                  # (1, fp)
        accs = [None] * oh1
        for a in (0, 1):
            for b in (0, 1):
                w_t = w1_ref[2 * a + b]                   # (4*C, fp) - shared RHS
                for oh in range(oh1):
                    t = jnp.dot(x_rows[oh + a][b:b + ow1, :], w_t,
                                preferred_element_type=jnp.float32)
                    accs[oh] = t if accs[oh] is None else accs[oh] + t
        rows = [jnp.maximum(acc + b1, 0.0) for acc in accs]   # oh1 x (ow1, fp)

        # ---- remaining 3x3 stride-1 convs; activations never leave the chip.
        oh_c, ow_c = oh1, ow1
        for layer in range(n_extra):
            bl = conv_b[layer][...]                       # (1, fp)
            oh_n, ow_n = oh_c - 2, ow_c - 2
            accs = [None] * oh_n
            for kh in range(3):
                for kw in range(3):
                    w_t = conv_w[layer][3 * kh + kw]      # (fp, fp) - shared RHS
                    for oh in range(oh_n):
                        t = jnp.dot(rows[oh + kh][kw:kw + ow_n, :], w_t,
                                    preferred_element_type=jnp.float32)
                        accs[oh] = t if accs[oh] is None else accs[oh] + t
            rows = [jnp.maximum(acc + bl, 0.0) for acc in accs]
            oh_c, ow_c = oh_n, ow_n

        # ---- fc (full spatial+channel contraction) + LayerNorm + tanh, fused.
        y = bfc_ref[...]                                  # (1, jp)
        for oh in range(oh_c):
            r = rows[oh]                                  # (ow_c, fp)
            for ow in range(ow_c):
                y = y + jnp.dot(r[ow:ow + 1, :], wfc_ref[oh * ow_c + ow],
                                preferred_element_type=jnp.float32)

        lane_idx = lax.broadcasted_iota(jnp.int32, (1, jp), 1)
        valid = lane_idx < feature_dim                    # LN over true features only
        inv_n = 1.0 / float(feature_dim)
        mean = jnp.sum(jnp.where(valid, y, 0.0), axis=-1, keepdims=True) * inv_n
        diff = jnp.where(valid, y - mean, 0.0)
        var = jnp.sum(diff * diff, axis=-1, keepdims=True) * inv_n
        y_norm = (y - mean) * lax.rsqrt(var + eps)
        o_ref[0] = jnp.tanh(y_norm * g_ref[...] + beta_ref[...])

    return kernel


# ------------------------------ param prep --------------------------------- #

def init_params(key, obs_shape, feature_dim, num_layers=2, num_filters=32):
    """PyTorch-layout parameters (OIHW convs, (out, in) fc)."""
    C, H, W = obs_shape
    params = {}
    k = key
    for i in range(num_layers):
        cin = C if i == 0 else num_filters
        k, k1, k2 = jax.random.split(k, 3)
        bound = 1.0 / jnp.sqrt(cin * 9.0)
        params[f"conv{i+1}_w"] = jax.random.uniform(
            k1, (num_filters, cin, 3, 3), jnp.float32, -bound, bound)
        params[f"conv{i+1}_b"] = jax.random.uniform(
            k2, (num_filters,), jnp.float32, -bound, bound)
    out_h = (H - 3) // 2 + 1 - 2 * (num_layers - 1)
    out_w = (W - 3) // 2 + 1 - 2 * (num_layers - 1)
    fc_in = num_filters * out_h * out_w
    k, k1, k2 = jax.random.split(k, 3)
    bound = 1.0 / jnp.sqrt(float(fc_in))
    params["fc_w"] = jax.random.uniform(k1, (feature_dim, fc_in), jnp.float32, -bound, bound)
    params["fc_b"] = jax.random.uniform(k2, (feature_dim,), jnp.float32, -bound, bound)
    params["ln_g"] = jnp.ones((feature_dim,), jnp.float32)
    params["ln_b"] = jnp.zeros((feature_dim,), jnp.float32)
    return params


def prepare_params(params, obs_shape, num_layers, num_filters, feature_dim):
    """Rearrange/pad weights once so the kernel needs no transposes or reshapes."""
    C, H, W = obs_shape
    F = num_filters
    fp = _round_up(F, LANE)
    jp = _round_up(feature_dim, LANE)
    oh1, ow1 = (H - 3) // 2 + 1, (W - 3) // 2 + 1
    oh_f, ow_f = oh1 - 2 * (num_layers - 1), ow1 - 2 * (num_layers - 1)

    prep = {}
    # conv1: fold 1/255 and regroup the 3x3 stride-2 taps into a 2x2 conv over the
    # space-to-depth input.  w1_eff[a*2+b, g*C+c, f] = conv1_w[f, c, 2a+g//2, 2b+g%2]/255.
    w1 = jnp.transpose(params["conv1_w"], (2, 3, 1, 0)).astype(jnp.float32) / 255.0  # (3,3,C,F)
    blocks = []
    for a in (0, 1):
        for b in (0, 1):
            taps = []
            for g in range(4):
                kh, kw = 2 * a + g // 2, 2 * b + g % 2
                if kh < 3 and kw < 3:
                    taps.append(w1[kh, kw])
                else:
                    taps.append(jnp.zeros((C, F), jnp.float32))
            blocks.append(jnp.concatenate(taps, axis=0))          # (4C, F)
    prep["w1"] = _pad_last(jnp.stack(blocks, axis=0), fp)         # (4, 4C, fp)
    prep["b1"] = _pad_last(params["conv1_b"].reshape(1, F), fp)

    for i in range(1, num_layers):
        w = jnp.transpose(params[f"conv{i+1}_w"], (2, 3, 1, 0)).reshape(9, F, F)
        prep[f"w{i+1}"] = jnp.pad(w, ((0, 0), (0, fp - F), (0, fp - F)))  # (9, fp, fp)
        prep[f"b{i+1}"] = _pad_last(params[f"conv{i+1}_b"].reshape(1, F), fp)

    # fc weight: fold the PyTorch NCHW flatten ordering and the transpose into a
    # per-spatial-position block: wfc[oh*ow_f+ow, f, j] = fc_w[j, f*oh_f*ow_f + oh*ow_f + ow].
    wfc = params["fc_w"].reshape(feature_dim, F, oh_f, ow_f)
    wfc = jnp.transpose(wfc, (2, 3, 1, 0)).reshape(oh_f * ow_f, F, feature_dim)
    prep["wfc"] = jnp.pad(wfc, ((0, 0), (0, fp - F), (0, jp - feature_dim)))
    prep["bfc"] = _pad_last(params["fc_b"].reshape(1, feature_dim), jp)
    prep["ln_g"] = _pad_last(params["ln_g"].reshape(1, feature_dim), jp)
    prep["ln_b"] = _pad_last(params["ln_b"].reshape(1, feature_dim), jp)
    return prep


# ------------------------------- forward ----------------------------------- #

def _space_to_depth(obs):
    """(B, C, H, W) NCHW pixels -> (B, H//2, W//2, 4*C); channel order ((dh,dw), c)."""
    B, C, H, W = obs.shape
    x = jnp.transpose(obs, (0, 2, 3, 1))                 # NHWC
    x = x.reshape(B, H // 2, 2, W // 2, 2, C)
    x = jnp.transpose(x, (0, 1, 3, 2, 4, 5))
    return x.reshape(B, H // 2, W // 2, 4 * C)


def pixel_encoder_forward(prep, obs, *, feature_dim, num_layers, num_filters, eps=1e-5):
    """obs: (B, C, H, W) float32, raw pixels in [0, 255]."""
    B, C, H, W = obs.shape
    assert H % 2 == 0 and W % 2 == 0, "even spatial dims required"
    h2, w2 = H // 2, W // 2
    oh1, ow1 = (H - 3) // 2 + 1, (W - 3) // 2 + 1
    fp = _round_up(num_filters, LANE)
    jp = _round_up(feature_dim, LANE)
    c4 = 4 * C

    x = _space_to_depth(obs)

    kernel = _make_encoder_kernel(
        num_layers=num_layers, h2=h2, oh1=oh1, ow1=ow1,
        jp=jp, feature_dim=feature_dim, eps=eps)

    def const_spec(shape):
        return pl.BlockSpec(shape, lambda b: (0,) * len(shape))

    in_specs = [pl.BlockSpec((1, h2, w2, c4), lambda b: (b, 0, 0, 0)),
                const_spec(prep["w1"].shape), const_spec(prep["b1"].shape)]
    args = [x, prep["w1"], prep["b1"]]
    for i in range(1, num_layers):
        in_specs += [const_spec(prep[f"w{i+1}"].shape), const_spec(prep[f"b{i+1}"].shape)]
        args += [prep[f"w{i+1}"], prep[f"b{i+1}"]]
    in_specs += [const_spec(prep["wfc"].shape), const_spec(prep["bfc"].shape),
                 const_spec(prep["ln_g"].shape), const_spec(prep["ln_b"].shape)]
    args += [prep["wfc"], prep["bfc"], prep["ln_g"], prep["ln_b"]]

    out = pl.pallas_call(
        kernel,
        grid=(B,),
        in_specs=in_specs,
        out_specs=pl.BlockSpec((1, 1, jp), lambda b: (b, 0, 0)),
        out_shape=jax.ShapeDtypeStruct((B, 1, jp), jnp.float32),
        compiler_params=pltpu.CompilerParams(
            dimension_semantics=("parallel",),          # v7x: split batch across TCs
            vmem_limit_bytes=32 * 1024 * 1024),
    )(*args)
    return out[:, 0, :feature_dim]
    # TODO(synk): `detach=True` (stop-gradient) and the `self.outputs` logging dict /
    # log() are training/introspection side effects, not forward-pass kernel compute.


# ------------------------------- reference --------------------------------- #

def reference_forward(params, obs, num_layers=2):
    """Pure-JAX reference mirroring the PyTorch forward exactly."""
    x = obs / 255.0
    for i in range(num_layers):
        stride = 2 if i == 0 else 1
        x = lax.conv_general_dilated(
            x, params[f"conv{i+1}_w"], (stride, stride), "VALID",
            dimension_numbers=("NCHW", "OIHW", "NCHW"))
        x = jnp.maximum(x + params[f"conv{i+1}_b"][None, :, None, None], 0.0)
    h = x.reshape(x.shape[0], -1)
    y = h @ params["fc_w"].T + params["fc_b"]
    mean = y.mean(-1, keepdims=True)
    var = ((y - mean) ** 2).mean(-1, keepdims=True)
    yn = (y - mean) / jnp.sqrt(var + 1e-5)
    return jnp.tanh(yn * params["ln_g"] + params["ln_b"])


if __name__ == "__main__":
    key = jax.random.PRNGKey(0)
    k_obs, k_params = jax.random.split(key)

    B, C, H, W = 2, 4, 16, 16
    feature_dim, num_layers, num_filters = 32, 2, 32

    obs = jax.random.uniform(k_obs, (B, C, H, W), jnp.float32, 0.0, 255.0)
    params = init_params(k_params, (C, H, W), feature_dim, num_layers, num_filters)
    prep = prepare_params(params, (C, H, W), num_layers, num_filters, feature_dim)

    fwd = jax.jit(functools.partial(
        pixel_encoder_forward, feature_dim=feature_dim,
        num_layers=num_layers, num_filters=num_filters))
    out = jax.block_until_ready(fwd(prep, obs))
    assert out.shape == (B, feature_dim) and out.dtype == jnp.float32

    ref = jax.block_until_ready(reference_forward(params, obs, num_layers))
    assert jnp.allclose(out, ref, atol=1e-2, rtol=1e-2), "mismatch vs reference"

    print("KERNEL_OK")
</pallas_src>

<mosaic_0001>
module attributes {stable_mosaic.version = 11 : i64} {
  func.func @kernel(%arg0: i32, %arg1: memref<1x8x8x16xf32, #tpu.memory_space<vmem>>, %arg2: memref<4x16x128xf32, #tpu.memory_space<vmem>>, %arg3: memref<1x128xf32, #tpu.memory_space<vmem>>, %arg4: memref<9x128x128xf32, #tpu.memory_space<vmem>>, %arg5: memref<1x128xf32, #tpu.memory_space<vmem>>, %arg6: memref<25x128x128xf32, #tpu.memory_space<vmem>>, %arg7: memref<1x128xf32, #tpu.memory_space<vmem>>, %arg8: memref<1x128xf32, #tpu.memory_space<vmem>>, %arg9: memref<1x128xf32, #tpu.memory_space<vmem>>, %arg10: memref<1x1x128xf32, #tpu.memory_space<vmem>>) attributes {dimension_semantics = [#tpu.dimension_semantics<parallel>], iteration_bounds = array<i64: 2>, scalar_prefetch = 0 : i64, scratch_operands = 0 : i64, tpu.core_type = #tpu.core_type<tc>, window_params = [{transform_indices = @transform_0, window_bounds = array<i64: 1, 8, 8, 16>}, {pipeline_mode = #tpu.pipeline_mode<synchronous>, transform_indices = @transform_1, window_bounds = array<i64: 4, 16, 128>}, {pipeline_mode = #tpu.pipeline_mode<synchronous>, transform_indices = @transform_2, window_bounds = array<i64: 1, 128>}, {pipeline_mode = #tpu.pipeline_mode<synchronous>, transform_indices = @transform_3, window_bounds = array<i64: 9, 128, 128>}, {pipeline_mode = #tpu.pipeline_mode<synchronous>, transform_indices = @transform_4, window_bounds = array<i64: 1, 128>}, {pipeline_mode = #tpu.pipeline_mode<synchronous>, transform_indices = @transform_5, window_bounds = array<i64: 25, 128, 128>}, {pipeline_mode = #tpu.pipeline_mode<synchronous>, transform_indices = @transform_6, window_bounds = array<i64: 1, 128>}, {pipeline_mode = #tpu.pipeline_mode<synchronous>, transform_indices = @transform_7, window_bounds = array<i64: 1, 128>}, {pipeline_mode = #tpu.pipeline_mode<synchronous>, transform_indices = @transform_8, window_bounds = array<i64: 1, 128>}, {transform_indices = @transform_9, window_bounds = array<i64: 1, 1, 128>}]} {
    %c0 = arith.constant 0 : index
    %c0_0 = arith.constant 0 : index
    %c0_1 = arith.constant 0 : index
    %c0_2 = arith.constant 0 : index
    %0 = vector.load %arg1[%c0, %c0_0, %c0_1, %c0_2] : memref<1x8x8x16xf32, #tpu.memory_space<vmem>>, vector<1x1x8x16xf32>
    %1 = vector.shape_cast %0 : vector<1x1x8x16xf32> to vector<8x16xf32>
    %c0_3 = arith.constant 0 : index
    %c1 = arith.constant 1 : index
    %c0_4 = arith.constant 0 : index
    %c0_5 = arith.constant 0 : index
    %2 = vector.load %arg1[%c0_3, %c1, %c0_4, %c0_5] : memref<1x8x8x16xf32, #tpu.memory_space<vmem>>, vector<1x1x8x16xf32>
    %3 = vector.shape_cast %2 : vector<1x1x8x16xf32> to vector<8x16xf32>
    %c0_6 = arith.constant 0 : index
    %c2 = arith.constant 2 : index
    %c0_7 = arith.constant 0 : index
    %c0_8 = arith.constant 0 : index
    %4 = vector.load %arg1[%c0_6, %c2, %c0_7, %c0_8] : memref<1x8x8x16xf32, #tpu.memory_space<vmem>>, vector<1x1x8x16xf32>
    %5 = vector.shape_cast %4 : vector<1x1x8x16xf32> to vector<8x16xf32>
    %c0_9 = arith.constant 0 : index
    %c3 = arith.constant 3 : index
    %c0_10 = arith.constant 0 : index
    %c0_11 = arith.constant 0 : index
    %6 = vector.load %arg1[%c0_9, %c3, %c0_10, %c0_11] : memref<1x8x8x16xf32, #tpu.memory_space<vmem>>, vector<1x1x8x16xf32>
    %7 = vector.shape_cast %6 : vector<1x1x8x16xf32> to vector<8x16xf32>
    %c0_12 = arith.constant 0 : index
    %c4 = arith.constant 4 : index
    %c0_13 = arith.constant 0 : index
    %c0_14 = arith.constant 0 : index
    %8 = vector.load %arg1[%c0_12, %c4, %c0_13, %c0_14] : memref<1x8x8x16xf32, #tpu.memory_space<vmem>>, vector<1x1x8x16xf32>
    %9 = vector.shape_cast %8 : vector<1x1x8x16xf32> to vector<8x16xf32>
    %c0_15 = arith.constant 0 : index
    %c5 = arith.constant 5 : index
    %c0_16 = arith.constant 0 : index
    %c0_17 = arith.constant 0 : index
    %10 = vector.load %arg1[%c0_15, %c5, %c0_16, %c0_17] : memref<1x8x8x16xf32, #tpu.memory_space<vmem>>, vector<1x1x8x16xf32>
    %11 = vector.shape_cast %10 : vector<1x1x8x16xf32> to vector<8x16xf32>
    %c0_18 = arith.constant 0 : index
    %c6 = arith.constant 6 : index
    %c0_19 = arith.constant 0 : index
    %c0_20 = arith.constant 0 : index
    %12 = vector.load %arg1[%c0_18, %c6, %c0_19, %c0_20] : memref<1x8x8x16xf32, #tpu.memory_space<vmem>>, vector<1x1x8x16xf32>
    %13 = vector.shape_cast %12 : vector<1x1x8x16xf32> to vector<8x16xf32>
    %c0_21 = arith.constant 0 : index
    %c7 = arith.constant 7 : index
    %c0_22 = arith.constant 0 : index
    %c0_23 = arith.constant 0 : index
    %14 = vector.load %arg1[%c0_21, %c7, %c0_22, %c0_23] : memref<1x8x8x16xf32, #tpu.memory_space<vmem>>, vector<1x1x8x16xf32>
    %15 = vector.shape_cast %14 : vector<1x1x8x16xf32> to vector<8x16xf32>
    %c0_24 = arith.constant 0 : index
    %c0_25 = arith.constant 0 : index
    %16 = vector.load %arg3[%c0_24, %c0_25] : memref<1x128xf32, #tpu.memory_space<vmem>>, vector<1x128xf32>
    %c0_26 = arith.constant 0 : index
    %c0_27 = arith.constant 0 : index
    %c0_28 = arith.constant 0 : index
    %17 = vector.load %arg2[%c0_26, %c0_27, %c0_28] : memref<4x16x128xf32, #tpu.memory_space<vmem>>, vector<1x16x128xf32>
    %18 = vector.shape_cast %17 : vector<1x16x128xf32> to vector<16x128xf32>
    %19 = vector.extract_strided_slice %1 {offsets = [0, 0], sizes = [7, 16], strides = [1, 1]} : vector<8x16xf32> to vector<7x16xf32>
    %cst = arith.constant dense<0.000000e+00> : vector<7x128xf32>
    %20 = tpu.matmul %19, %18, %cst {dimension_numbers = #tpu.dot_dimension_numbers<[1], [0], [0], [1], [0, 0, 1, 1], [], []>} : vector<7x16xf32>, vector<16x128xf32>, vector<7x128xf32> -> vector<7x128xf32>
    %21 = vector.extract_strided_slice %3 {offsets = [0, 0], sizes = [7, 16], strides = [1, 1]} : vector<8x16xf32> to vector<7x16xf32>
    %cst_29 = arith.constant dense<0.000000e+00> : vector<7x128xf32>
    %22 = tpu.matmul %21, %18, %cst_29 {dimension_numbers = #tpu.dot_dimension_numbers<[1], [0], [0], [1], [0, 0, 1, 1], [], []>} : vector<7x16xf32>, vector<16x128xf32>, vector<7x128xf32> -> vector<7x128xf32>
    %23 = vector.extract_strided_slice %5 {offsets = [0, 0], sizes = [7, 16], strides = [1, 1]} : vector<8x16xf32> to vector<7x16xf32>
    %cst_30 = arith.constant dense<0.000000e+00> : vector<7x128xf32>
    %24 = tpu.matmul %23, %18, %cst_30 {dimension_numbers = #tpu.dot_dimension_numbers<[1], [0], [0], [1], [0, 0, 1, 1], [], []>} : vector<7x16xf32>, vector<16x128xf32>, vector<7x128xf32> -> vector<7x128xf32>
    %25 = vector.extract_strided_slice %7 {offsets = [0, 0], sizes = [7, 16], strides = [1, 1]} : vector<8x16xf32> to vector<7x16xf32>
    %cst_31 = arith.constant dense<0.000000e+00> : vector<7x128xf32>
    %26 = tpu.matmul %25, %18, %cst_31 {dimension_numbers = #tpu.dot_dimension_numbers<[1], [0], [0], [1], [0, 0, 1, 1], [], []>} : vector<7x16xf32>, vector<16x128xf32>, vector<7x128xf32> -> vector<7x128xf32>
    %27 = vector.extract_strided_slice %9 {offsets = [0, 0], sizes = [7, 16], strides = [1, 1]} : vector<8x16xf32> to vector<7x16xf32>
    %cst_32 = arith.constant dense<0.000000e+00> : vector<7x128xf32>
    %28 = tpu.matmul %27, %18, %cst_32 {dimension_numbers = #tpu.dot_dimension_numbers<[1], [0], [0], [1], [0, 0, 1, 1], [], []>} : vector<7x16xf32>, vector<16x128xf32>, vector<7x128xf32> -> vector<7x128xf32>
    %29 = vector.extract_strided_slice %11 {offsets = [0, 0], sizes = [7, 16], strides = [1, 1]} : vector<8x16xf32> to vector<7x16xf32>
    %cst_33 = arith.constant dense<0.000000e+00> : vector<7x128xf32>
    %30 = tpu.matmul %29, %18, %cst_33 {dimension_numbers = #tpu.dot_dimension_numbers<[1], [0], [0], [1], [0, 0, 1, 1], [], []>} : vector<7x16xf32>, vector<16x128xf32>, vector<7x128xf32> -> vector<7x128xf32>
    %31 = vector.extract_strided_slice %13 {offsets = [0, 0], sizes = [7, 16], strides = [1, 1]} : vector<8x16xf32> to vector<7x16xf32>
    %cst_34 = arith.constant dense<0.000000e+00> : vector<7x128xf32>
    %32 = tpu.matmul %31, %18, %cst_34 {dimension_numbers = #tpu.dot_dimension_numbers<[1], [0], [0], [1], [0, 0, 1, 1], [], []>} : vector<7x16xf32>, vector<16x128xf32>, vector<7x128xf32> -> vector<7x128xf32>
    %c1_35 = arith.constant 1 : index
    %c0_36 = arith.constant 0 : index
    %c0_37 = arith.constant 0 : index
    %33 = vector.load %arg2[%c1_35, %c0_36, %c0_37] : memref<4x16x128xf32, #tpu.memory_space<vmem>>, vector<1x16x128xf32>
    %34 = vector.shape_cast %33 : vector<1x16x128xf32> to vector<16x128xf32>
    %35 = vector.extract_strided_slice %1 {offsets = [1, 0], sizes = [7, 16], strides = [1, 1]} : vector<8x16xf32> to vector<7x16xf32>
    %cst_38 = arith.constant dense<0.000000e+00> : vector<7x128xf32>
    %36 = tpu.matmul %35, %34, %cst_38 {dimension_numbers = #tpu.dot_dimension_numbers<[1], [0], [0], [1], [0, 0, 1, 1], [], []>} : vector<7x16xf32>, vector<16x128xf32>, vector<7x128xf32> -> vector<7x128xf32>
    %37 = arith.addf %20, %36 : vector<7x128xf32>
    %38 = vector.extract_strided_slice %3 {offsets = [1, 0], sizes = [7, 16], strides = [1, 1]} : vector<8x16xf32> to vector<7x16xf32>
    %cst_39 = arith.constant dense<0.000000e+00> : vector<7x128xf32>
    %39 = tpu.matmul %38, %34, %cst_39 {dimension_numbers = #tpu.dot_dimension_numbers<[1], [0], [0], [1], [0, 0, 1, 1], [], []>} : vector<7x16xf32>, vector<16x128xf32>, vector<7x128xf32> -> vector<7x128xf32>
    %40 = arith.addf %22, %39 : vector<7x128xf32>
    %41 = vector.extract_strided_slice %5 {offsets = [1, 0], sizes = [7, 16], strides = [1, 1]} : vector<8x16xf32> to vector<7x16xf32>
    %cst_40 = arith.constant dense<0.000000e+00> : vector<7x128xf32>
    %42 = tpu.matmul %41, %34, %cst_40 {dimension_numbers = #tpu.dot_dimension_numbers<[1], [0], [0], [1], [0, 0, 1, 1], [], []>} : vector<7x16xf32>, vector<16x128xf32>, vector<7x128xf32> -> vector<7x128xf32>
    %43 = arith.addf %24, %42 : vector<7x128xf32>
    %44 = vector.extract_strided_slice %7 {offsets = [1, 0], sizes = [7, 16], strides = [1, 1]} : vector<8x16xf32> to vector<7x16xf32>
    %cst_41 = arith.constant dense<0.000000e+00> : vector<7x128xf32>
    %45 = tpu.matmul %44, %34, %cst_41 {dimension_numbers = #tpu.dot_dimension_numbers<[1], [0], [0], [1], [0, 0, 1, 1], [], []>} : vector<7x16xf32>, vector<16x128xf32>, vector<7x128xf32> -> vector<7x128xf32>
    %46 = arith.addf %26, %45 : vector<7x128xf32>
    %47 = vector.extract_strided_slice %9 {offsets = [1, 0], sizes = [7, 16], strides = [1, 1]} : vector<8x16xf32> to vector<7x16xf32>
    %cst_42 = arith.constant dense<0.000000e+00> : vector<7x128xf32>
    %48 = tpu.matmul %47, %34, %cst_42 {dimension_numbers = #tpu.dot_dimension_numbers<[1], [0], [0], [1], [0, 0, 1, 1], [], []>} : vector<7x16xf32>, vector<16x128xf32>, vector<7x128xf32> -> vector<7x128xf32>
    %49 = arith.addf %28, %48 : vector<7x128xf32>
    %50 = vector.extract_strided_slice %11 {offsets = [1, 0], sizes = [7, 16], strides = [1, 1]} : vector<8x16xf32> to vector<7x16xf32>
    %cst_43 = arith.constant dense<0.000000e+00> : vector<7x128xf32>
    %51 = tpu.matmul %50, %34, %cst_43 {dimension_numbers = #tpu.dot_dimension_numbers<[1], [0], [0], [1], [0, 0, 1, 1], [], []>} : vector<7x16xf32>, vector<16x128xf32>, vector<7x128xf32> -> vector<7x128xf32>
    %52 = arith.addf %30, %51 : vector<7x128xf32>
    %53 = vector.extract_strided_slice %13 {offsets = [1, 0], sizes = [7, 16], strides = [1, 1]} : vector<8x16xf32> to vector<7x16xf32>
    %cst_44 = arith.constant dense<0.000000e+00> : vector<7x128xf32>
    %54 = tpu.matmul %53, %34, %cst_44 {dimension_numbers = #tpu.dot_dimension_numbers<[1], [0], [0], [1], [0, 0, 1, 1], [], []>} : vector<7x16xf32>, vector<16x128xf32>, vector<7x128xf32> -> vector<7x128xf32>
    %55 = arith.addf %32, %54 : vector<7x128xf32>
    %c2_45 = arith.constant 2 : index
    %c0_46 = arith.constant 0 : index
    %c0_47 = arith.constant 0 : index
    %56 = vector.load %arg2[%c2_45, %c0_46, %c0_47] : memref<4x16x128xf32, #tpu.memory_space<vmem>>, vector<1x16x128xf32>
    %57 = vector.shape_cast %56 : vector<1x16x128xf32> to vector<16x128xf32>
    %58 = vector.extract_strided_slice %3 {offsets = [0, 0], sizes = [7, 16], strides = [1, 1]} : vector<8x16xf32> to vector<7x16xf32>
    %cst_48 = arith.constant dense<0.000000e+00> : vector<7x128xf32>
    %59 = tpu.matmul %58, %57, %cst_48 {dimension_numbers = #tpu.dot_dimension_numbers<[1], [0], [0], [1], [0, 0, 1, 1], [], []>} : vector<7x16xf32>, vector<16x128xf32>, vector<7x128xf32> -> vector<7x128xf32>
    %60 = arith.addf %37, %59 : vector<7x128xf32>
    %61 = vector.extract_strided_slice %5 {offsets = [0, 0], sizes = [7, 16], strides = [1, 1]} : vector<8x16xf32> to vector<7x16xf32>
    %cst_49 = arith.constant dense<0.000000e+00> : vector<7x128xf32>
    %62 = tpu.matmul %61, %57, %cst_49 {dimension_numbers = #tpu.dot_dimension_numbers<[1], [0], [0], [1], [0, 0, 1, 1], [], []>} : vector<7x16xf32>, vector<16x128xf32>, vector<7x128xf32> -> vector<7x128xf32>
    %63 = arith.addf %40, %62 : vector<7x128xf32>
    %64 = vector.extract_strided_slice %7 {offsets = [0, 0], sizes = [7, 16], strides = [1, 1]} : vector<8x16xf32> to vector<7x16xf32>
    %cst_50 = arith.constant dense<0.000000e+00> : vector<7x128xf32>
    %65 = tpu.matmul %64, %57, %cst_50 {dimension_numbers = #tpu.dot_dimension_numbers<[1], [0], [0], [1], [0, 0, 1, 1], [], []>} : vector<7x16xf32>, vector<16x128xf32>, vector<7x128xf32> -> vector<7x128xf32>
    %66 = arith.addf %43, %65 : vector<7x128xf32>
    %67 = vector.extract_strided_slice %9 {offsets = [0, 0], sizes = [7, 16], strides = [1, 1]} : vector<8x16xf32> to vector<7x16xf32>
    %cst_51 = arith.constant dense<0.000000e+00> : vector<7x128xf32>
    %68 = tpu.matmul %67, %57, %cst_51 {dimension_numbers = #tpu.dot_dimension_numbers<[1], [0], [0], [1], [0, 0, 1, 1], [], []>} : vector<7x16xf32>, vector<16x128xf32>, vector<7x128xf32> -> vector<7x128xf32>
    %69 = arith.addf %46, %68 : vector<7x128xf32>
    %70 = vector.extract_strided_slice %11 {offsets = [0, 0], sizes = [7, 16], strides = [1, 1]} : vector<8x16xf32> to vector<7x16xf32>
    %cst_52 = arith.constant dense<0.000000e+00> : vector<7x128xf32>
    %71 = tpu.matmul %70, %57, %cst_52 {dimension_numbers = #tpu.dot_dimension_numbers<[1], [0], [0], [1], [0, 0, 1, 1], [], []>} : vector<7x16xf32>, vector<16x128xf32>, vector<7x128xf32> -> vector<7x128xf32>
    %72 = arith.addf %49, %71 : vector<7x128xf32>
    %73 = vector.extract_strided_slice %13 {offsets = [0, 0], sizes = [7, 16], strides = [1, 1]} : vector<8x16xf32> to vector<7x16xf32>
    %cst_53 = arith.constant dense<0.000000e+00> : vector<7x128xf32>
    %74 = tpu.matmul %73, %57, %cst_53 {dimension_numbers = #tpu.dot_dimension_numbers<[1], [0], [0], [1], [0, 0, 1, 1], [], []>} : vector<7x16xf32>, vector<16x128xf32>, vector<7x128xf32> -> vector<7x128xf32>
    %75 = arith.addf %52, %74 : vector<7x128xf32>
    %76 = vector.extract_strided_slice %15 {offsets = [0, 0], sizes = [7, 16], strides = [1, 1]} : vector<8x16xf32> to vector<7x16xf32>
    %cst_54 = arith.constant dense<0.000000e+00> : vector<7x128xf32>
    %77 = tpu.matmul %76, %57, %cst_54 {dimension_numbers = #tpu.dot_dimension_numbers<[1], [0], [0], [1], [0, 0, 1, 1], [], []>} : vector<7x16xf32>, vector<16x128xf32>, vector<7x128xf32> -> vector<7x128xf32>
    %78 = arith.addf %55, %77 : vector<7x128xf32>
    %c3_55 = arith.constant 3 : index
    %c0_56 = arith.constant 0 : index
    %c0_57 = arith.constant 0 : index
    %79 = vector.load %arg2[%c3_55, %c0_56, %c0_57] : memref<4x16x128xf32, #tpu.memory_space<vmem>>, vector<1x16x128xf32>
    %80 = vector.shape_cast %79 : vector<1x16x128xf32> to vector<16x128xf32>
    %81 = vector.extract_strided_slice %3 {offsets = [1, 0], sizes = [7, 16], strides = [1, 1]} : vector<8x16xf32> to vector<7x16xf32>
    %cst_58 = arith.constant dense<0.000000e+00> : vector<7x128xf32>
    %82 = tpu.matmul %81, %80, %cst_58 {dimension_numbers = #tpu.dot_dimension_numbers<[1], [0], [0], [1], [0, 0, 1, 1], [], []>} : vector<7x16xf32>, vector<16x128xf32>, vector<7x128xf32> -> vector<7x128xf32>
    %83 = arith.addf %60, %82 : vector<7x128xf32>
    %84 = vector.extract_strided_slice %5 {offsets = [1, 0], sizes = [7, 16], strides = [1, 1]} : vector<8x16xf32> to vector<7x16xf32>
    %cst_59 = arith.constant dense<0.000000e+00> : vector<7x128xf32>
    %85 = tpu.matmul %84, %80, %cst_59 {dimension_numbers = #tpu.dot_dimension_numbers<[1], [0], [0], [1], [0, 0, 1, 1], [], []>} : vector<7x16xf32>, vector<16x128xf32>, vector<7x128xf32> -> vector<7x128xf32>
    %86 = arith.addf %63, %85 : vector<7x128xf32>
    %87 = vector.extract_strided_slice %7 {offsets = [1, 0], sizes = [7, 16], strides = [1, 1]} : vector<8x16xf32> to vector<7x16xf32>
    %cst_60 = arith.constant dense<0.000000e+00> : vector<7x128xf32>
    %88 = tpu.matmul %87, %80, %cst_60 {dimension_numbers = #tpu.dot_dimension_numbers<[1], [0], [0], [1], [0, 0, 1, 1], [], []>} : vector<7x16xf32>, vector<16x128xf32>, vector<7x128xf32> -> vector<7x128xf32>
    %89 = arith.addf %66, %88 : vector<7x128xf32>
    %90 = vector.extract_strided_slice %9 {offsets = [1, 0], sizes = [7, 16], strides = [1, 1]} : vector<8x16xf32> to vector<7x16xf32>
    %cst_61 = arith.constant dense<0.000000e+00> : vector<7x128xf32>
    %91 = tpu.matmul %90, %80, %cst_61 {dimension_numbers = #tpu.dot_dimension_numbers<[1], [0], [0], [1], [0, 0, 1, 1], [], []>} : vector<7x16xf32>, vector<16x128xf32>, vector<7x128xf32> -> vector<7x128xf32>
    %92 = arith.addf %69, %91 : vector<7x128xf32>
    %93 = vector.extract_strided_slice %11 {offsets = [1, 0], sizes = [7, 16], strides = [1, 1]} : vector<8x16xf32> to vector<7x16xf32>
    %cst_62 = arith.constant dense<0.000000e+00> : vector<7x128xf32>
    %94 = tpu.matmul %93, %80, %cst_62 {dimension_numbers = #tpu.dot_dimension_numbers<[1], [0], [0], [1], [0, 0, 1, 1], [], []>} : vector<7x16xf32>, vector<16x128xf32>, vector<7x128xf32> -> vector<7x128xf32>
    %95 = arith.addf %72, %94 : vector<7x128xf32>
    %96 = vector.extract_strided_slice %13 {offsets = [1, 0], sizes = [7, 16], strides = [1, 1]} : vector<8x16xf32> to vector<7x16xf32>
    %cst_63 = arith.constant dense<0.000000e+00> : vector<7x128xf32>
    %97 = tpu.matmul %96, %80, %cst_63 {dimension_numbers = #tpu.dot_dimension_numbers<[1], [0], [0], [1], [0, 0, 1, 1], [], []>} : vector<7x16xf32>, vector<16x128xf32>, vector<7x128xf32> -> vector<7x128xf32>
    %98 = arith.addf %75, %97 : vector<7x128xf32>
    %99 = vector.extract_strided_slice %15 {offsets = [1, 0], sizes = [7, 16], strides = [1, 1]} : vector<8x16xf32> to vector<7x16xf32>
    %cst_64 = arith.constant dense<0.000000e+00> : vector<7x128xf32>
    %100 = tpu.matmul %99, %80, %cst_64 {dimension_numbers = #tpu.dot_dimension_numbers<[1], [0], [0], [1], [0, 0, 1, 1], [], []>} : vector<7x16xf32>, vector<16x128xf32>, vector<7x128xf32> -> vector<7x128xf32>
    %101 = arith.addf %78, %100 : vector<7x128xf32>
    %102 = vector.broadcast %16 : vector<1x128xf32> to vector<7x128xf32>
    %103 = arith.addf %83, %102 : vector<7x128xf32>
    %cst_65 = arith.constant 0.000000e+00 : f32
    %104 = vector.broadcast %cst_65 : f32 to vector<7x128xf32>
    %105 = arith.maximumf %103, %104 : vector<7x128xf32>
    %106 = vector.broadcast %16 : vector<1x128xf32> to vector<7x128xf32>
    %107 = arith.addf %86, %106 : vector<7x128xf32>
    %cst_66 = arith.constant 0.000000e+00 : f32
    %108 = vector.broadcast %cst_66 : f32 to vector<7x128xf32>
    %109 = arith.maximumf %107, %108 : vector<7x128xf32>
    %110 = vector.broadcast %16 : vector<1x128xf32> to vector<7x128xf32>
    %111 = arith.addf %89, %110 : vector<7x128xf32>
    %cst_67 = arith.constant 0.000000e+00 : f32
    %112 = vector.broadcast %cst_67 : f32 to vector<7x128xf32>
    %113 = arith.maximumf %111, %112 : vector<7x128xf32>
    %114 = vector.broadcast %16 : vector<1x128xf32> to vector<7x128xf32>
    %115 = arith.addf %92, %114 : vector<7x128xf32>
    %cst_68 = arith.constant 0.000000e+00 : f32
    %116 = vector.broadcast %cst_68 : f32 to vector<7x128xf32>
    %117 = arith.maximumf %115, %116 : vector<7x128xf32>
    %118 = vector.broadcast %16 : vector<1x128xf32> to vector<7x128xf32>
    %119 = arith.addf %95, %118 : vector<7x128xf32>
    %cst_69 = arith.constant 0.000000e+00 : f32
    %120 = vector.broadcast %cst_69 : f32 to vector<7x128xf32>
    %121 = arith.maximumf %119, %120 : vector<7x128xf32>
    %122 = vector.broadcast %16 : vector<1x128xf32> to vector<7x128xf32>
    %123 = arith.addf %98, %122 : vector<7x128xf32>
    %cst_70 = arith.constant 0.000000e+00 : f32
    %124 = vector.broadcast %cst_70 : f32 to vector<7x128xf32>
    %125 = arith.maximumf %123, %124 : vector<7x128xf32>
    %126 = vector.broadcast %16 : vector<1x128xf32> to vector<7x128xf32>
    %127 = arith.addf %101, %126 : vector<7x128xf32>
    %cst_71 = arith.constant 0.000000e+00 : f32
    %128 = vector.broadcast %cst_71 : f32 to vector<7x128xf32>
    %129 = arith.maximumf %127, %128 : vector<7x128xf32>
    %c0_72 = arith.constant 0 : index
    %c0_73 = arith.constant 0 : index
    %130 = vector.load %arg5[%c0_72, %c0_73] : memref<1x128xf32, #tpu.memory_space<vmem>>, vector<1x128xf32>
    %c0_74 = arith.constant 0 : index
    %c0_75 = arith.constant 0 : index
    %c0_76 = arith.constant 0 : index
    %131 = vector.load %arg4[%c0_74, %c0_75, %c0_76] : memref<9x128x128xf32, #tpu.memory_space<vmem>>, vector<1x128x128xf32>
    %132 = vector.shape_cast %131 : vector<1x128x128xf32> to vector<128x128xf32>
    %133 = vector.extract_strided_slice %105 {offsets = [0, 0], sizes = [5, 128], strides = [1, 1]} : vector<7x128xf32> to vector<5x128xf32>
    %cst_77 = arith.constant dense<0.000000e+00> : vector<5x128xf32>
    %134 = tpu.matmul %133, %132, %cst_77 {dimension_numbers = #tpu.dot_dimension_numbers<[1], [0], [0], [1], [0, 0, 1, 1], [], []>} : vector<5x128xf32>, vector<128x128xf32>, vector<5x128xf32> -> vector<5x128xf32>
    %135 = vector.extract_strided_slice %109 {offsets = [0, 0], sizes = [5, 128], strides = [1, 1]} : vector<7x128xf32> to vector<5x128xf32>
    %cst_78 = arith.constant dense<0.000000e+00> : vector<5x128xf32>
    %136 = tpu.matmul %135, %132, %cst_78 {dimension_numbers = #tpu.dot_dimension_numbers<[1], [0], [0], [1], [0, 0, 1, 1], [], []>} : vector<5x128xf32>, vector<128x128xf32>, vector<5x128xf32> -> vector<5x128xf32>
    %137 = vector.extract_strided_slice %113 {offsets = [0, 0], sizes = [5, 128], strides = [1, 1]} : vector<7x128xf32> to vector<5x128xf32>
    %cst_79 = arith.constant dense<0.000000e+00> : vector<5x128xf32>
    %138 = tpu.matmul %137, %132, %cst_79 {dimension_numbers = #tpu.dot_dimension_numbers<[1], [0], [0], [1], [0, 0, 1, 1], [], []>} : vector<5x128xf32>, vector<128x128xf32>, vector<5x128xf32> -> vector<5x128xf32>
    %139 = vector.extract_strided_slice %117 {offsets = [0, 0], sizes = [5, 128], strides = [1, 1]} : vector<7x128xf32> to vector<5x128xf32>
    %cst_80 = arith.constant dense<0.000000e+00> : vector<5x128xf32>
    %140 = tpu.matmul %139, %132, %cst_80 {dimension_numbers = #tpu.dot_dimension_numbers<[1], [0], [0], [1], [0, 0, 1, 1], [], []>} : vector<5x128xf32>, vector<128x128xf32>, vector<5x128xf32> -> vector<5x128xf32>
    %141 = vector.extract_strided_slice %121 {offsets = [0, 0], sizes = [5, 128], strides = [1, 1]} : vector<7x128xf32> to vector<5x128xf32>
    %cst_81 = arith.constant dense<0.000000e+00> : vector<5x128xf32>
    %142 = tpu.matmul %141, %132, %cst_81 {dimension_numbers = #tpu.dot_dimension_numbers<[1], [0], [0], [1], [0, 0, 1, 1], [], []>} : vector<5x128xf32>, vector<128x128xf32>, vector<5x128xf32> -> vector<5x128xf32>
    %c1_82 = arith.constant 1 : index
    %c0_83 = arith.constant 0 : index
    %c0_84 = arith.constant 0 : index
    %143 = vector.load %arg4[%c1_82, %c0_83, %c0_84] : memref<9x128x128xf32, #tpu.memory_space<vmem>>, vector<1x128x128xf32>
    %144 = vector.shape_cast %143 : vector<1x128x128xf32> to vector<128x128xf32>
    %145 = vector.extract_strided_slice %105 {offsets = [1, 0], sizes = [5, 128], strides = [1, 1]} : vector<7x128xf32> to vector<5x128xf32>
    %cst_85 = arith.constant dense<0.000000e+00> : vector<5x128xf32>
    %146 = tpu.matmul %145, %144, %cst_85 {dimension_numbers = #tpu.dot_dimension_numbers<[1], [0], [0], [1], [0, 0, 1, 1], [], []>} : vector<5x128xf32>, vector<128x128xf32>, vector<5x128xf32> -> vector<5x128xf32>
    %147 = arith.addf %134, %146 : vector<5x128xf32>
    %148 = vector.extract_strided_slice %109 {offsets = [1, 0], sizes = [5, 128], strides = [1, 1]} : vector<7x128xf32> to vector<5x128xf32>
    %cst_86 = arith.constant dense<0.000000e+00> : vector<5x128xf32>
    %149 = tpu.matmul %148, %144, %cst_86 {dimension_numbers = #tpu.dot_dimension_numbers<[1], [0], [0], [1], [0, 0, 1, 1], [], []>} : vector<5x128xf32>, vector<128x128xf32>, vector<5x128xf32> -> vector<5x128xf32>
    %150 = arith.addf %136, %149 : vector<5x128xf32>
    %151 = vector.extract_strided_slice %113 {offsets = [1, 0], sizes = [5, 128], strides = [1, 1]} : vector<7x128xf32> to vector<5x128xf32>
    %cst_87 = arith.constant dense<0.000000e+00> : vector<5x128xf32>
    %152 = tpu.matmul %151, %144, %cst_87 {dimension_numbers = #tpu.dot_dimension_numbers<[1], [0], [0], [1], [0, 0, 1, 1], [], []>} : vector<5x128xf32>, vector<128x128xf32>, vector<5x128xf32> -> vector<5x128xf32>
    %153 = arith.addf %138, %152 : vector<5x128xf32>
    %154 = vector.extract_strided_slice %117 {offsets = [1, 0], sizes = [5, 128], strides = [1, 1]} : vector<7x128xf32> to vector<5x128xf32>
    %cst_88 = arith.constant dense<0.000000e+00> : vector<5x128xf32>
    %155 = tpu.matmul %154, %144, %cst_88 {dimension_numbers = #tpu.dot_dimension_numbers<[1], [0], [0], [1], [0, 0, 1, 1], [], []>} : vector<5x128xf32>, vector<128x128xf32>, vector<5x128xf32> -> vector<5x128xf32>
    %156 = arith.addf %140, %155 : vector<5x128xf32>
    %157 = vector.extract_strided_slice %121 {offsets = [1, 0], sizes = [5, 128], strides = [1, 1]} : vector<7x128xf32> to vector<5x128xf32>
    %cst_89 = arith.constant dense<0.000000e+00> : vector<5x128xf32>
    %158 = tpu.matmul %157, %144, %cst_89 {dimension_numbers = #tpu.dot_dimension_numbers<[1], [0], [0], [1], [0, 0, 1, 1], [], []>} : vector<5x128xf32>, vector<128x128xf32>, vector<5x128xf32> -> vector<5x128xf32>
    %159 = arith.addf %142, %158 : vector<5x128xf32>
    %c2_90 = arith.constant 2 : index
    %c0_91 = arith.constant 0 : index
    %c0_92 = arith.constant 0 : index
    %160 = vector.load %arg4[%c2_90, %c0_91, %c0_92] : memref<9x128x128xf32, #tpu.memory_space<vmem>>, vector<1x128x128xf32>
    %161 = vector.shape_cast %160 : vector<1x128x128xf32> to vector<128x128xf32>
    %162 = vector.extract_strided_slice %105 {offsets = [2, 0], sizes = [5, 128], strides = [1, 1]} : vector<7x128xf32> to vector<5x128xf32>
    %cst_93 = arith.constant dense<0.000000e+00> : vector<5x128xf32>
    %163 = tpu.matmul %162, %161, %cst_93 {dimension_numbers = #tpu.dot_dimension_numbers<[1], [0], [0], [1], [0, 0, 1, 1], [], []>} : vector<5x128xf32>, vector<128x128xf32>, vector<5x128xf32> -> vector<5x128xf32>
    %164 = arith.addf %147, %163 : vector<5x128xf32>
    %165 = vector.extract_strided_slice %109 {offsets = [2, 0], sizes = [5, 128], strides = [1, 1]} : vector<7x128xf32> to vector<5x128xf32>
    %cst_94 = arith.constant dense<0.000000e+00> : vector<5x128xf32>
    %166 = tpu.matmul %165, %161, %cst_94 {dimension_numbers = #tpu.dot_dimension_numbers<[1], [0], [0], [1], [0, 0, 1, 1], [], []>} : vector<5x128xf32>, vector<128x128xf32>, vector<5x128xf32> -> vector<5x128xf32>
    %167 = arith.addf %150, %166 : vector<5x128xf32>
    %168 = vector.extract_strided_slice %113 {offsets = [2, 0], sizes = [5, 128], strides = [1, 1]} : vector<7x128xf32> to vector<5x128xf32>
    %cst_95 = arith.constant dense<0.000000e+00> : vector<5x128xf32>
    %169 = tpu.matmul %168, %161, %cst_95 {dimension_numbers = #tpu.dot_dimension_numbers<[1], [0], [0], [1], [0, 0, 1, 1], [], []>} : vector<5x128xf32>, vector<128x128xf32>, vector<5x128xf32> -> vector<5x128xf32>
    %170 = arith.addf %153, %169 : vector<5x128xf32>
    %171 = vector.extract_strided_slice %117 {offsets = [2, 0], sizes = [5, 128], strides = [1, 1]} : vector<7x128xf32> to vector<5x128xf32>
    %cst_96 = arith.constant dense<0.000000e+00> : vector<5x128xf32>
    %172 = tpu.matmul %171, %161, %cst_96 {dimension_numbers = #tpu.dot_dimension_numbers<[1], [0], [0], [1], [0, 0, 1, 1], [], []>} : vector<5x128xf32>, vector<128x128xf32>, vector<5x128xf32> -> vector<5x128xf32>
    %173 = arith.addf %156, %172 : vector<5x128xf32>
    %174 = vector.extract_strided_slice %121 {offsets = [2, 0], sizes = [5, 128], strides = [1, 1]} : vector<7x128xf32> to vector<5x128xf32>
    %cst_97 = arith.constant dense<0.000000e+00> : vector<5x128xf32>
    %175 = tpu.matmul %174, %161, %cst_97 {dimension_numbers = #tpu.dot_dimension_numbers<[1], [0], [0], [1], [0, 0, 1, 1], [], []>} : vector<5x128xf32>, vector<128x128xf32>, vector<5x128xf32> -> vector<5x128xf32>
    %176 = arith.addf %159, %175 : vector<5x128xf32>
    %c3_98 = arith.constant 3 : index
    %c0_99 = arith.constant 0 : index
    %c0_100 = arith.constant 0 : index
    %177 = vector.load %arg4[%c3_98, %c0_99, %c0_100] : memref<9x128x128xf32, #tpu.memory_space<vmem>>, vector<1x128x128xf32>
    %178 = vector.shape_cast %177 : vector<1x128x128xf32> to vector<128x128xf32>
    %179 = vector.extract_strided_slice %109 {offsets = [0, 0], sizes = [5, 128], strides = [1, 1]} : vector<7x128xf32> to vector<5x128xf32>
    %cst_101 = arith.constant dense<0.000000e+00> : vector<5x128xf32>
    %180 = tpu.matmul %179, %178, %cst_101 {dimension_numbers = #tpu.dot_dimension_numbers<[1], [0], [0], [1], [0, 0, 1, 1], [], []>} : vector<5x128xf32>, vector<128x128xf32>, vector<5x128xf32> -> vector<5x128xf32>
    %181 = arith.addf %164, %180 : vector<5x128xf32>
    %182 = vector.extract_strided_slice %113 {offsets = [0, 0], sizes = [5, 128], strides = [1, 1]} : vector<7x128xf32> to vector<5x128xf32>
    %cst_102 = arith.constant dense<0.000000e+00> : vector<5x128xf32>
    %183 = tpu.matmul %182, %178, %cst_102 {dimension_numbers = #tpu.dot_dimension_numbers<[1], [0], [0], [1], [0, 0, 1, 1], [], []>} : vector<5x128xf32>, vector<128x128xf32>, vector<5x128xf32> -> vector<5x128xf32>
    %184 = arith.addf %167, %183 : vector<5x128xf32>
    %185 = vector.extract_strided_slice %117 {offsets = [0, 0], sizes = [5, 128], strides = [1, 1]} : vector<7x128xf32> to vector<5x128xf32>
    %cst_103 = arith.constant dense<0.000000e+00> : vector<5x128xf32>
    %186 = tpu.matmul %185, %178, %cst_103 {dimension_numbers = #tpu.dot_dimension_numbers<[1], [0], [0], [1], [0, 0, 1, 1], [], []>} : vector<5x128xf32>, vector<128x128xf32>, vector<5x128xf32> -> vector<5x128xf32>
    %187 = arith.addf %170, %186 : vector<5x128xf32>
    %188 = vector.extract_strided_slice %121 {offsets = [0, 0], sizes = [5, 128], strides = [1, 1]} : vector<7x128xf32> to vector<5x128xf32>
    %cst_104 = arith.constant dense<0.000000e+00> : vector<5x128xf32>
    %189 = tpu.matmul %188, %178, %cst_104 {dimension_numbers = #tpu.dot_dimension_numbers<[1], [0], [0], [1], [0, 0, 1, 1], [], []>} : vector<5x128xf32>, vector<128x128xf32>, vector<5x128xf32> -> vector<5x128xf32>
    %190 = arith.addf %173, %189 : vector<5x128xf32>
    %191 = vector.extract_strided_slice %125 {offsets = [0, 0], sizes = [5, 128], strides = [1, 1]} : vector<7x128xf32> to vector<5x128xf32>
    %cst_105 = arith.constant dense<0.000000e+00> : vector<5x128xf32>
    %192 = tpu.matmul %191, %178, %cst_105 {dimension_numbers = #tpu.dot_dimension_numbers<[1], [0], [0], [1], [0, 0, 1, 1], [], []>} : vector<5x128xf32>, vector<128x128xf32>, vector<5x128xf32> -> vector<5x128xf32>
    %193 = arith.addf %176, %192 : vector<5x128xf32>
    %c4_106 = arith.constant 4 : index
    %c0_107 = arith.constant 0 : index
    %c0_108 = arith.constant 0 : index
    %194 = vector.load %arg4[%c4_106, %c0_107, %c0_108] : memref<9x128x128xf32, #tpu.memory_space<vmem>>, vector<1x128x128xf32>
    %195 = vector.shape_cast %194 : vector<1x128x128xf32> to vector<128x128xf32>
    %196 = vector.extract_strided_slice %109 {offsets = [1, 0], sizes = [5, 128], strides = [1, 1]} : vector<7x128xf32> to vector<5x128xf32>
    %cst_109 = arith.constant dense<0.000000e+00> : vector<5x128xf32>
    %197 = tpu.matmul %196, %195, %cst_109 {dimension_numbers = #tpu.dot_dimension_numbers<[1], [0], [0], [1], [0, 0, 1, 1], [], []>} : vector<5x128xf32>, vector<128x128xf32>, vector<5x128xf32> -> vector<5x128xf32>
    %198 = arith.addf %181, %197 : vector<5x128xf32>
    %199 = vector.extract_strided_slice %113 {offsets = [1, 0], sizes = [5, 128], strides = [1, 1]} : vector<7x128xf32> to vector<5x128xf32>
    %cst_110 = arith.constant dense<0.000000e+00> : vector<5x128xf32>
    %200 = tpu.matmul %199, %195, %cst_110 {dimension_numbers = #tpu.dot_dimension_numbers<[1], [0], [0], [1], [0, 0, 1, 1], [], []>} : vector<5x128xf32>, vector<128x128xf32>, vector<5x128xf32> -> vector<5x128xf32>
    %201 = arith.addf %184, %200 : vector<5x128xf32>
    %202 = vector.extract_strided_slice %117 {offsets = [1, 0], sizes = [5, 128], strides = [1, 1]} : vector<7x128xf32> to vector<5x128xf32>
    %cst_111 = arith.constant dense<0.000000e+00> : vector<5x128xf32>
    %203 = tpu.matmul %202, %195, %cst_111 {dimension_numbers = #tpu.dot_dimension_numbers<[1], [0], [0], [1], [0, 0, 1, 1], [], []>} : vector<5x128xf32>, vector<128x128xf32>, vector<5x128xf32> -> vector<5x128xf32>
    %204 = arith.addf %187, %203 : vector<5x128xf32>
    %205 = vector.extract_strided_slice %121 {offsets = [1, 0], sizes = [5, 128], strides = [1, 1]} : vector<7x128xf32> to vector<5x128xf32>
    %cst_112 = arith.constant dense<0.000000e+00> : vector<5x128xf32>
    %206 = tpu.matmul %205, %195, %cst_112 {dimension_numbers = #tpu.dot_dimension_numbers<[1], [0], [0], [1], [0, 0, 1, 1], [], []>} : vector<5x128xf32>, vector<128x128xf32>, vector<5x128xf32> -> vector<5x128xf32>
    %207 = arith.addf %190, %206 : vector<5x128xf32>
    %208 = vector.extract_strided_slice %125 {offsets = [1, 0], sizes = [5, 128], strides = [1, 1]} : vector<7x128xf32> to vector<5x128xf32>
    %cst_113 = arith.constant dense<0.000000e+00> : vector<5x128xf32>
    %209 = tpu.matmul %208, %195, %cst_113 {dimension_numbers = #tpu.dot_dimension_numbers<[1], [0], [0], [1], [0, 0, 1, 1], [], []>} : vector<5x128xf32>, vector<128x128xf32>, vector<5x128xf32> -> vector<5x128xf32>
    %210 = arith.addf %193, %209 : vector<5x128xf32>
    %c5_114 = arith.constant 5 : index
    %c0_115 = arith.constant 0 : index
    %c0_116 = arith.constant 0 : index
    %211 = vector.load %arg4[%c5_114, %c0_115, %c0_116] : memref<9x128x128xf32, #tpu.memory_space<vmem>>, vector<1x128x128xf32>
    %212 = vector.shape_cast %211 : vector<1x128x128xf32> to vector<128x128xf32>
    %213 = vector.extract_strided_slice %109 {offsets = [2, 0], sizes = [5, 128], strides = [1, 1]} : vector<7x128xf32> to vector<5x128xf32>
    %cst_117 = arith.constant dense<0.000000e+00> : vector<5x128xf32>
    %214 = tpu.matmul %213, %212, %cst_117 {dimension_numbers = #tpu.dot_dimension_numbers<[1], [0], [0], [1], [0, 0, 1, 1], [], []>} : vector<5x128xf32>, vector<128x128xf32>, vector<5x128xf32> -> vector<5x128xf32>
    %215 = arith.addf %198, %214 : vector<5x128xf32>
    %216 = vector.extract_strided_slice %113 {offsets = [2, 0], sizes = [5, 128], strides = [1, 1]} : vector<7x128xf32> to vector<5x128xf32>
    %cst_118 = arith.constant dense<0.000000e+00> : vector<5x128xf32>
    %217 = tpu.matmul %216, %212, %cst_118 {dimension_numbers = #tpu.dot_dimension_numbers<[1], [0], [0], [1], [0, 0, 1, 1], [], []>} : vector<5x128xf32>, vector<128x128xf32>, vector<5x128xf32> -> vector<5x128xf32>
    %218 = arith.addf %201, %217 : vector<5x128xf32>
    %219 = vector.extract_strided_slice %117 {offsets = [2, 0], sizes = [5, 128], strides = [1, 1]} : vector<7x128xf32> to vector<5x128xf32>
    %cst_119 = arith.constant dense<0.000000e+00> : vector<5x128xf32>
    %220 = tpu.matmul %219, %212, %cst_119 {dimension_numbers = #tpu.dot_dimension_numbers<[1], [0], [0], [1], [0, 0, 1, 1], [], []>} : vector<5x128xf32>, vector<128x128xf32>, vector<5x128xf32> -> vector<5x128xf32>
    %221 = arith.addf %204, %220 : vector<5x128xf32>
    %222 = vector.extract_strided_slice %121 {offsets = [2, 0], sizes = [5, 128], strides = [1, 1]} : vector<7x128xf32> to vector<5x128xf32>
    %cst_120 = arith.constant dense<0.000000e+00> : vector<5x128xf32>
    %223 = tpu.matmul %222, %212, %cst_120 {dimension_numbers = #tpu.dot_dimension_numbers<[1], [0], [0], [1], [0, 0, 1, 1], [], []>} : vector<5x128xf32>, vector<128x128xf32>, vector<5x128xf32> -> vector<5x128xf32>
    %224 = arith.addf %207, %223 : vector<5x128xf32>
    %225 = vector.extract_strided_slice %125 {offsets = [2, 0], sizes = [5, 128], strides = [1, 1]} : vector<7x128xf32> to vector<5x128xf32>
    %cst_121 = arith.constant dense<0.000000e+00> : vector<5x128xf32>
    %226 = tpu.matmul %225, %212, %cst_121 {dimension_numbers = #tpu.dot_dimension_numbers<[1], [0], [0], [1], [0, 0, 1, 1], [], []>} : vector<5x128xf32>, vector<128x128xf32>, vector<5x128xf32> -> vector<5x128xf32>
    %227 = arith.addf %210, %226 : vector<5x128xf32>
    %c6_122 = arith.constant 6 : index
    %c0_123 = arith.constant 0 : index
    %c0_124 = arith.constant 0 : index
    %228 = vector.load %arg4[%c6_122, %c0_123, %c0_124] : memref<9x128x128xf32, #tpu.memory_space<vmem>>, vector<1x128x128xf32>
    %229 = vector.shape_cast %228 : vector<1x128x128xf32> to vector<128x128xf32>
    %230 = vector.extract_strided_slice %113 {offsets = [0, 0], sizes = [5, 128], strides = [1, 1]} : vector<7x128xf32> to vector<5x128xf32>
    %cst_125 = arith.constant dense<0.000000e+00> : vector<5x128xf32>
    %231 = tpu.matmul %230, %229, %cst_125 {dimension_numbers = #tpu.dot_dimension_numbers<[1], [0], [0], [1], [0, 0, 1, 1], [], []>} : vector<5x128xf32>, vector<128x128xf32>, vector<5x128xf32> -> vector<5x128xf32>
    %232 = arith.addf %215, %231 : vector<5x128xf32>
    %233 = vector.extract_strided_slice %117 {offsets = [0, 0], sizes = [5, 128], strides = [1, 1]} : vector<7x128xf32> to vector<5x128xf32>
    %cst_126 = arith.constant dense<0.000000e+00> : vector<5x128xf32>
    %234 = tpu.matmul %233, %229, %cst_126 {dimension_numbers = #tpu.dot_dimension_numbers<[1], [0], [0], [1], [0, 0, 1, 1], [], []>} : vector<5x128xf32>, vector<128x128xf32>, vector<5x128xf32> -> vector<5x128xf32>
    %235 = arith.addf %218, %234 : vector<5x128xf32>
    %236 = vector.extract_strided_slice %121 {offsets = [0, 0], sizes = [5, 128], strides = [1, 1]} : vector<7x128xf32> to vector<5x128xf32>
    %cst_127 = arith.constant dense<0.000000e+00> : vector<5x128xf32>
    %237 = tpu.matmul %236, %229, %cst_127 {dimension_numbers = #tpu.dot_dimension_numbers<[1], [0], [0], [1], [0, 0, 1, 1], [], []>} : vector<5x128xf32>, vector<128x128xf32>, vector<5x128xf32> -> vector<5x128xf32>
    %238 = arith.addf %221, %237 : vector<5x128xf32>
    %239 = vector.extract_strided_slice %125 {offsets = [0, 0], sizes = [5, 128], strides = [1, 1]} : vector<7x128xf32> to vector<5x128xf32>
    %cst_128 = arith.constant dense<0.000000e+00> : vector<5x128xf32>
    %240 = tpu.matmul %239, %229, %cst_128 {dimension_numbers = #tpu.dot_dimension_numbers<[1], [0], [0], [1], [0, 0, 1, 1], [], []>} : vector<5x128xf32>, vector<128x128xf32>, vector<5x128xf32> -> vector<5x128xf32>
    %241 = arith.addf %224, %240 : vector<5x128xf32>
    %242 = vector.extract_strided_slice %129 {offsets = [0, 0], sizes = [5, 128], strides = [1, 1]} : vector<7x128xf32> to vector<5x128xf32>
    %cst_129 = arith.constant dense<0.000000e+00> : vector<5x128xf32>
    %243 = tpu.matmul %242, %229, %cst_129 {dimension_numbers = #tpu.dot_dimension_numbers<[1], [0], [0], [1], [0, 0, 1, 1], [], []>} : vector<5x128xf32>, vector<128x128xf32>, vector<5x128xf32> -> vector<5x128xf32>
    %244 = arith.addf %227, %243 : vector<5x128xf32>
    %c7_130 = arith.constant 7 : index
    %c0_131 = arith.constant 0 : index
    %c0_132 = arith.constant 0 : index
    %245 = vector.load %arg4[%c7_130, %c0_131, %c0_132] : memref<9x128x128xf32, #tpu.memory_space<vmem>>, vector<1x128x128xf32>
    %246 = vector.shape_cast %245 : vector<1x128x128xf32> to vector<128x128xf32>
    %247 = vector.extract_strided_slice %113 {offsets = [1, 0], sizes = [5, 128], strides = [1, 1]} : vector<7x128xf32> to vector<5x128xf32>
    %cst_133 = arith.constant dense<0.000000e+00> : vector<5x128xf32>
    %248 = tpu.matmul %247, %246, %cst_133 {dimension_numbers = #tpu.dot_dimension_numbers<[1], [0], [0], [1], [0, 0, 1, 1], [], []>} : vector<5x128xf32>, vector<128x128xf32>, vector<5x128xf32> -> vector<5x128xf32>
    %249 = arith.addf %232, %248 : vector<5x128xf32>
    %250 = vector.extract_strided_slice %117 {offsets = [1, 0], sizes = [5, 128], strides = [1, 1]} : vector<7x128xf32> to vector<5x128xf32>
    %cst_134 = arith.constant dense<0.000000e+00> : vector<5x128xf32>
    %251 = tpu.matmul %250, %246, %cst_134 {dimension_numbers = #tpu.dot_dimension_numbers<[1], [0], [0], [1], [0, 0, 1, 1], [], []>} : vector<5x128xf32>, vector<128x128xf32>, vector<5x128xf32> -> vector<5x128xf32>
    %252 = arith.addf %235, %251 : vector<5x128xf32>
    %253 = vector.extract_strided_slice %121 {offsets = [1, 0], sizes = [5, 128], strides = [1, 1]} : vector<7x128xf32> to vector<5x128xf32>
    %cst_135 = arith.constant dense<0.000000e+00> : vector<5x128xf32>
    %254 = tpu.matmul %253, %246, %cst_135 {dimension_numbers = #tpu.dot_dimension_numbers<[1], [0], [0], [1], [0, 0, 1, 1], [], []>} : vector<5x128xf32>, vector<128x128xf32>, vector<5x128xf32> -> vector<5x128xf32>
    %255 = arith.addf %238, %254 : vector<5x128xf32>
    %256 = vector.extract_strided_slice %125 {offsets = [1, 0], sizes = [5, 128], strides = [1, 1]} : vector<7x128xf32> to vector<5x128xf32>
    %cst_136 = arith.constant dense<0.000000e+00> : vector<5x128xf32>
    %257 = tpu.matmul %256, %246, %cst_136 {dimension_numbers = #tpu.dot_dimension_numbers<[1], [0], [0], [1], [0, 0, 1, 1], [], []>} : vector<5x128xf32>, vector<128x128xf32>, vector<5x128xf32> -> vector<5x128xf32>
    %258 = arith.addf %241, %257 : vector<5x128xf32>
    %259 = vector.extract_strided_slice %129 {offsets = [1, 0], sizes = [5, 128], strides = [1, 1]} : vector<7x128xf32> to vector<5x128xf32>
    %cst_137 = arith.constant dense<0.000000e+00> : vector<5x128xf32>
    %260 = tpu.matmul %259, %246, %cst_137 {dimension_numbers = #tpu.dot_dimension_numbers<[1], [0], [0], [1], [0, 0, 1, 1], [], []>} : vector<5x128xf32>, vector<128x128xf32>, vector<5x128xf32> -> vector<5x128xf32>
    %261 = arith.addf %244, %260 : vector<5x128xf32>
    %c8 = arith.constant 8 : index
    %c0_138 = arith.constant 0 : index
    %c0_139 = arith.constant 0 : index
    %262 = vector.load %arg4[%c8, %c0_138, %c0_139] : memref<9x128x128xf32, #tpu.memory_space<vmem>>, vector<1x128x128xf32>
    %263 = vector.shape_cast %262 : vector<1x128x128xf32> to vector<128x128xf32>
    %264 = vector.extract_strided_slice %113 {offsets = [2, 0], sizes = [5, 128], strides = [1, 1]} : vector<7x128xf32> to vector<5x128xf32>
    %cst_140 = arith.constant dense<0.000000e+00> : vector<5x128xf32>
    %265 = tpu.matmul %264, %263, %cst_140 {dimension_numbers = #tpu.dot_dimension_numbers<[1], [0], [0], [1], [0, 0, 1, 1], [], []>} : vector<5x128xf32>, vector<128x128xf32>, vector<5x128xf32> -> vector<5x128xf32>
    %266 = arith.addf %249, %265 : vector<5x128xf32>
    %267 = vector.extract_strided_slice %117 {offsets = [2, 0], sizes = [5, 128], strides = [1, 1]} : vector<7x128xf32> to vector<5x128xf32>
    %cst_141 = arith.constant dense<0.000000e+00> : vector<5x128xf32>
    %268 = tpu.matmul %267, %263, %cst_141 {dimension_numbers = #tpu.dot_dimension_numbers<[1], [0], [0], [1], [0, 0, 1, 1], [], []>} : vector<5x128xf32>, vector<128x128xf32>, vector<5x128xf32> -> vector<5x128xf32>
    %269 = arith.addf %252, %268 : vector<5x128xf32>
    %270 = vector.extract_strided_slice %121 {offsets = [2, 0], sizes = [5, 128], strides = [1, 1]} : vector<7x128xf32> to vector<5x128xf32>
    %cst_142 = arith.constant dense<0.000000e+00> : vector<5x128xf32>
    %271 = tpu.matmul %270, %263, %cst_142 {dimension_numbers = #tpu.dot_dimension_numbers<[1], [0], [0], [1], [0, 0, 1, 1], [], []>} : vector<5x128xf32>, vector<128x128xf32>, vector<5x128xf32> -> vector<5x128xf32>
    %272 = arith.addf %255, %271 : vector<5x128xf32>
    %273 = vector.extract_strided_slice %125 {offsets = [2, 0], sizes = [5, 128], strides = [1, 1]} : vector<7x128xf32> to vector<5x128xf32>
    %cst_143 = arith.constant dense<0.000000e+00> : vector<5x128xf32>
    %274 = tpu.matmul %273, %263, %cst_143 {dimension_numbers = #tpu.dot_dimension_numbers<[1], [0], [0], [1], [0, 0, 1, 1], [], []>} : vector<5x128xf32>, vector<128x128xf32>, vector<5x128xf32> -> vector<5x128xf32>
    %275 = arith.addf %258, %274 : vector<5x128xf32>
    %276 = vector.extract_strided_slice %129 {offsets = [2, 0], sizes = [5, 128], strides = [1, 1]} : vector<7x128xf32> to vector<5x128xf32>
    %cst_144 = arith.constant dense<0.000000e+00> : vector<5x128xf32>
    %277 = tpu.matmul %276, %263, %cst_144 {dimension_numbers = #tpu.dot_dimension_numbers<[1], [0], [0], [1], [0, 0, 1, 1], [], []>} : vector<5x128xf32>, vector<128x128xf32>, vector<5x128xf32> -> vector<5x128xf32>
    %278 = arith.addf %261, %277 : vector<5x128xf32>
    %279 = vector.broadcast %130 : vector<1x128xf32> to vector<5x128xf32>
    %280 = arith.addf %266, %279 : vector<5x128xf32>
    %cst_145 = arith.constant 0.000000e+00 : f32
    %281 = vector.broadcast %cst_145 : f32 to vector<5x128xf32>
    %282 = arith.maximumf %280, %281 : vector<5x128xf32>
    %283 = vector.broadcast %130 : vector<1x128xf32> to vector<5x128xf32>
    %284 = arith.addf %269, %283 : vector<5x128xf32>
    %cst_146 = arith.constant 0.000000e+00 : f32
    %285 = vector.broadcast %cst_146 : f32 to vector<5x128xf32>
    %286 = arith.maximumf %284, %285 : vector<5x128xf32>
    %287 = vector.broadcast %130 : vector<1x128xf32> to vector<5x128xf32>
    %288 = arith.addf %272, %287 : vector<5x128xf32>
    %cst_147 = arith.constant 0.000000e+00 : f32
    %289 = vector.broadcast %cst_147 : f32 to vector<5x128xf32>
    %290 = arith.maximumf %288, %289 : vector<5x128xf32>
    %291 = vector.broadcast %130 : vector<1x128xf32> to vector<5x128xf32>
    %292 = arith.addf %275, %291 : vector<5x128xf32>
    %cst_148 = arith.constant 0.000000e+00 : f32
    %293 = vector.broadcast %cst_148 : f32 to vector<5x128xf32>
    %294 = arith.maximumf %292, %293 : vector<5x128xf32>
    %295 = vector.broadcast %130 : vector<1x128xf32> to vector<5x128xf32>
    %296 = arith.addf %278, %295 : vector<5x128xf32>
    %cst_149 = arith.constant 0.000000e+00 : f32
    %297 = vector.broadcast %cst_149 : f32 to vector<5x128xf32>
    %298 = arith.maximumf %296, %297 : vector<5x128xf32>
    %c0_150 = arith.constant 0 : index
    %c0_151 = arith.constant 0 : index
    %299 = vector.load %arg7[%c0_150, %c0_151] : memref<1x128xf32, #tpu.memory_space<vmem>>, vector<1x128xf32>
    %300 = vector.extract_strided_slice %282 {offsets = [0, 0], sizes = [1, 128], strides = [1, 1]} : vector<5x128xf32> to vector<1x128xf32>
    %c0_152 = arith.constant 0 : index
    %c0_153 = arith.constant 0 : index
    %c0_154 = arith.constant 0 : index
    %301 = vector.load %arg6[%c0_152, %c0_153, %c0_154] : memref<25x128x128xf32, #tpu.memory_space<vmem>>, vector<1x128x128xf32>
    %302 = vector.shape_cast %301 : vector<1x128x128xf32> to vector<128x128xf32>
    %cst_155 = arith.constant dense<0.000000e+00> : vector<1x128xf32>
    %303 = tpu.matmul %300, %302, %cst_155 {dimension_numbers = #tpu.dot_dimension_numbers<[1], [0], [0], [1], [0, 0, 1, 1], [], []>} : vector<1x128xf32>, vector<128x128xf32>, vector<1x128xf32> -> vector<1x128xf32>
    %304 = arith.addf %299, %303 : vector<1x128xf32>
    %305 = vector.extract_strided_slice %282 {offsets = [1, 0], sizes = [1, 128], strides = [1, 1]} : vector<5x128xf32> to vector<1x128xf32>
    %c1_156 = arith.constant 1 : index
    %c0_157 = arith.constant 0 : index
    %c0_158 = arith.constant 0 : index
    %306 = vector.load %arg6[%c1_156, %c0_157, %c0_158] : memref<25x128x128xf32, #tpu.memory_space<vmem>>, vector<1x128x128xf32>
    %307 = vector.shape_cast %306 : vector<1x128x128xf32> to vector<128x128xf32>
    %cst_159 = arith.constant dense<0.000000e+00> : vector<1x128xf32>
    %308 = tpu.matmul %305, %307, %cst_159 {dimension_numbers = #tpu.dot_dimension_numbers<[1], [0], [0], [1], [0, 0, 1, 1], [], []>} : vector<1x128xf32>, vector<128x128xf32>, vector<1x128xf32> -> vector<1x128xf32>
    %309 = arith.addf %304, %308 : vector<1x128xf32>
    %310 = vector.extract_strided_slice %282 {offsets = [2, 0], sizes = [1, 128], strides = [1, 1]} : vector<5x128xf32> to vector<1x128xf32>
    %c2_160 = arith.constant 2 : index
    %c0_161 = arith.constant 0 : index
    %c0_162 = arith.constant 0 : index
    %311 = vector.load %arg6[%c2_160, %c0_161, %c0_162] : memref<25x128x128xf32, #tpu.memory_space<vmem>>, vector<1x128x128xf32>
    %312 = vector.shape_cast %311 : vector<1x128x128xf32> to vector<128x128xf32>
    %cst_163 = arith.constant dense<0.000000e+00> : vector<1x128xf32>
    %313 = tpu.matmul %310, %312, %cst_163 {dimension_numbers = #tpu.dot_dimension_numbers<[1], [0], [0], [1], [0, 0, 1, 1], [], []>} : vector<1x128xf32>, vector<128x128xf32>, vector<1x128xf32> -> vector<1x128xf32>
    %314 = arith.addf %309, %313 : vector<1x128xf32>
    %315 = vector.extract_strided_slice %282 {offsets = [3, 0], sizes = [1, 128], strides = [1, 1]} : vector<5x128xf32> to vector<1x128xf32>
    %c3_164 = arith.constant 3 : index
    %c0_165 = arith.constant 0 : index
    %c0_166 = arith.constant 0 : index
    %316 = vector.load %arg6[%c3_164, %c0_165, %c0_166] : memref<25x128x128xf32, #tpu.memory_space<vmem>>, vector<1x128x128xf32>
    %317 = vector.shape_cast %316 : vector<1x128x128xf32> to vector<128x128xf32>
    %cst_167 = arith.constant dense<0.000000e+00> : vector<1x128xf32>
    %318 = tpu.matmul %315, %317, %cst_167 {dimension_numbers = #tpu.dot_dimension_numbers<[1], [0], [0], [1], [0, 0, 1, 1], [], []>} : vector<1x128xf32>, vector<128x128xf32>, vector<1x128xf32> -> vector<1x128xf32>
    %319 = arith.addf %314, %318 : vector<1x128xf32>
    %320 = vector.extract_strided_slice %282 {offsets = [4, 0], sizes = [1, 128], strides = [1, 1]} : vector<5x128xf32> to vector<1x128xf32>
    %c4_168 = arith.constant 4 : index
    %c0_169 = arith.constant 0 : index
    %c0_170 = arith.constant 0 : index
    %321 = vector.load %arg6[%c4_168, %c0_169, %c0_170] : memref<25x128x128xf32, #tpu.memory_space<vmem>>, vector<1x128x128xf32>
    %322 = vector.shape_cast %321 : vector<1x128x128xf32> to vector<128x128xf32>
    %cst_171 = arith.constant dense<0.000000e+00> : vector<1x128xf32>
    %323 = tpu.matmul %320, %322, %cst_171 {dimension_numbers = #tpu.dot_dimension_numbers<[1], [0], [0], [1], [0, 0, 1, 1], [], []>} : vector<1x128xf32>, vector<128x128xf32>, vector<1x128xf32> -> vector<1x128xf32>
    %324 = arith.addf %319, %323 : vector<1x128xf32>
    %325 = vector.extract_strided_slice %286 {offsets = [0, 0], sizes = [1, 128], strides = [1, 1]} : vector<5x128xf32> to vector<1x128xf32>
    %c5_172 = arith.constant 5 : index
    %c0_173 = arith.constant 0 : index
    %c0_174 = arith.constant 0 : index
    %326 = vector.load %arg6[%c5_172, %c0_173, %c0_174] : memref<25x128x128xf32, #tpu.memory_space<vmem>>, vector<1x128x128xf32>
    %327 = vector.shape_cast %326 : vector<1x128x128xf32> to vector<128x128xf32>
    %cst_175 = arith.constant dense<0.000000e+00> : vector<1x128xf32>
    %328 = tpu.matmul %325, %327, %cst_175 {dimension_numbers = #tpu.dot_dimension_numbers<[1], [0], [0], [1], [0, 0, 1, 1], [], []>} : vector<1x128xf32>, vector<128x128xf32>, vector<1x128xf32> -> vector<1x128xf32>
    %329 = arith.addf %324, %328 : vector<1x128xf32>
    %330 = vector.extract_strided_slice %286 {offsets = [1, 0], sizes = [1, 128], strides = [1, 1]} : vector<5x128xf32> to vector<1x128xf32>
    %c6_176 = arith.constant 6 : index
    %c0_177 = arith.constant 0 : index
    %c0_178 = arith.constant 0 : index
    %331 = vector.load %arg6[%c6_176, %c0_177, %c0_178] : memref<25x128x128xf32, #tpu.memory_space<vmem>>, vector<1x128x128xf32>
    %332 = vector.shape_cast %331 : vector<1x128x128xf32> to vector<128x128xf32>
    %cst_179 = arith.constant dense<0.000000e+00> : vector<1x128xf32>
    %333 = tpu.matmul %330, %332, %cst_179 {dimension_numbers = #tpu.dot_dimension_numbers<[1], [0], [0], [1], [0, 0, 1, 1], [], []>} : vector<1x128xf32>, vector<128x128xf32>, vector<1x128xf32> -> vector<1x128xf32>
    %334 = arith.addf %329, %333 : vector<1x128xf32>
    %335 = vector.extract_strided_slice %286 {offsets = [2, 0], sizes = [1, 128], strides = [1, 1]} : vector<5x128xf32> to vector<1x128xf32>
    %c7_180 = arith.constant 7 : index
    %c0_181 = arith.constant 0 : index
    %c0_182 = arith.constant 0 : index
    %336 = vector.load %arg6[%c7_180, %c0_181, %c0_182] : memref<25x128x128xf32, #tpu.memory_space<vmem>>, vector<1x128x128xf32>
    %337 = vector.shape_cast %336 : vector<1x128x128xf32> to vector<128x128xf32>
    %cst_183 = arith.constant dense<0.000000e+00> : vector<1x128xf32>
    %338 = tpu.matmul %335, %337, %cst_183 {dimension_numbers = #tpu.dot_dimension_numbers<[1], [0], [0], [1], [0, 0, 1, 1], [], []>} : vector<1x128xf32>, vector<128x128xf32>, vector<1x128xf32> -> vector<1x128xf32>
    %339 = arith.addf %334, %338 : vector<1x128xf32>
    %340 = vector.extract_strided_slice %286 {offsets = [3, 0], sizes = [1, 128], strides = [1, 1]} : vector<5x128xf32> to vector<1x128xf32>
    %c8_184 = arith.constant 8 : index
    %c0_185 = arith.constant 0 : index
    %c0_186 = arith.constant 0 : index
    %341 = vector.load %arg6[%c8_184, %c0_185, %c0_186] : memref<25x128x128xf32, #tpu.memory_space<vmem>>, vector<1x128x128xf32>
    %342 = vector.shape_cast %341 : vector<1x128x128xf32> to vector<128x128xf32>
    %cst_187 = arith.constant dense<0.000000e+00> : vector<1x128xf32>
    %343 = tpu.matmul %340, %342, %cst_187 {dimension_numbers = #tpu.dot_dimension_numbers<[1], [0], [0], [1], [0, 0, 1, 1], [], []>} : vector<1x128xf32>, vector<128x128xf32>, vector<1x128xf32> -> vector<1x128xf32>
    %344 = arith.addf %339, %343 : vector<1x128xf32>
    %345 = vector.extract_strided_slice %286 {offsets = [4, 0], sizes = [1, 128], strides = [1, 1]} : vector<5x128xf32> to vector<1x128xf32>
    %c9 = arith.constant 9 : index
    %c0_188 = arith.constant 0 : index
    %c0_189 = arith.constant 0 : index
    %346 = vector.load %arg6[%c9, %c0_188, %c0_189] : memref<25x128x128xf32, #tpu.memory_space<vmem>>, vector<1x128x128xf32>
    %347 = vector.shape_cast %346 : vector<1x128x128xf32> to vector<128x128xf32>
    %cst_190 = arith.constant dense<0.000000e+00> : vector<1x128xf32>
    %348 = tpu.matmul %345, %347, %cst_190 {dimension_numbers = #tpu.dot_dimension_numbers<[1], [0], [0], [1], [0, 0, 1, 1], [], []>} : vector<1x128xf32>, vector<128x128xf32>, vector<1x128xf32> -> vector<1x128xf32>
    %349 = arith.addf %344, %348 : vector<1x128xf32>
    %350 = vector.extract_strided_slice %290 {offsets = [0, 0], sizes = [1, 128], strides = [1, 1]} : vector<5x128xf32> to vector<1x128xf32>
    %c10 = arith.constant 10 : index
    %c0_191 = arith.constant 0 : index
    %c0_192 = arith.constant 0 : index
    %351 = vector.load %arg6[%c10, %c0_191, %c0_192] : memref<25x128x128xf32, #tpu.memory_space<vmem>>, vector<1x128x128xf32>
    %352 = vector.shape_cast %351 : vector<1x128x128xf32> to vector<128x128xf32>
    %cst_193 = arith.constant dense<0.000000e+00> : vector<1x128xf32>
    %353 = tpu.matmul %350, %352, %cst_193 {dimension_numbers = #tpu.dot_dimension_numbers<[1], [0], [0], [1], [0, 0, 1, 1], [], []>} : vector<1x128xf32>, vector<128x128xf32>, vector<1x128xf32> -> vector<1x128xf32>
    %354 = arith.addf %349, %353 : vector<1x128xf32>
    %355 = vector.extract_strided_slice %290 {offsets = [1, 0], sizes = [1, 128], strides = [1, 1]} : vector<5x128xf32> to vector<1x128xf32>
    %c11 = arith.constant 11 : index
    %c0_194 = arith.constant 0 : index
    %c0_195 = arith.constant 0 : index
    %356 = vector.load %arg6[%c11, %c0_194, %c0_195] : memref<25x128x128xf32, #tpu.memory_space<vmem>>, vector<1x128x128xf32>
    %357 = vector.shape_cast %356 : vector<1x128x128xf32> to vector<128x128xf32>
    %cst_196 = arith.constant dense<0.000000e+00> : vector<1x128xf32>
    %358 = tpu.matmul %355, %357, %cst_196 {dimension_numbers = #tpu.dot_dimension_numbers<[1], [0], [0], [1], [0, 0, 1, 1], [], []>} : vector<1x128xf32>, vector<128x128xf32>, vector<1x128xf32> -> vector<1x128xf32>
    %359 = arith.addf %354, %358 : vector<1x128xf32>
    %360 = vector.extract_strided_slice %290 {offsets = [2, 0], sizes = [1, 128], strides = [1, 1]} : vector<5x128xf32> to vector<1x128xf32>
    %c12 = arith.constant 12 : index
    %c0_197 = arith.constant 0 : index
    %c0_198 = arith.constant 0 : index
    %361 = vector.load %arg6[%c12, %c0_197, %c0_198] : memref<25x128x128xf32, #tpu.memory_space<vmem>>, vector<1x128x128xf32>
    %362 = vector.shape_cast %361 : vector<1x128x128xf32> to vector<128x128xf32>
    %cst_199 = arith.constant dense<0.000000e+00> : vector<1x128xf32>
    %363 = tpu.matmul %360, %362, %cst_199 {dimension_numbers = #tpu.dot_dimension_numbers<[1], [0], [0], [1], [0, 0, 1, 1], [], []>} : vector<1x128xf32>, vector<128x128xf32>, vector<1x128xf32> -> vector<1x128xf32>
    %364 = arith.addf %359, %363 : vector<1x128xf32>
    %365 = vector.extract_strided_slice %290 {offsets = [3, 0], sizes = [1, 128], strides = [1, 1]} : vector<5x128xf32> to vector<1x128xf32>
    %c13 = arith.constant 13 : index
    %c0_200 = arith.constant 0 : index
    %c0_201 = arith.constant 0 : index
    %366 = vector.load %arg6[%c13, %c0_200, %c0_201] : memref<25x128x128xf32, #tpu.memory_space<vmem>>, vector<1x128x128xf32>
    %367 = vector.shape_cast %366 : vector<1x128x128xf32> to vector<128x128xf32>
    %cst_202 = arith.constant dense<0.000000e+00> : vector<1x128xf32>
    %368 = tpu.matmul %365, %367, %cst_202 {dimension_numbers = #tpu.dot_dimension_numbers<[1], [0], [0], [1], [0, 0, 1, 1], [], []>} : vector<1x128xf32>, vector<128x128xf32>, vector<1x128xf32> -> vector<1x128xf32>
    %369 = arith.addf %364, %368 : vector<1x128xf32>
    %370 = vector.extract_strided_slice %290 {offsets = [4, 0], sizes = [1, 128], strides = [1, 1]} : vector<5x128xf32> to vector<1x128xf32>
    %c14 = arith.constant 14 : index
    %c0_203 = arith.constant 0 : index
    %c0_204 = arith.constant 0 : index
    %371 = vector.load %arg6[%c14, %c0_203, %c0_204] : memref<25x128x128xf32, #tpu.memory_space<vmem>>, vector<1x128x128xf32>
    %372 = vector.shape_cast %371 : vector<1x128x128xf32> to vector<128x128xf32>
    %cst_205 = arith.constant dense<0.000000e+00> : vector<1x128xf32>
    %373 = tpu.matmul %370, %372, %cst_205 {dimension_numbers = #tpu.dot_dimension_numbers<[1], [0], [0], [1], [0, 0, 1, 1], [], []>} : vector<1x128xf32>, vector<128x128xf32>, vector<1x128xf32> -> vector<1x128xf32>
    %374 = arith.addf %369, %373 : vector<1x128xf32>
    %375 = vector.extract_strided_slice %294 {offsets = [0, 0], sizes = [1, 128], strides = [1, 1]} : vector<5x128xf32> to vector<1x128xf32>
    %c15 = arith.constant 15 : index
    %c0_206 = arith.constant 0 : index
    %c0_207 = arith.constant 0 : index
    %376 = vector.load %arg6[%c15, %c0_206, %c0_207] : memref<25x128x128xf32, #tpu.memory_space<vmem>>, vector<1x128x128xf32>
    %377 = vector.shape_cast %376 : vector<1x128x128xf32> to vector<128x128xf32>
    %cst_208 = arith.constant dense<0.000000e+00> : vector<1x128xf32>
    %378 = tpu.matmul %375, %377, %cst_208 {dimension_numbers = #tpu.dot_dimension_numbers<[1], [0], [0], [1], [0, 0, 1, 1], [], []>} : vector<1x128xf32>, vector<128x128xf32>, vector<1x128xf32> -> vector<1x128xf32>
    %379 = arith.addf %374, %378 : vector<1x128xf32>
    %380 = vector.extract_strided_slice %294 {offsets = [1, 0], sizes = [1, 128], strides = [1, 1]} : vector<5x128xf32> to vector<1x128xf32>
    %c16 = arith.constant 16 : index
    %c0_209 = arith.constant 0 : index
    %c0_210 = arith.constant 0 : index
    %381 = vector.load %arg6[%c16, %c0_209, %c0_210] : memref<25x128x128xf32, #tpu.memory_space<vmem>>, vector<1x128x128xf32>
    %382 = vector.shape_cast %381 : vector<1x128x128xf32> to vector<128x128xf32>
    %cst_211 = arith.constant dense<0.000000e+00> : vector<1x128xf32>
    %383 = tpu.matmul %380, %382, %cst_211 {dimension_numbers = #tpu.dot_dimension_numbers<[1], [0], [0], [1], [0, 0, 1, 1], [], []>} : vector<1x128xf32>, vector<128x128xf32>, vector<1x128xf32> -> vector<1x128xf32>
    %384 = arith.addf %379, %383 : vector<1x128xf32>
    %385 = vector.extract_strided_slice %294 {offsets = [2, 0], sizes = [1, 128], strides = [1, 1]} : vector<5x128xf32> to vector<1x128xf32>
    %c17 = arith.constant 17 : index
    %c0_212 = arith.constant 0 : index
    %c0_213 = arith.constant 0 : index
    %386 = vector.load %arg6[%c17, %c0_212, %c0_213] : memref<25x128x128xf32, #tpu.memory_space<vmem>>, vector<1x128x128xf32>
    %387 = vector.shape_cast %386 : vector<1x128x128xf32> to vector<128x128xf32>
    %cst_214 = arith.constant dense<0.000000e+00> : vector<1x128xf32>
    %388 = tpu.matmul %385, %387, %cst_214 {dimension_numbers = #tpu.dot_dimension_numbers<[1], [0], [0], [1], [0, 0, 1, 1], [], []>} : vector<1x128xf32>, vector<128x128xf32>, vector<1x128xf32> -> vector<1x128xf32>
    %389 = arith.addf %384, %388 : vector<1x128xf32>
    %390 = vector.extract_strided_slice %294 {offsets = [3, 0], sizes = [1, 128], strides = [1, 1]} : vector<5x128xf32> to vector<1x128xf32>
    %c18 = arith.constant 18 : index
    %c0_215 = arith.constant 0 : index
    %c0_216 = arith.constant 0 : index
    %391 = vector.load %arg6[%c18, %c0_215, %c0_216] : memref<25x128x128xf32, #tpu.memory_space<vmem>>, vector<1x128x128xf32>
    %392 = vector.shape_cast %391 : vector<1x128x128xf32> to vector<128x128xf32>
    %cst_217 = arith.constant dense<0.000000e+00> : vector<1x128xf32>
    %393 = tpu.matmul %390, %392, %cst_217 {dimension_numbers = #tpu.dot_dimension_numbers<[1], [0], [0], [1], [0, 0, 1, 1], [], []>} : vector<1x128xf32>, vector<128x128xf32>, vector<1x128xf32> -> vector<1x128xf32>
    %394 = arith.addf %389, %393 : vector<1x128xf32>
    %395 = vector.extract_strided_slice %294 {offsets = [4, 0], sizes = [1, 128], strides = [1, 1]} : vector<5x128xf32> to vector<1x128xf32>
    %c19 = arith.constant 19 : index
    %c0_218 = arith.constant 0 : index
    %c0_219 = arith.constant 0 : index
    %396 = vector.load %arg6[%c19, %c0_218, %c0_219] : memref<25x128x128xf32, #tpu.memory_space<vmem>>, vector<1x128x128xf32>
    %397 = vector.shape_cast %396 : vector<1x128x128xf32> to vector<128x128xf32>
    %cst_220 = arith.constant dense<0.000000e+00> : vector<1x128xf32>
    %398 = tpu.matmul %395, %397, %cst_220 {dimension_numbers = #tpu.dot_dimension_numbers<[1], [0], [0], [1], [0, 0, 1, 1], [], []>} : vector<1x128xf32>, vector<128x128xf32>, vector<1x128xf32> -> vector<1x128xf32>
    %399 = arith.addf %394, %398 : vector<1x128xf32>
    %400 = vector.extract_strided_slice %298 {offsets = [0, 0], sizes = [1, 128], strides = [1, 1]} : vector<5x128xf32> to vector<1x128xf32>
    %c20 = arith.constant 20 : index
    %c0_221 = arith.constant 0 : index
    %c0_222 = arith.constant 0 : index
    %401 = vector.load %arg6[%c20, %c0_221, %c0_222] : memref<25x128x128xf32, #tpu.memory_space<vmem>>, vector<1x128x128xf32>
    %402 = vector.shape_cast %401 : vector<1x128x128xf32> to vector<128x128xf32>
    %cst_223 = arith.constant dense<0.000000e+00> : vector<1x128xf32>
    %403 = tpu.matmul %400, %402, %cst_223 {dimension_numbers = #tpu.dot_dimension_numbers<[1], [0], [0], [1], [0, 0, 1, 1], [], []>} : vector<1x128xf32>, vector<128x128xf32>, vector<1x128xf32> -> vector<1x128xf32>
    %404 = arith.addf %399, %403 : vector<1x128xf32>
    %405 = vector.extract_strided_slice %298 {offsets = [1, 0], sizes = [1, 128], strides = [1, 1]} : vector<5x128xf32> to vector<1x128xf32>
    %c21 = arith.constant 21 : index
    %c0_224 = arith.constant 0 : index
    %c0_225 = arith.constant 0 : index
    %406 = vector.load %arg6[%c21, %c0_224, %c0_225] : memref<25x128x128xf32, #tpu.memory_space<vmem>>, vector<1x128x128xf32>
    %407 = vector.shape_cast %406 : vector<1x128x128xf32> to vector<128x128xf32>
    %cst_226 = arith.constant dense<0.000000e+00> : vector<1x128xf32>
    %408 = tpu.matmul %405, %407, %cst_226 {dimension_numbers = #tpu.dot_dimension_numbers<[1], [0], [0], [1], [0, 0, 1, 1], [], []>} : vector<1x128xf32>, vector<128x128xf32>, vector<1x128xf32> -> vector<1x128xf32>
    %409 = arith.addf %404, %408 : vector<1x128xf32>
    %410 = vector.extract_strided_slice %298 {offsets = [2, 0], sizes = [1, 128], strides = [1, 1]} : vector<5x128xf32> to vector<1x128xf32>
    %c22 = arith.constant 22 : index
    %c0_227 = arith.constant 0 : index
    %c0_228 = arith.constant 0 : index
    %411 = vector.load %arg6[%c22, %c0_227, %c0_228] : memref<25x128x128xf32, #tpu.memory_space<vmem>>, vector<1x128x128xf32>
    %412 = vector.shape_cast %411 : vector<1x128x128xf32> to vector<128x128xf32>
    %cst_229 = arith.constant dense<0.000000e+00> : vector<1x128xf32>
    %413 = tpu.matmul %410, %412, %cst_229 {dimension_numbers = #tpu.dot_dimension_numbers<[1], [0], [0], [1], [0, 0, 1, 1], [], []>} : vector<1x128xf32>, vector<128x128xf32>, vector<1x128xf32> -> vector<1x128xf32>
    %414 = arith.addf %409, %413 : vector<1x128xf32>
    %415 = vector.extract_strided_slice %298 {offsets = [3, 0], sizes = [1, 128], strides = [1, 1]} : vector<5x128xf32> to vector<1x128xf32>
    %c23 = arith.constant 23 : index
    %c0_230 = arith.constant 0 : index
    %c0_231 = arith.constant 0 : index
    %416 = vector.load %arg6[%c23, %c0_230, %c0_231] : memref<25x128x128xf32, #tpu.memory_space<vmem>>, vector<1x128x128xf32>
    %417 = vector.shape_cast %416 : vector<1x128x128xf32> to vector<128x128xf32>
    %cst_232 = arith.constant dense<0.000000e+00> : vector<1x128xf32>
    %418 = tpu.matmul %415, %417, %cst_232 {dimension_numbers = #tpu.dot_dimension_numbers<[1], [0], [0], [1], [0, 0, 1, 1], [], []>} : vector<1x128xf32>, vector<128x128xf32>, vector<1x128xf32> -> vector<1x128xf32>
    %419 = arith.addf %414, %418 : vector<1x128xf32>
    %420 = vector.extract_strided_slice %298 {offsets = [4, 0], sizes = [1, 128], strides = [1, 1]} : vector<5x128xf32> to vector<1x128xf32>
    %c24 = arith.constant 24 : index
    %c0_233 = arith.constant 0 : index
    %c0_234 = arith.constant 0 : index
    %421 = vector.load %arg6[%c24, %c0_233, %c0_234] : memref<25x128x128xf32, #tpu.memory_space<vmem>>, vector<1x128x128xf32>
    %422 = vector.shape_cast %421 : vector<1x128x128xf32> to vector<128x128xf32>
    %cst_235 = arith.constant dense<0.000000e+00> : vector<1x128xf32>
    %423 = tpu.matmul %420, %422, %cst_235 {dimension_numbers = #tpu.dot_dimension_numbers<[1], [0], [0], [1], [0, 0, 1, 1], [], []>} : vector<1x128xf32>, vector<128x128xf32>, vector<1x128xf32> -> vector<1x128xf32>
    %424 = arith.addf %419, %423 : vector<1x128xf32>
    %425 = tpu.iota {dimensions = array<i32: 1>} : vector<1x128xi32>
    %c32_i32 = arith.constant 32 : i32
    %426 = vector.broadcast %c32_i32 : i32 to vector<1x128xi32>
    %427 = arith.cmpi slt, %425, %426 : vector<1x128xi32>
    %cst_236 = arith.constant 0.000000e+00 : f32
    %428 = vector.broadcast %cst_236 : f32 to vector<1x128xf32>
    %429 = arith.select %427, %424, %428 : vector<1x128xi1>, vector<1x128xf32>
    %cst_237 = arith.constant dense<0.000000e+00> : vector<1xf32>
    %430 = vector.multi_reduction <add>, %429, %cst_237 [1] : vector<1x128xf32> to vector<1xf32>
    %431 = vector.shape_cast %430 : vector<1xf32> to vector<1x1xf32>
    %cst_238 = arith.constant 3.125000e-02 : f32
    %432 = vector.broadcast %cst_238 : f32 to vector<1x1xf32>
    %433 = arith.mulf %431, %432 : vector<1x1xf32>
    %434 = vector.broadcast %433 : vector<1x1xf32> to vector<1x128xf32>
    %435 = arith.subf %424, %434 : vector<1x128xf32>
    %cst_239 = arith.constant 0.000000e+00 : f32
    %436 = vector.broadcast %cst_239 : f32 to vector<1x128xf32>
    %437 = arith.select %427, %435, %436 : vector<1x128xi1>, vector<1x128xf32>
    %438 = arith.mulf %437, %437 : vector<1x128xf32>
    %cst_240 = arith.constant dense<0.000000e+00> : vector<1xf32>
    %439 = vector.multi_reduction <add>, %438, %cst_240 [1] : vector<1x128xf32> to vector<1xf32>
    %440 = vector.shape_cast %439 : vector<1xf32> to vector<1x1xf32>
    %cst_241 = arith.constant 3.125000e-02 : f32
    %441 = vector.broadcast %cst_241 : f32 to vector<1x1xf32>
    %442 = arith.mulf %440, %441 : vector<1x1xf32>
    %443 = vector.broadcast %433 : vector<1x1xf32> to vector<1x128xf32>
    %444 = arith.subf %424, %443 : vector<1x128xf32>
    %cst_242 = arith.constant 9.99999974E-6 : f32
    %445 = vector.broadcast %cst_242 : f32 to vector<1x1xf32>
    %446 = arith.addf %442, %445 : vector<1x1xf32>
    %447 = math.rsqrt %446 : vector<1x1xf32>
    %448 = vector.broadcast %447 : vector<1x1xf32> to vector<1x128xf32>
    %449 = arith.mulf %444, %448 : vector<1x128xf32>
    %c0_243 = arith.constant 0 : index
    %c0_244 = arith.constant 0 : index
    %450 = vector.load %arg8[%c0_243, %c0_244] : memref<1x128xf32, #tpu.memory_space<vmem>>, vector<1x128xf32>
    %451 = arith.mulf %449, %450 : vector<1x128xf32>
    %c0_245 = arith.constant 0 : index
    %c0_246 = arith.constant 0 : index
    %452 = vector.load %arg9[%c0_245, %c0_246] : memref<1x128xf32, #tpu.memory_space<vmem>>, vector<1x128xf32>
    %453 = arith.addf %451, %452 : vector<1x128xf32>
    %454 = math.tanh %453 : vector<1x128xf32>
    %c0_247 = arith.constant 0 : index
    %c0_248 = arith.constant 0 : index
    %c0_249 = arith.constant 0 : index
    %455 = vector.load %arg10[%c0_247, %c0_248, %c0_249] : memref<1x1x128xf32, #tpu.memory_space<vmem>>, vector<1x1x128xf32>
    %456 = vector.shape_cast %455 : vector<1x1x128xf32> to vector<1x128xf32>
    %457 = vector.shape_cast %454 : vector<1x128xf32> to vector<1x1x128xf32>
    tpu.vector_store %arg10[%c0_247, %c0_248, %c0_249], %457 {strides = array<i32>} : memref<1x1x128xf32, #tpu.memory_space<vmem>>, vector<1x1x128xf32>,
    return
  }
  func.func @transform_0(%arg0: i32) -> (i32, i32, i32, i32) {
    %c0_i32 = arith.constant 0 : i32
    %c0_i32_0 = arith.constant 0 : i32
    %c0_i32_1 = arith.constant 0 : i32
    %c0_i32_2 = arith.constant 0 : i32
    return %arg0, %c0_i32, %c0_i32_0, %c0_i32_1 : i32, i32, i32, i32
  }
  func.func @transform_1(%arg0: i32) -> (i32, i32, i32) {
    %c0_i32 = arith.constant 0 : i32
    %c0_i32_0 = arith.constant 0 : i32
    %c0_i32_1 = arith.constant 0 : i32
    %c0_i32_2 = arith.constant 0 : i32
    return %c0_i32, %c0_i32_0, %c0_i32_1 : i32, i32, i32
  }
  func.func @transform_2(%arg0: i32) -> (i32, i32) {
    %c0_i32 = arith.constant 0 : i32
    %c0_i32_0 = arith.constant 0 : i32
    %c0_i32_1 = arith.constant 0 : i32
    return %c0_i32, %c0_i32_0 : i32, i32
  }
  func.func @transform_3(%arg0: i32) -> (i32, i32, i32) {
    %c0_i32 = arith.constant 0 : i32
    %c0_i32_0 = arith.constant 0 : i32
    %c0_i32_1 = arith.constant 0 : i32
    %c0_i32_2 = arith.constant 0 : i32
    return %c0_i32, %c0_i32_0, %c0_i32_1 : i32, i32, i32
  }
  func.func @transform_4(%arg0: i32) -> (i32, i32) {
    %c0_i32 = arith.constant 0 : i32
    %c0_i32_0 = arith.constant 0 : i32
    %c0_i32_1 = arith.constant 0 : i32
    return %c0_i32, %c0_i32_0 : i32, i32
  }
  func.func @transform_5(%arg0: i32) -> (i32, i32, i32) {
    %c0_i32 = arith.constant 0 : i32
    %c0_i32_0 = arith.constant 0 : i32
    %c0_i32_1 = arith.constant 0 : i32
    %c0_i32_2 = arith.constant 0 : i32
    return %c0_i32, %c0_i32_0, %c0_i32_1 : i32, i32, i32
  }
  func.func @transform_6(%arg0: i32) -> (i32, i32) {
    %c0_i32 = arith.constant 0 : i32
    %c0_i32_0 = arith.constant 0 : i32
    %c0_i32_1 = arith.constant 0 : i32
    return %c0_i32, %c0_i32_0 : i32, i32
  }
  func.func @transform_7(%arg0: i32) -> (i32, i32) {
    %c0_i32 = arith.constant 0 : i32
    %c0_i32_0 = arith.constant 0 : i32
    %c0_i32_1 = arith.constant 0 : i32
    return %c0_i32, %c0_i32_0 : i32, i32
  }
  func.func @transform_8(%arg0: i32) -> (i32, i32) {
    %c0_i32 = arith.constant 0 : i32
    %c0_i32_0 = arith.constant 0 : i32
    %c0_i32_1 = arith.constant 0 : i32
    return %c0_i32, %c0_i32_0 : i32, i32
  }
  func.func @transform_9(%arg0: i32) -> (i32, i32, i32) {
    %c0_i32 = arith.constant 0 : i32
    %c0_i32_0 = arith.constant 0 : i32
    %c0_i32_1 = arith.constant 0 : i32
    return %arg0, %c0_i32, %c0_i32_0 : i32, i32, i32
  }
}

</mosaic_0001>

<llo_original>
// kernel: pixel_encoder_forward.1
$region0: #{pixel_encoder_forward.1}
  #allocation0 [shape = 'u32[]', space=smem, size = 0x4, offset = 0x4, fixed_abs, tag = 'smem constant byte address 0x4 - core index']
  #allocation1 [shape = 'u32[72,128]{1,0:T(1,128)}', space=vmem, size = 0x9000, scoped, tag = 'internal scratch']
  %s0 = inlined_call_operand.vmem [shape: f32[2,8,8,16], index: 0, kind: input, shape index: {}]
  %s1 = inlined_call_operand.hbm [shape: f32[4,16,128], index: 1, kind: input, shape index: {}]
  %s2 = inlined_call_operand.hbm [shape: f32[1,128], index: 2, kind: input, shape index: {}]
  %s3 = inlined_call_operand.hbm [shape: f32[9,128,128], index: 3, kind: input, shape index: {}]
  %s4 = inlined_call_operand.hbm [shape: f32[1,128], index: 4, kind: input, shape index: {}]
  %s5 = inlined_call_operand.hbm [shape: f32[25,128,128], index: 5, kind: input, shape index: {}]
  %s6 = inlined_call_operand.hbm [shape: f32[1,128], index: 6, kind: input, shape index: {}]
  %s7 = inlined_call_operand.hbm [shape: f32[1,128], index: 7, kind: input, shape index: {}]
  %s8 = inlined_call_operand.hbm [shape: f32[1,128], index: 8, kind: input, shape index: {}]
  %s9 = inlined_call_operand.hbm [shape: f32[2,1,128], index: 9, kind: output, shape index: {}]
  %s10 = sld [smem:[#allocation0]]
  $region101: #{pixel_encoder_forward.1} parent=0
    _
  %s12 = ssub.s32 1, %s10
  %s13 = scalar_select 0, %s12, %s10
  $region1: #{pixel_encoder_forward.1} parent=0
    #allocation2 [shape = 'u8[32768]{0}', space=vmem, size = 0x8000, scoped, tag = 'input window, operand 1, single buffered']
    #allocation3 [shape = 's32[2]{0}', space=sflag, size = 0x8, scoped, tag = 'scoped memory for pixel_encoder_forward.1']
    #allocation4 [shape = 's32[2]{0}', space=sflag, size = 0x8, scoped, tag = 'scoped memory for pixel_encoder_forward.1']
    #allocation5 [shape = 'u8[512]{0}', space=vmem, size = 0x400, scoped, tag = 'input window, operand 2, single buffered']
    #allocation6 [shape = 's32[1]{0}', space=sflag, size = 0x4, scoped, tag = 'scoped memory for pixel_encoder_forward.1']
    #allocation7 [shape = 'u8[589824]{0}', space=vmem, size = 0x90000, scoped, tag = 'input window, operand 3, single buffered']
    #allocation8 [shape = 'u8[512]{0}', space=vmem, size = 0x400, scoped, tag = 'input window, operand 4, single buffered']
    #allocation9 [shape = 's32[1]{0}', space=sflag, size = 0x4, scoped, tag = 'scoped memory for pixel_encoder_forward.1']
    #allocation10 [shape = 'u8[1638400]{0}', space=vmem, size = 0x190000, scoped, tag = 'input window, operand 5, single buffered']
    #allocation11 [shape = 'u8[512]{0}', space=vmem, size = 0x400, scoped, tag = 'input window, operand 6, single buffered']
    #allocation12 [shape = 's32[1]{0}', space=sflag, size = 0x4, scoped, tag = 'scoped memory for pixel_encoder_forward.1']
    #allocation13 [shape = 'u8[512]{0}', space=vmem, size = 0x400, scoped, tag = 'input window, operand 7, single buffered']
    #allocation14 [shape = 'u8[512]{0}', space=vmem, size = 0x400, scoped, tag = 'input window, operand 8, single buffered']
    #allocation15 [shape = 's32[1]{0}', space=sflag, size = 0x4, scoped, tag = 'scoped memory for pixel_encoder_forward.1']
    #allocation16 [shape = 'u8[1024]{0}', space=vmem, size = 0x400, scoped, tag = 'output window, operand 0']
    %14 = vsyncpa [#allocation3], 0
    %15 = vsyncpa [#allocation6], 0
    %16 = vsyncpa [#allocation9], 0
    %17 = vsyncpa [#allocation12], 0
    %18 = vsyncpa [#allocation15], 0
    %19 = vsyncpa [#allocation4], 0
    %s20 = scalar_lea.sflag [#allocation4], 1
    %21 = vsyncpa %s20, 0
    loop: start=0, step=1, limit=4
    $region2: #{pixel_encoder_forward.1} parent=1 // loop_pre_header
      _
    $region3: #{pixel_encoder_forward.1} parent=1 // loop_header
      %s23 = sphi 0, %s27
      %p24 = scmp.ge.s32.totalorder %s23, 4
      %s33 = sphi 0, %s35
      %s36 = sphi 0, %s33
      %s37 = sphi 0, %s36
      %s53 = sphi 0, %s37
      %s57 = sphi 0, %s57
      %s59 = sphi 0, %s57
      %s60 = sphi 0, %s59
      %s74 = sphi 0, %s60
      %s78 = sphi 0, %s78
      %s80 = sphi 0, %s78
      %s81 = sphi 0, %s80
      %s95 = sphi 0, %s81
      %s99 = sphi 0, %s99
      %s101 = sphi 0, %s99
      %s102 = sphi 0, %s101
      %s116 = sphi 0, %s102
      %s120 = sphi 0, %s120
      %s122 = sphi 0, %s120
      %s123 = sphi 0, %s122
      %s137 = sphi 0, %s123
      %s141 = sphi 0, %s141
      %s143 = sphi 0, %s141
      %s144 = sphi 0, %s143
      %s158 = sphi 0, %s144
      %s162 = sphi 0, %s162
      %s164 = sphi 0, %s162
      %s165 = sphi 0, %s164
      %s179 = sphi 0, %s165
      %s183 = sphi 0, %s183
      %s185 = sphi 0, %s183
      %s186 = sphi 0, %s185
      %s200 = sphi 0, %s186
      %s204 = sphi 0, %s204
      %s206 = sphi 0, %s204
      %s207 = sphi 0, %s206
      %s221 = sphi 0, %s207
      %s227 = sphi 0, %s229
      %s230 = sphi 0, %s227
      %s231 = sphi 0, %s230
      %s247 = sphi 0, %s231
    $region4: #{pixel_encoder_forward.1} parent=1 // loop_header_branch
      %26 = sbr.rel (%p24) target = $region8
    $region5: #{pixel_encoder_forward.1} parent=1 // loop_body
      %s28 = ssub.s32 %s23, 1
      %s29 = ssub.s32 %s23, 2
      %s30 = sadd.s32 %s23, 1
      %s31 = ssub.s32 %s23, %s30
      %p32 = scmp.eq.s32.totalorder %s31, 0
      %s34 = sadd.s32 %s33, 1
      %s35 = scalar_select %p32, %s33, %s34
      %p38 = pneg %p32
      %p39 = scmp.eq.s32.totalorder %s23, 1
      %p40 = por %p38, %p39
      %p41 = scmp.ne.s32.totalorder %s33, %s36
      %p42 = scmp.eq.s32.totalorder %s23, 0
      %p43 = por %p41, %p42
      %p44 = scmp.ne.s32.totalorder %s33, %s36
      %p45 = scmp.eq.s32.totalorder %s28, 1
      %p46 = por %p44, %p45
      %p47 = scmp.ne.s32.totalorder %s36, %s37
      %p48 = scmp.eq.s32.totalorder %s28, 0
      %p49 = por %p47, %p48
      %p50 = scmp.ne.s32.totalorder %s36, %s37
      %p51 = scmp.eq.s32.totalorder %s29, 1
      %p52 = por %p50, %p51
      %p54 = scmp.ne.s32.totalorder %s37, %s53
      %p55 = scmp.eq.s32.totalorder %s29, 0
      %p56 = por %p54, %p55
      %s58 = sadd.s32 %s57, 1
      %p61 = scmp.eq.s32.totalorder %s23, 1
      %p62 = scmp.ne.s32.totalorder %s57, %s59
      %p63 = scmp.eq.s32.totalorder %s23, 0
      %p64 = por %p62, %p63
      %p65 = scmp.ne.s32.totalorder %s57, %s59
      %p66 = scmp.eq.s32.totalorder %s28, 1
      %p67 = por %p65, %p66
      %p68 = scmp.ne.s32.totalorder %s59, %s60
      %p69 = scmp.eq.s32.totalorder %s28, 0
      %p70 = por %p68, %p69
      %p71 = scmp.ne.s32.totalorder %s59, %s60
      %p72 = scmp.eq.s32.totalorder %s29, 1
      %p73 = por %p71, %p72
      %p75 = scmp.ne.s32.totalorder %s60, %s74
      %p76 = scmp.eq.s32.totalorder %s29, 0
      %p77 = por %p75, %p76
      %s79 = sadd.s32 %s78, 1
      %p82 = scmp.eq.s32.totalorder %s23, 1
      %p83 = scmp.ne.s32.totalorder %s78, %s80
      %p84 = scmp.eq.s32.totalorder %s23, 0
      %p85 = por %p83, %p84
      %p86 = scmp.ne.s32.totalorder %s78, %s80
      %p87 = scmp.eq.s32.totalorder %s28, 1
      %p88 = por %p86, %p87
      %p89 = scmp.ne.s32.totalorder %s80, %s81
      %p90 = scmp.eq.s32.totalorder %s28, 0
      %p91 = por %p89, %p90
      %p92 = scmp.ne.s32.totalorder %s80, %s81
      %p93 = scmp.eq.s32.totalorder %s29, 1
      %p94 = por %p92, %p93
      %p96 = scmp.ne.s32.totalorder %s81, %s95
      %p97 = scmp.eq.s32.totalorder %s29, 0
      %p98 = por %p96, %p97
      %s100 = sadd.s32 %s99, 1
      %p103 = scmp.eq.s32.totalorder %s23, 1
      %p104 = scmp.ne.s32.totalorder %s99, %s101
      %p105 = scmp.eq.s32.totalorder %s23, 0
      %p106 = por %p104, %p105
      %p107 = scmp.ne.s32.totalorder %s99, %s101
      %p108 = scmp.eq.s32.totalorder %s28, 1
      %p109 = por %p107, %p108
      %p110 = scmp.ne.s32.totalorder %s101, %s102
      %p111 = scmp.eq.s32.totalorder %s28, 0
      %p112 = por %p110, %p111
      %p113 = scmp.ne.s32.totalorder %s101, %s102
      %p114 = scmp.eq.s32.totalorder %s29, 1
      %p115 = por %p113, %p114
      %p117 = scmp.ne.s32.totalorder %s102, %s116
      %p118 = scmp.eq.s32.totalorder %s29, 0
      %p119 = por %p117, %p118
      %s121 = sadd.s32 %s120, 1
      %p124 = scmp.eq.s32.totalorder %s23, 1
      %p125 = scmp.ne.s32.totalorder %s120, %s122
      %p126 = scmp.eq.s32.totalorder %s23, 0
      %p127 = por %p125, %p126
      %p128 = scmp.ne.s32.totalorder %s120, %s122
      %p129 = scmp.eq.s32.totalorder %s28, 1
      %p130 = por %p128, %p129
      %p131 = scmp.ne.s32.totalorder %s122, %s123
      %p132 = scmp.eq.s32.totalorder %s28, 0
      %p133 = por %p131, %p132
      %p134 = scmp.ne.s32.totalorder %s122, %s123
      %p135 = scmp.eq.s32.totalorder %s29, 1
      %p136 = por %p134, %p135
      %p138 = scmp.ne.s32.totalorder %s123, %s137
      %p139 = scmp.eq.s32.totalorder %s29, 0
      %p140 = por %p138, %p139
      %s142 = sadd.s32 %s141, 1
      %p145 = scmp.eq.s32.totalorder %s23, 1
      %p146 = scmp.ne.s32.totalorder %s141, %s143
      %p147 = scmp.eq.s32.totalorder %s23, 0
      %p148 = por %p146, %p147
      %p149 = scmp.ne.s32.totalorder %s141, %s143
      %p150 = scmp.eq.s32.totalorder %s28, 1
      %p151 = por %p149, %p150
      %p152 = scmp.ne.s32.totalorder %s143, %s144
      %p153 = scmp.eq.s32.totalorder %s28, 0
      %p154 = por %p152, %p153
      %p155 = scmp.ne.s32.totalorder %s143, %s144
      %p156 = scmp.eq.s32.totalorder %s29, 1
      %p157 = por %p155, %p156
      %p159 = scmp.ne.s32.totalorder %s144, %s158
      %p160 = scmp.eq.s32.totalorder %s29, 0
      %p161 = por %p159, %p160
      %s163 = sadd.s32 %s162, 1
      %p166 = scmp.eq.s32.totalorder %s23, 1
      %p167 = scmp.ne.s32.totalorder %s162, %s164
      %p168 = scmp.eq.s32.totalorder %s23, 0
      %p169 = por %p167, %p168
      %p170 = scmp.ne.s32.totalorder %s162, %s164
      %p171 = scmp.eq.s32.totalorder %s28, 1
      %p172 = por %p170, %p171
      %p173 = scmp.ne.s32.totalorder %s164, %s165
      %p174 = scmp.eq.s32.totalorder %s28, 0
      %p175 = por %p173, %p174
      %p176 = scmp.ne.s32.totalorder %s164, %s165
      %p177 = scmp.eq.s32.totalorder %s29, 1
      %p178 = por %p176, %p177
      %p180 = scmp.ne.s32.totalorder %s165, %s179
      %p181 = scmp.eq.s32.totalorder %s29, 0
      %p182 = por %p180, %p181
      %s184 = sadd.s32 %s183, 1
      %p187 = scmp.eq.s32.totalorder %s23, 1
      %p188 = scmp.ne.s32.totalorder %s183, %s185
      %p189 = scmp.eq.s32.totalorder %s23, 0
      %p190 = por %p188, %p189
      %p191 = scmp.ne.s32.totalorder %s183, %s185
      %p192 = scmp.eq.s32.totalorder %s28, 1
      %p193 = por %p191, %p192
      %p194 = scmp.ne.s32.totalorder %s185, %s186
      %p195 = scmp.eq.s32.totalorder %s28, 0
      %p196 = por %p194, %p195
      %p197 = scmp.ne.s32.totalorder %s185, %s186
      %p198 = scmp.eq.s32.totalorder %s29, 1
      %p199 = por %p197, %p198
      %p201 = scmp.ne.s32.totalorder %s186, %s200
      %p202 = scmp.eq.s32.totalorder %s29, 0
      %p203 = por %p201, %p202
      %s205 = sadd.s32 %s204, 1
      %p208 = scmp.eq.s32.totalorder %s23, 1
      %p209 = scmp.ne.s32.totalorder %s204, %s206
      %p210 = scmp.eq.s32.totalorder %s23, 0
      %p211 = por %p209, %p210
      %p212 = scmp.ne.s32.totalorder %s204, %s206
      %p213 = scmp.eq.s32.totalorder %s28, 1
      %p214 = por %p212, %p213
      %p215 = scmp.ne.s32.totalorder %s206, %s207
      %p216 = scmp.eq.s32.totalorder %s28, 0
      %p217 = por %p215, %p216
      %p218 = scmp.ne.s32.totalorder %s206, %s207
      %p219 = scmp.eq.s32.totalorder %s29, 1
      %p220 = por %p218, %p219
      %p222 = scmp.ne.s32.totalorder %s207, %s221
      %p223 = scmp.eq.s32.totalorder %s29, 0
      %p224 = por %p222, %p223
      %s225 = ssub.s32 %s23, %s30
      %p226 = scmp.eq.s32.totalorder %s225, 0
      %s228 = sadd.s32 %s227, 1
      %s229 = scalar_select %p226, %s227, %s228
      %p232 = pneg %p226
      %p233 = scmp.eq.s32.totalorder %s23, 1
      %p234 = por %p232, %p233
      %p235 = scmp.ne.s32.totalorder %s227, %s230
      %p236 = scmp.eq.s32.totalorder %s23, 0
      %p237 = por %p235, %p236
      %p238 = scmp.ne.s32.totalorder %s227, %s230
      %p239 = scmp.eq.s32.totalorder %s28, 1
      %p240 = por %p238, %p239
      %p241 = scmp.ne.s32.totalorder %s230, %s231
      %p242 = scmp.eq.s32.totalorder %s28, 0
      %p243 = por %p241, %p242
      %p244 = scmp.ne.s32.totalorder %s230, %s231
      %p245 = scmp.eq.s32.totalorder %s29, 1
      %p246 = por %p244, %p245
      %p248 = scmp.ne.s32.totalorder %s231, %s247
      %p249 = scmp.eq.s32.totalorder %s29, 0
      %p250 = por %p248, %p249
      %p251 = scmp.le.s32.totalorder 1, %s23
      %p252 = scmp.lt.s32.totalorder %s23, 3
      %p253 = pnand %p251, %p252
      %p254 = pneg %p253
      // Predicated region
      $region9: #{pixel_encoder_forward.1} parent=5 // pred_check
        _
      $region10: #{pixel_encoder_forward.1} parent=5 // pred_check_branch
        %256 = sbr.rel (%p253) target = $region12
      $region11: #{pixel_encoder_forward.1} parent=5 // pred_region
        %s257 = ssub.s32 %s23, 1
        // Predicated region
        $region13: #{pixel_encoder_forward.1} parent=11 // pred_check
          %p258 = pneg %p70
        $region14: #{pixel_encoder_forward.1} parent=11 // pred_check_branch
          %260 = sbr.rel (%p258) target = $region16
        $region15: #{pixel_encoder_forward.1} parent=11 // pred_region
          %262 = vsyncadd [#allocation3], 0
          %s263 = sshll.u32 %s1, 4
          %s264 = int_to_ptr.hbm [resolvable:$true] %s263
          %s265 = sshll.u32 [#allocation2], 4
          %s266 = int_to_ptr.vmem [resolvable:$true] %s265
          %271 = dma.hbm_to_vmem [thread:$0]  %s264, 1024, %s266, [#allocation3], 128, 128, 8
        $region16: #{pixel_encoder_forward.1} parent=11 // pred_fallthru
          _
        // Predicated region
        $region17: #{pixel_encoder_forward.1} parent=11 // pred_check
          %p272 = pneg %p91
        $region18: #{pixel_encoder_forward.1} parent=11 // pred_check_branch
          %274 = sbr.rel (%p272) target = $region20
        $region19: #{pixel_encoder_forward.1} parent=11 // pred_region
          %276 = vsyncadd [#allocation6], 0
          %s278 = sshll.u32 %s2, 4
          %s279 = int_to_ptr.hbm [resolvable:$true] %s278
          %s280 = sshll.u32 [#allocation5], 4
          %s281 = int_to_ptr.vmem [resolvable:$true] %s280
          %283 = dma.hbm_to_vmem [thread:$0]  %s279, 16, %s281, [#allocation6]
        $region20: #{pixel_encoder_forward.1} parent=11 // pred_fallthru
          _
        // Predicated region
        $region21: #{pixel_encoder_forward.1} parent=11 // pred_check
          %p284 = pneg %p112
        $region22: #{pixel_encoder_forward.1} parent=11 // pred_check_branch
          %286 = sbr.rel (%p284) target = $region24
        $region23: #{pixel_encoder_forward.1} parent=11 // pred_region
          %288 = vsyncadd [#allocation6], 0
          %s289 = sshll.u32 %s3, 4
          %s290 = int_to_ptr.hbm [resolvable:$true] %s289
          %s291 = sshll.u32 [#allocation7], 4
          %s292 = int_to_ptr.vmem [resolvable:$true] %s291
          %297 = dma.hbm_to_vmem [thread:$0]  %s290, 18432, %s292, [#allocation6], 128, 128, 8
        $region24: #{pixel_encoder_forward.1} parent=11 // pred_fallthru
          _
        // Predicated region
        $region25: #{pixel_encoder_forward.1} parent=11 // pred_check
          %p298 = pneg %p133
        $region26: #{pixel_encoder_forward.1} parent=11 // pred_check_branch
          %300 = sbr.rel (%p298) target = $region28
        $region27: #{pixel_encoder_forward.1} parent=11 // pred_region
          %302 = vsyncadd [#allocation9], 0
          %s304 = sshll.u32 %s4, 4
          %s305 = int_to_ptr.hbm [resolvable:$true] %s304
          %s306 = sshll.u32 [#allocation8], 4
          %s307 = int_to_ptr.vmem [resolvable:$true] %s306
          %309 = dma.hbm_to_vmem [thread:$0]  %s305, 16, %s307, [#allocation9]
        $region28: #{pixel_encoder_forward.1} parent=11 // pred_fallthru
          _
        // Predicated region
        $region29: #{pixel_encoder_forward.1} parent=11 // pred_check
          %p310 = pneg %p154
        $region30: #{pixel_encoder_forward.1} parent=11 // pred_check_branch
          %312 = sbr.rel (%p310) target = $region32
        $region31: #{pixel_encoder_forward.1} parent=11 // pred_region
          %314 = vsyncadd [#allocation9], 0
          %s315 = sshll.u32 %s5, 4
          %s316 = int_to_ptr.hbm [resolvable:$true] %s315
          %s317 = sshll.u32 [#allocation10], 4
          %s318 = int_to_ptr.vmem [resolvable:$true] %s317
          %323 = dma.hbm_to_vmem [thread:$0]  %s316, 51200, %s318, [#allocation9], 128, 128, 8
        $region32: #{pixel_encoder_forward.1} parent=11 // pred_fallthru
          _
        // Predicated region
        $region33: #{pixel_encoder_forward.1} parent=11 // pred_check
          %p324 = pneg %p175
        $region34: #{pixel_encoder_forward.1} parent=11 // pred_check_branch
          %326 = sbr.rel (%p324) target = $region36
        $region35: #{pixel_encoder_forward.1} parent=11 // pred_region
          %328 = vsyncadd [#allocation12], 0
          %s330 = sshll.u32 %s6, 4
          %s331 = int_to_ptr.hbm [resolvable:$true] %s330
          %s332 = sshll.u32 [#allocation11], 4
          %s333 = int_to_ptr.vmem [resolvable:$true] %s332
          %335 = dma.hbm_to_vmem [thread:$0]  %s331, 16, %s333, [#allocation12]
        $region36: #{pixel_encoder_forward.1} parent=11 // pred_fallthru
          _
        // Predicated region
        $region37: #{pixel_encoder_forward.1} parent=11 // pred_check
          %p336 = pneg %p196
        $region38: #{pixel_encoder_forward.1} parent=11 // pred_check_branch
          %338 = sbr.rel (%p336) target = $region40
        $region39: #{pixel_encoder_forward.1} parent=11 // pred_region
          %340 = vsyncadd [#allocation12], 0
          %s342 = sshll.u32 %s7, 4
          %s343 = int_to_ptr.hbm [resolvable:$true] %s342
          %s344 = sshll.u32 [#allocation13], 4
          %s345 = int_to_ptr.vmem [resolvable:$true] %s344
          %347 = dma.hbm_to_vmem [thread:$0]  %s343, 16, %s345, [#allocation12]
        $region40: #{pixel_encoder_forward.1} parent=11 // pred_fallthru
          _
        // Predicated region
        $region41: #{pixel_encoder_forward.1} parent=11 // pred_check
          %p348 = pneg %p217
        $region42: #{pixel_encoder_forward.1} parent=11 // pred_check_branch
          %350 = sbr.rel (%p348) target = $region44
        $region43: #{pixel_encoder_forward.1} parent=11 // pred_region
          %352 = vsyncadd [#allocation15], 0
          %s354 = sshll.u32 %s8, 4
          %s355 = int_to_ptr.hbm [resolvable:$true] %s354
          %s356 = sshll.u32 [#allocation14], 4
          %s357 = int_to_ptr.vmem [resolvable:$true] %s356
          %359 = dma.hbm_to_vmem [thread:$0]  %s355, 16, %s357, [#allocation15]
        $region44: #{pixel_encoder_forward.1} parent=11 // pred_fallthru
          _
      $region12: #{pixel_encoder_forward.1} parent=5 // pred_fallthru
        _
      %p360 = scmp.lt.s32.totalorder %s23, 2
      // Predicated region
      $region45: #{pixel_encoder_forward.1} parent=5 // pred_check
        %p361 = pneg %p360
      $region46: #{pixel_encoder_forward.1} parent=5 // pred_check_branch
        %363 = sbr.rel (%p361) target = $region48
      $region47: #{pixel_encoder_forward.1} parent=5 // pred_region
        // Predicated region
        $region49: #{pixel_encoder_forward.1} parent=47 // pred_check
          %p364 = pneg %p43
        $region50: #{pixel_encoder_forward.1} parent=47 // pred_check_branch
          %366 = sbr.rel (%p364) target = $region52
        $region51: #{pixel_encoder_forward.1} parent=47 // pred_region
          %p367 = scmp.lt.s32.totalorder %s23, 1
          %s368 = scalar_select %p367, %s23, 1
          %s369 = smul.addr %s368, 8
          %s370 = smul.addr %s369, 8
          %s371 = scalar_lea.vmem %s0, %s370
        $region52: #{pixel_encoder_forward.1} parent=47 // pred_fallthru
          _
      $region48: #{pixel_encoder_forward.1} parent=5 // pred_fallthru
        _
      %p372 = scmp.le.s32.totalorder 1, %s23
      %p373 = scmp.lt.s32.totalorder %s23, 3
      %p374 = pnand %p372, %p373
      %p375 = pneg %p374
      // Predicated region
      $region53: #{pixel_encoder_forward.1} parent=5 // pred_check
        _
      $region54: #{pixel_encoder_forward.1} parent=5 // pred_check_branch
        %377 = sbr.rel (%p374) target = $region56
      $region55: #{pixel_encoder_forward.1} parent=5 // pred_region
        %s378 = ssub.s32 %s23, 1
        // Predicated region
        $region57: #{pixel_encoder_forward.1} parent=55 // pred_check
          %p379 = pneg %p70
        $region58: #{pixel_encoder_forward.1} parent=55 // pred_check_branch
          %381 = sbr.rel (%p379) target = $region60
        $region59: #{pixel_encoder_forward.1} parent=55 // pred_region
          %383 = dma.done [#allocation3], 1024
        $region60: #{pixel_encoder_forward.1} parent=55 // pred_fallthru
          _
        // Predicated region
        $region61: #{pixel_encoder_forward.1} parent=55 // pred_check
          %p384 = pneg %p91
        $region62: #{pixel_encoder_forward.1} parent=55 // pred_check_branch
          %386 = sbr.rel (%p384) target = $region64
        $region63: #{pixel_encoder_forward.1} parent=55 // pred_region
          %388 = dma.done [#allocation6], 16
        $region64: #{pixel_encoder_forward.1} parent=55 // pred_fallthru
          _
        // Predicated region
        $region65: #{pixel_encoder_forward.1} parent=55 // pred_check
          %p389 = pneg %p112
        $region66: #{pixel_encoder_forward.1} parent=55 // pred_check_branch
          %391 = sbr.rel (%p389) target = $region68
        $region67: #{pixel_encoder_forward.1} parent=55 // pred_region
          %393 = dma.done [#allocation6], 18432
        $region68: #{pixel_encoder_forward.1} parent=55 // pred_fallthru
          _
        // Predicated region
        $region69: #{pixel_encoder_forward.1} parent=55 // pred_check
          %p394 = pneg %p133
        $region70: #{pixel_encoder_forward.1} parent=55 // pred_check_branch
          %396 = sbr.rel (%p394) target = $region72
        $region71: #{pixel_encoder_forward.1} parent=55 // pred_region
          %398 = dma.done [#allocation9], 16
        $region72: #{pixel_encoder_forward.1} parent=55 // pred_fallthru
          _
        // Predicated region
        $region73: #{pixel_encoder_forward.1} parent=55 // pred_check
          %p399 = pneg %p154
        $region74: #{pixel_encoder_forward.1} parent=55 // pred_check_branch
          %401 = sbr.rel (%p399) target = $region76
        $region75: #{pixel_encoder_forward.1} parent=55 // pred_region
          %403 = dma.done [#allocation9], 51200
        $region76: #{pixel_encoder_forward.1} parent=55 // pred_fallthru
          _
        // Predicated region
        $region77: #{pixel_encoder_forward.1} parent=55 // pred_check
          %p404 = pneg %p175
        $region78: #{pixel_encoder_forward.1} parent=55 // pred_check_branch
          %406 = sbr.rel (%p404) target = $region80
        $region79: #{pixel_encoder_forward.1} parent=55 // pred_region
          %408 = dma.done [#allocation12], 16
        $region80: #{pixel_encoder_forward.1} parent=55 // pred_fallthru
          _
        // Predicated region
        $region81: #{pixel_encoder_forward.1} parent=55 // pred_check
          %p409 = pneg %p196
        $region82: #{pixel_encoder_forward.1} parent=55 // pred_check_branch
          %411 = sbr.rel (%p409) target = $region84
        $region83: #{pixel_encoder_forward.1} parent=55 // pred_region
          %413 = dma.done [#allocation12], 16
        $region84: #{pixel_encoder_forward.1} parent=55 // pred_fallthru
          _
        // Predicated region
        $region85: #{pixel_encoder_forward.1} parent=55 // pred_check
          %p414 = pneg %p217
        $region86: #{pixel_encoder_forward.1} parent=55 // pred_check_branch
          %416 = sbr.rel (%p414) target = $region88
        $region87: #{pixel_encoder_forward.1} parent=55 // pred_region
          %418 = dma.done [#allocation15], 16
        $region88: #{pixel_encoder_forward.1} parent=55 // pred_fallthru
          _
        %p419 = scmp.lt.s32.totalorder %s28, 1
        %s420 = scalar_select %p419, %s28, 1
        %s421 = smul.addr %s420, 8
        %s422 = smul.addr %s421, 8
        %s423 = scalar_lea.vmem %s0, %s422
        %p424 = pneg %p49
        %p425 = pneg %p46
        %p426 = pneg %p70
        %p427 = pneg %p67
        %p428 = pneg %p91
        %p429 = pneg %p88
        %p430 = pneg %p112
        %p431 = pneg %p109
        %p432 = pneg %p133
        %p433 = pneg %p130
        %p434 = pneg %p154
        %p435 = pneg %p151
        %p436 = pneg %p175
        %p437 = pneg %p172
        %p438 = pneg %p196
        %p439 = pneg %p193
        %p440 = pneg %p217
        %p441 = pneg %p214
        %p442 = pneg %p243
        %p443 = pneg %p240
        %s444 = sand.u32 %s230, 1
        %s445 = scalar_lea.sflag [#allocation4], %s444
        %s446 = sand.u32 %s230, 1
        %s447 = scalar_lea.vmem [#allocation16], %s446
        %p448 = scmp.lt.s32.totalorder %s28, 1
        %s449 = scalar_select %p448, %s28, 1
        %s450 = smul.addr %s449, 8
        %s451 = smul.addr %s450, 8
        %s452 = scalar_lea.vmem %s0, %s451
        %v453 = vld [vmem:[%s452] sm:$0xff]
        %s454 = scalar_lea.vmem %s452, 8
        %v455 = vld [vmem:[%s454] sm:$0xff]
        %s456 = scalar_lea.vmem %s452, 16
        %v457 = vld [vmem:[%s456] sm:$0xff]
        %s458 = scalar_lea.vmem %s452, 24
        %v459 = vld [vmem:[%s458] sm:$0xff]
        %s460 = scalar_lea.vmem %s452, 32
        %v461 = vld [vmem:[%s460] sm:$0xff]
        %s462 = scalar_lea.vmem %s452, 40
        %v463 = vld [vmem:[%s462] sm:$0xff]
        %s464 = scalar_lea.vmem %s452, 48
        %v465 = vld [vmem:[%s464] sm:$0xff]
        %s466 = scalar_lea.vmem %s452, 56
        %v467 = vld [vmem:[%s466] sm:$0xff]
        %v468 = vld [vmem:[#allocation5] sm:$0x1]
        %v469 = vld [vmem:[#allocation2] sm:$0xff]
        %v470 = vld [vmem:[#allocation2 + $0x8] sm:$0xff]
        %s471 = scalar_lea.vmem [#allocation2], 16
        %v472 = vld [vmem:[%s471] sm:$0xff]
        %v473 = vld [vmem:[%s471 + $0x8] sm:$0xff]
        %v475 = vrot.slane %v453, 1
        %vm476 = vcmask 130048
        %v477 = vsel %vm476, %v475, 0
        %479 = vmatpush.msra.mxu0 0.0
        %480 = vmatpush.msra.mxu0 0.0
        %481 = vmatpush.msra.mxu0 0.0
        %482 = vmatpush.msra.mxu0 0.0
        %483 = vmatpush.msra.mxu0 0.0
        %484 = vmatpush.msra.mxu0 0.0
        %485 = vmatpush.msra.mxu0 0.0
        %486 = vmatpush.msra.mxu0 0.0
        %487 = vmatpush.msra.mxu0 0.0
        %488 = vmatpush.msra.mxu0 0.0
        %489 = vmatpush.msra.mxu0 0.0
        %490 = vmatpush.msra.mxu0 0.0
        %491 = vmatpush.msra.mxu0 0.0
        %492 = vmatpush.msra.mxu0 0.0
        %493 = vmatpush.msra.mxu0 %v473
        %494 = vmatpush.msra.mxu0 %v472
        %495 = vmatmul.f32.gmra.mxu0 %v477
        %v496 = vpop.f32.mrf.mxu0
        %v497 = vadd.f32 0.0, %v496
        %498 = vdwg.mxu0
        %v499 = vsel %vm476, %v453, 0
        %501 = vmatpush.msra.mxu0 0.0
        %502 = vmatpush.msra.mxu0 0.0
        %503 = vmatpush.msra.mxu0 0.0
        %504 = vmatpush.msra.mxu0 0.0
        %505 = vmatpush.msra.mxu0 0.0
        %506 = vmatpush.msra.mxu0 0.0
        %507 = vmatpush.msra.mxu0 0.0
        %508 = vmatpush.msra.mxu0 0.0
        %509 = vmatpush.msra.mxu0 0.0
        %510 = vmatpush.msra.mxu0 0.0
        %511 = vmatpush.msra.mxu0 0.0
        %512 = vmatpush.msra.mxu0 0.0
        %513 = vmatpush.msra.mxu0 0.0
        %514 = vmatpush.msra.mxu0 0.0
        %515 = vmatpush.msra.mxu0 %v470
        %516 = vmatpush.msra.mxu0 %v469
        %517 = vmatmul.f32.gmra.mxu0 %v499
        %v518 = vpop.f32.mrf.mxu0
        %v519 = vadd.f32 %v497, %v518
        %520 = vdwg.mxu0
        %v522 = vrot.slane %v455, 1
        %v523 = vsel %vm476, %v522, 0
        %525 = vmatpush.msra.mxu0 0.0
        %526 = vmatpush.msra.mxu0 0.0
        %527 = vmatpush.msra.mxu0 0.0
        %528 = vmatpush.msra.mxu0 0.0
        %529 = vmatpush.msra.mxu0 0.0
        %530 = vmatpush.msra.mxu0 0.0
        %531 = vmatpush.msra.mxu0 0.0
        %532 = vmatpush.msra.mxu0 0.0
        %533 = vmatpush.msra.mxu0 0.0
        %534 = vmatpush.msra.mxu0 0.0
        %535 = vmatpush.msra.mxu0 0.0
        %536 = vmatpush.msra.mxu0 0.0
        %537 = vmatpush.msra.mxu0 0.0
        %538 = vmatpush.msra.mxu0 0.0
        %539 = vmatpush.msra.mxu0 %v473
        %540 = vmatpush.msra.mxu0 %v472
        %541 = vmatmul.f32.gmra.mxu0 %v523
        %v542 = vpop.f32.mrf.mxu0
        %v543 = vadd.f32 0.0, %v542
        %544 = vdwg.mxu0
        %v545 = vsel %vm476, %v455, 0
        %547 = vmatpush.msra.mxu0 0.0
        %548 = vmatpush.msra.mxu0 0.0
        %549 = vmatpush.msra.mxu0 0.0
        %550 = vmatpush.msra.mxu0 0.0
        %551 = vmatpush.msra.mxu0 0.0
        %552 = vmatpush.msra.mxu0 0.0
        %553 = vmatpush.msra.mxu0 0.0
        %554 = vmatpush.msra.mxu0 0.0
        %555 = vmatpush.msra.mxu0 0.0
        %556 = vmatpush.msra.mxu0 0.0
        %557 = vmatpush.msra.mxu0 0.0
        %558 = vmatpush.msra.mxu0 0.0
        %559 = vmatpush.msra.mxu0 0.0
        %560 = vmatpush.msra.mxu0 0.0
        %561 = vmatpush.msra.mxu0 %v470
        %562 = vmatpush.msra.mxu0 %v469
        %563 = vmatmul.f32.gmra.mxu0 %v545
        %v564 = vpop.f32.mrf.mxu0
        %v565 = vadd.f32 %v543, %v564
        %566 = vdwg.mxu0
        %v568 = vrot.slane %v457, 1
        %v569 = vsel %vm476, %v568, 0
        %571 = vmatpush.msra.mxu0 0.0
        %572 = vmatpush.msra.mxu0 0.0
        %573 = vmatpush.msra.mxu0 0.0
        %574 = vmatpush.msra.mxu0 0.0
        %575 = vmatpush.msra.mxu0 0.0
        %576 = vmatpush.msra.mxu0 0.0
        %577 = vmatpush.msra.mxu0 0.0
        %578 = vmatpush.msra.mxu0 0.0
        %579 = vmatpush.msra.mxu0 0.0
        %580 = vmatpush.msra.mxu0 0.0
        %581 = vmatpush.msra.mxu0 0.0
        %582 = vmatpush.msra.mxu0 0.0
        %583 = vmatpush.msra.mxu0 0.0
        %584 = vmatpush.msra.mxu0 0.0
        %585 = vmatpush.msra.mxu0 %v473
        %586 = vmatpush.msra.mxu0 %v472
        %587 = vmatmul.f32.gmra.mxu0 %v569
        %v588 = vpop.f32.mrf.mxu0
        %v589 = vadd.f32 0.0, %v588
        %590 = vdwg.mxu0
        %v591 = vsel %vm476, %v457, 0
        %593 = vmatpush.msra.mxu0 0.0
        %594 = vmatpush.msra.mxu0 0.0
        %595 = vmatpush.msra.mxu0 0.0
        %596 = vmatpush.msra.mxu0 0.0
        %597 = vmatpush.msra.mxu0 0.0
        %598 = vmatpush.msra.mxu0 0.0
        %599 = vmatpush.msra.mxu0 0.0
        %600 = vmatpush.msra.mxu0 0.0
        %601 = vmatpush.msra.mxu0 0.0
        %602 = vmatpush.msra.mxu0 0.0
        %603 = vmatpush.msra.mxu0 0.0
        %604 = vmatpush.msra.mxu0 0.0
        %605 = vmatpush.msra.mxu0 0.0
        %606 = vmatpush.msra.mxu0 0.0
        %607 = vmatpush.msra.mxu0 %v470
        %608 = vmatpush.msra.mxu0 %v469
        %609 = vmatmul.f32.gmra.mxu0 %v591
        %v610 = vpop.f32.mrf.mxu0
        %v611 = vadd.f32 %v589, %v610
        %612 = vdwg.mxu0
        %v614 = vrot.slane %v459, 1
        %v615 = vsel %vm476, %v614, 0
        %617 = vmatpush.msra.mxu0 0.0
        %618 = vmatpush.msra.mxu0 0.0
        %619 = vmatpush.msra.mxu0 0.0
        %620 = vmatpush.msra.mxu0 0.0
        %621 = vmatpush.msra.mxu0 0.0
        %622 = vmatpush.msra.mxu0 0.0
        %623 = vmatpush.msra.mxu0 0.0
        %624 = vmatpush.msra.mxu0 0.0
        %625 = vmatpush.msra.mxu0 0.0
        %626 = vmatpush.msra.mxu0 0.0
        %627 = vmatpush.msra.mxu0 0.0
        %628 = vmatpush.msra.mxu0 0.0
        %629 = vmatpush.msra.mxu0 0.0
        %630 = vmatpush.msra.mxu0 0.0
        %631 = vmatpush.msra.mxu0 %v473
        %632 = vmatpush.msra.mxu0 %v472
        %633 = vmatmul.f32.gmra.mxu0 %v615
        %v634 = vpop.f32.mrf.mxu0
        %v635 = vadd.f32 0.0, %v634
        %636 = vdwg.mxu0
        %v637 = vsel %vm476, %v459, 0
        %639 = vmatpush.msra.mxu0 0.0
        %640 = vmatpush.msra.mxu0 0.0
        %641 = vmatpush.msra.mxu0 0.0
        %642 = vmatpush.msra.mxu0 0.0
        %643 = vmatpush.msra.mxu0 0.0
        %644 = vmatpush.msra.mxu0 0.0
        %645 = vmatpush.msra.mxu0 0.0
        %646 = vmatpush.msra.mxu0 0.0
        %647 = vmatpush.msra.mxu0 0.0
        %648 = vmatpush.msra.mxu0 0.0
        %649 = vmatpush.msra.mxu0 0.0
        %650 = vmatpush.msra.mxu0 0.0
        %651 = vmatpush.msra.mxu0 0.0
        %652 = vmatpush.msra.mxu0 0.0
        %653 = vmatpush.msra.mxu0 %v470
        %654 = vmatpush.msra.mxu0 %v469
        %655 = vmatmul.f32.gmra.mxu0 %v637
        %v656 = vpop.f32.mrf.mxu0
        %v657 = vadd.f32 %v635, %v656
        %658 = vdwg.mxu0
        %v660 = vrot.slane %v461, 1
        %v661 = vsel %vm476, %v660, 0
        %663 = vmatpush.msra.mxu0 0.0
        %664 = vmatpush.msra.mxu0 0.0
        %665 = vmatpush.msra.mxu0 0.0
        %666 = vmatpush.msra.mxu0 0.0
        %667 = vmatpush.msra.mxu0 0.0
        %668 = vmatpush.msra.mxu0 0.0
        %669 = vmatpush.msra.mxu0 0.0
        %670 = vmatpush.msra.mxu0 0.0
        %671 = vmatpush.msra.mxu0 0.0
        %672 = vmatpush.msra.mxu0 0.0
        %673 = vmatpush.msra.mxu0 0.0
        %674 = vmatpush.msra.mxu0 0.0
        %675 = vmatpush.msra.mxu0 0.0
        %676 = vmatpush.msra.mxu0 0.0
        %677 = vmatpush.msra.mxu0 %v473
        %678 = vmatpush.msra.mxu0 %v472
        %679 = vmatmul.f32.gmra.mxu0 %v661
        %v680 = vpop.f32.mrf.mxu0
        %v681 = vadd.f32 0.0, %v680
        %682 = vdwg.mxu0
        %v683 = vsel %vm476, %v461, 0
        %685 = vmatpush.msra.mxu0 0.0
        %686 = vmatpush.msra.mxu0 0.0
        %687 = vmatpush.msra.mxu0 0.0
        %688 = vmatpush.msra.mxu0 0.0
        %689 = vmatpush.msra.mxu0 0.0
        %690 = vmatpush.msra.mxu0 0.0
        %691 = vmatpush.msra.mxu0 0.0
        %692 = vmatpush.msra.mxu0 0.0
        %693 = vmatpush.msra.mxu0 0.0
        %694 = vmatpush.msra.mxu0 0.0
        %695 = vmatpush.msra.mxu0 0.0
        %696 = vmatpush.msra.mxu0 0.0
        %697 = vmatpush.msra.mxu0 0.0
        %698 = vmatpush.msra.mxu0 0.0
        %699 = vmatpush.msra.mxu0 %v470
        %700 = vmatpush.msra.mxu0 %v469
        %701 = vmatmul.f32.gmra.mxu0 %v683
        %v702 = vpop.f32.mrf.mxu0
        %v703 = vadd.f32 %v681, %v702
        %704 = vdwg.mxu0
        %v706 = vrot.slane %v463, 1
        %v707 = vsel %vm476, %v706, 0
        %709 = vmatpush.msra.mxu0 0.0
        %710 = vmatpush.msra.mxu0 0.0
        %711 = vmatpush.msra.mxu0 0.0
        %712 = vmatpush.msra.mxu0 0.0
        %713 = vmatpush.msra.mxu0 0.0
        %714 = vmatpush.msra.mxu0 0.0
        %715 = vmatpush.msra.mxu0 0.0
        %716 = vmatpush.msra.mxu0 0.0
        %717 = vmatpush.msra.mxu0 0.0
        %718 = vmatpush.msra.mxu0 0.0
        %719 = vmatpush.msra.mxu0 0.0
        %720 = vmatpush.msra.mxu0 0.0
        %721 = vmatpush.msra.mxu0 0.0
        %722 = vmatpush.msra.mxu0 0.0
        %723 = vmatpush.msra.mxu0 %v473
        %724 = vmatpush.msra.mxu0 %v472
        %725 = vmatmul.f32.gmra.mxu0 %v707
        %v726 = vpop.f32.mrf.mxu0
        %v727 = vadd.f32 0.0, %v726
        %728 = vdwg.mxu0
        %v729 = vsel %vm476, %v463, 0
        %731 = vmatpush.msra.mxu0 0.0
        %732 = vmatpush.msra.mxu0 0.0
        %733 = vmatpush.msra.mxu0 0.0
        %734 = vmatpush.msra.mxu0 0.0
        %735 = vmatpush.msra.mxu0 0.0
        %736 = vmatpush.msra.mxu0 0.0
        %737 = vmatpush.msra.mxu0 0.0
        %738 = vmatpush.msra.mxu0 0.0
        %739 = vmatpush.msra.mxu0 0.0
        %740 = vmatpush.msra.mxu0 0.0
        %741 = vmatpush.msra.mxu0 0.0
        %742 = vmatpush.msra.mxu0 0.0
        %743 = vmatpush.msra.mxu0 0.0
        %744 = vmatpush.msra.mxu0 0.0
        %745 = vmatpush.msra.mxu0 %v470
        %746 = vmatpush.msra.mxu0 %v469
        %747 = vmatmul.f32.gmra.mxu0 %v729
        %v748 = vpop.f32.mrf.mxu0
        %v749 = vadd.f32 %v727, %v748
        %750 = vdwg.mxu0
        %v752 = vrot.slane %v465, 1
        %v753 = vsel %vm476, %v752, 0
        %755 = vmatpush.msra.mxu0 0.0
        %756 = vmatpush.msra.mxu0 0.0
        %757 = vmatpush.msra.mxu0 0.0
        %758 = vmatpush.msra.mxu0 0.0
        %759 = vmatpush.msra.mxu0 0.0
        %760 = vmatpush.msra.mxu0 0.0
        %761 = vmatpush.msra.mxu0 0.0
        %762 = vmatpush.msra.mxu0 0.0
        %763 = vmatpush.msra.mxu0 0.0
        %764 = vmatpush.msra.mxu0 0.0
        %765 = vmatpush.msra.mxu0 0.0
        %766 = vmatpush.msra.mxu0 0.0
        %767 = vmatpush.msra.mxu0 0.0
        %768 = vmatpush.msra.mxu0 0.0
        %769 = vmatpush.msra.mxu0 %v473
        %770 = vmatpush.msra.mxu0 %v472
        %771 = vmatmul.f32.gmra.mxu0 %v753
        %v772 = vpop.f32.mrf.mxu0
        %v773 = vadd.f32 0.0, %v772
        %774 = vdwg.mxu0
        %v775 = vsel %vm476, %v465, 0
        %777 = vmatpush.msra.mxu0 0.0
        %778 = vmatpush.msra.mxu0 0.0
        %779 = vmatpush.msra.mxu0 0.0
        %780 = vmatpush.msra.mxu0 0.0
        %781 = vmatpush.msra.mxu0 0.0
        %782 = vmatpush.msra.mxu0 0.0
        %783 = vmatpush.msra.mxu0 0.0
        %784 = vmatpush.msra.mxu0 0.0
        %785 = vmatpush.msra.mxu0 0.0
        %786 = vmatpush.msra.mxu0 0.0
        %787 = vmatpush.msra.mxu0 0.0
        %788 = vmatpush.msra.mxu0 0.0
        %789 = vmatpush.msra.mxu0 0.0
        %790 = vmatpush.msra.mxu0 0.0
        %791 = vmatpush.msra.mxu0 %v470
        %792 = vmatpush.msra.mxu0 %v469
        %793 = vmatmul.f32.gmra.mxu0 %v775
        %v794 = vpop.f32.mrf.mxu0
        %v795 = vadd.f32 %v773, %v794
        %796 = vdwg.mxu0
        %s797 = scalar_lea.vmem [#allocation2], 32
        %v798 = vld [vmem:[%s797] sm:$0xff]
        %v799 = vld [vmem:[%s797 + $0x8] sm:$0xff]
        %800 = vmatpush.msra.mxu0 0.0
        %801 = vmatpush.msra.mxu0 0.0
        %802 = vmatpush.msra.mxu0 0.0
        %803 = vmatpush.msra.mxu0 0.0
        %804 = vmatpush.msra.mxu0 0.0
        %805 = vmatpush.msra.mxu0 0.0
        %806 = vmatpush.msra.mxu0 0.0
        %807 = vmatpush.msra.mxu0 0.0
        %808 = vmatpush.msra.mxu0 0.0
        %809 = vmatpush.msra.mxu0 0.0
        %810 = vmatpush.msra.mxu0 0.0
        %811 = vmatpush.msra.mxu0 0.0
        %812 = vmatpush.msra.mxu0 0.0
        %813 = vmatpush.msra.mxu0 0.0
        %814 = vmatpush.msra.mxu0 %v799
        %815 = vmatpush.msra.mxu0 %v798
        %816 = vmatmul.f32.gmra.mxu0 %v545
        %v817 = vpop.f32.mrf.mxu0
        %v818 = vadd.f32 0.0, %v817
        %819 = vdwg.mxu0
        %v820 = vadd.f32 %v519, %v818
        %821 = vmatpush.msra.mxu0 0.0
        %822 = vmatpush.msra.mxu0 0.0
        %823 = vmatpush.msra.mxu0 0.0
        %824 = vmatpush.msra.mxu0 0.0
        %825 = vmatpush.msra.mxu0 0.0
        %826 = vmatpush.msra.mxu0 0.0
        %827 = vmatpush.msra.mxu0 0.0
        %828 = vmatpush.msra.mxu0 0.0
        %829 = vmatpush.msra.mxu0 0.0
        %830 = vmatpush.msra.mxu0 0.0
        %831 = vmatpush.msra.mxu0 0.0
        %832 = vmatpush.msra.mxu0 0.0
        %833 = vmatpush.msra.mxu0 0.0
        %834 = vmatpush.msra.mxu0 0.0
        %835 = vmatpush.msra.mxu0 %v799
        %836 = vmatpush.msra.mxu0 %v798
        %837 = vmatmul.f32.gmra.mxu0 %v591
        %v838 = vpop.f32.mrf.mxu0
        %v839 = vadd.f32 0.0, %v838
        %840 = vdwg.mxu0
        %v841 = vadd.f32 %v565, %v839
        %842 = vmatpush.msra.mxu0 0.0
        %843 = vmatpush.msra.mxu0 0.0
        %844 = vmatpush.msra.mxu0 0.0
        %845 = vmatpush.msra.mxu0 0.0
        %846 = vmatpush.msra.mxu0 0.0
        %847 = vmatpush.msra.mxu0 0.0
        %848 = vmatpush.msra.mxu0 0.0
        %849 = vmatpush.msra.mxu0 0.0
        %850 = vmatpush.msra.mxu0 0.0
        %851 = vmatpush.msra.mxu0 0.0
        %852 = vmatpush.msra.mxu0 0.0
        %853 = vmatpush.msra.mxu0 0.0
        %854 = vmatpush.msra.mxu0 0.0
        %855 = vmatpush.msra.mxu0 0.0
        %856 = vmatpush.msra.mxu0 %v799
        %857 = vmatpush.msra.mxu0 %v798
        %858 = vmatmul.f32.gmra.mxu0 %v637
        %v859 = vpop.f32.mrf.mxu0
        %v860 = vadd.f32 0.0, %v859
        %861 = vdwg.mxu0
        %v862 = vadd.f32 %v611, %v860
        %863 = vmatpush.msra.mxu0 0.0
        %864 = vmatpush.msra.mxu0 0.0
        %865 = vmatpush.msra.mxu0 0.0
        %866 = vmatpush.msra.mxu0 0.0
        %867 = vmatpush.msra.mxu0 0.0
        %868 = vmatpush.msra.mxu0 0.0
        %869 = vmatpush.msra.mxu0 0.0
        %870 = vmatpush.msra.mxu0 0.0
        %871 = vmatpush.msra.mxu0 0.0
        %872 = vmatpush.msra.mxu0 0.0
        %873 = vmatpush.msra.mxu0 0.0
        %874 = vmatpush.msra.mxu0 0.0
        %875 = vmatpush.msra.mxu0 0.0
        %876 = vmatpush.msra.mxu0 0.0
        %877 = vmatpush.msra.mxu0 %v799
        %878 = vmatpush.msra.mxu0 %v798
        %879 = vmatmul.f32.gmra.mxu0 %v683
        %v880 = vpop.f32.mrf.mxu0
        %v881 = vadd.f32 0.0, %v880
        %882 = vdwg.mxu0
        %v883 = vadd.f32 %v657, %v881
        %884 = vmatpush.msra.mxu0 0.0
        %885 = vmatpush.msra.mxu0 0.0
        %886 = vmatpush.msra.mxu0 0.0
        %887 = vmatpush.msra.mxu0 0.0
        %888 = vmatpush.msra.mxu0 0.0
        %889 = vmatpush.msra.mxu0 0.0
        %890 = vmatpush.msra.mxu0 0.0
        %891 = vmatpush.msra.mxu0 0.0
        %892 = vmatpush.msra.mxu0 0.0
        %893 = vmatpush.msra.mxu0 0.0
        %894 = vmatpush.msra.mxu0 0.0
        %895 = vmatpush.msra.mxu0 0.0
        %896 = vmatpush.msra.mxu0 0.0
        %897 = vmatpush.msra.mxu0 0.0
        %898 = vmatpush.msra.mxu0 %v799
        %899 = vmatpush.msra.mxu0 %v798
        %900 = vmatmul.f32.gmra.mxu0 %v729
        %v901 = vpop.f32.mrf.mxu0
        %v902 = vadd.f32 0.0, %v901
        %903 = vdwg.mxu0
        %v904 = vadd.f32 %v703, %v902
        %905 = vmatpush.msra.mxu0 0.0
        %906 = vmatpush.msra.mxu0 0.0
        %907 = vmatpush.msra.mxu0 0.0
        %908 = vmatpush.msra.mxu0 0.0
        %909 = vmatpush.msra.mxu0 0.0
        %910 = vmatpush.msra.mxu0 0.0
        %911 = vmatpush.msra.mxu0 0.0
        %912 = vmatpush.msra.mxu0 0.0
        %913 = vmatpush.msra.mxu0 0.0
        %914 = vmatpush.msra.mxu0 0.0
        %915 = vmatpush.msra.mxu0 0.0
        %916 = vmatpush.msra.mxu0 0.0
        %917 = vmatpush.msra.mxu0 0.0
        %918 = vmatpush.msra.mxu0 0.0
        %919 = vmatpush.msra.mxu0 %v799
        %920 = vmatpush.msra.mxu0 %v798
        %921 = vmatmul.f32.gmra.mxu0 %v775
        %v922 = vpop.f32.mrf.mxu0
        %v923 = vadd.f32 0.0, %v922
        %924 = vdwg.mxu0
        %v925 = vadd.f32 %v749, %v923
        %v927 = vsel %vm476, %v467, 0
        %929 = vmatpush.msra.mxu0 0.0
        %930 = vmatpush.msra.mxu0 0.0
        %931 = vmatpush.msra.mxu0 0.0
        %932 = vmatpush.msra.mxu0 0.0
        %933 = vmatpush.msra.mxu0 0.0
        %934 = vmatpush.msra.mxu0 0.0
        %935 = vmatpush.msra.mxu0 0.0
        %936 = vmatpush.msra.mxu0 0.0
        %937 = vmatpush.msra.mxu0 0.0
        %938 = vmatpush.msra.mxu0 0.0
        %939 = vmatpush.msra.mxu0 0.0
        %940 = vmatpush.msra.mxu0 0.0
        %941 = vmatpush.msra.mxu0 0.0
        %942 = vmatpush.msra.mxu0 0.0
        %943 = vmatpush.msra.mxu0 %v799
        %944 = vmatpush.msra.mxu0 %v798
        %945 = vmatmul.f32.gmra.mxu0 %v927
        %v946 = vpop.f32.mrf.mxu0
        %v947 = vadd.f32 0.0, %v946
        %948 = vdwg.mxu0
        %v949 = vadd.f32 %v795, %v947
        %s950 = scalar_lea.vmem [#allocation2], 48
        %v951 = vld [vmem:[%s950] sm:$0xff]
        %v952 = vld [vmem:[%s950 + $0x8] sm:$0xff]
        %953 = vmatpush.msra.mxu0 0.0
        %954 = vmatpush.msra.mxu0 0.0
        %955 = vmatpush.msra.mxu0 0.0
        %956 = vmatpush.msra.mxu0 0.0
        %957 = vmatpush.msra.mxu0 0.0
        %958 = vmatpush.msra.mxu0 0.0
        %959 = vmatpush.msra.mxu0 0.0
        %960 = vmatpush.msra.mxu0 0.0
        %961 = vmatpush.msra.mxu0 0.0
        %962 = vmatpush.msra.mxu0 0.0
        %963 = vmatpush.msra.mxu0 0.0
        %964 = vmatpush.msra.mxu0 0.0
        %965 = vmatpush.msra.mxu0 0.0
        %966 = vmatpush.msra.mxu0 0.0
        %967 = vmatpush.msra.mxu0 %v952
        %968 = vmatpush.msra.mxu0 %v951
        %969 = vmatmul.f32.gmra.mxu0 %v523
        %v970 = vpop.f32.mrf.mxu0
        %v971 = vadd.f32 0.0, %v970
        %972 = vdwg.mxu0
        %v973 = vadd.f32 %v820, %v971
        %974 = vmatpush.msra.mxu0 0.0
        %975 = vmatpush.msra.mxu0 0.0
        %976 = vmatpush.msra.mxu0 0.0
        %977 = vmatpush.msra.mxu0 0.0
        %978 = vmatpush.msra.mxu0 0.0
        %979 = vmatpush.msra.mxu0 0.0
        %980 = vmatpush.msra.mxu0 0.0
        %981 = vmatpush.msra.mxu0 0.0
        %982 = vmatpush.msra.mxu0 0.0
        %983 = vmatpush.msra.mxu0 0.0
        %984 = vmatpush.msra.mxu0 0.0
        %985 = vmatpush.msra.mxu0 0.0
        %986 = vmatpush.msra.mxu0 0.0
        %987 = vmatpush.msra.mxu0 0.0
        %988 = vmatpush.msra.mxu0 %v952
        %989 = vmatpush.msra.mxu0 %v951
        %990 = vmatmul.f32.gmra.mxu0 %v569
        %v991 = vpop.f32.mrf.mxu0
        %v992 = vadd.f32 0.0, %v991
        %993 = vdwg.mxu0
        %v994 = vadd.f32 %v841, %v992
        %995 = vmatpush.msra.mxu0 0.0
        %996 = vmatpush.msra.mxu0 0.0
        %997 = vmatpush.msra.mxu0 0.0
        %998 = vmatpush.msra.mxu0 0.0
        %999 = vmatpush.msra.mxu0 0.0
        %1000 = vmatpush.msra.mxu0 0.0
        %1001 = vmatpush.msra.mxu0 0.0
        %1002 = vmatpush.msra.mxu0 0.0
        %1003 = vmatpush.msra.mxu0 0.0
        %1004 = vmatpush.msra.mxu0 0.0
        %1005 = vmatpush.msra.mxu0 0.0
        %1006 = vmatpush.msra.mxu0 0.0
        %1007 = vmatpush.msra.mxu0 0.0
        %1008 = vmatpush.msra.mxu0 0.0
        %1009 = vmatpush.msra.mxu0 %v952
        %1010 = vmatpush.msra.mxu0 %v951
        %1011 = vmatmul.f32.gmra.mxu0 %v615
        %v1012 = vpop.f32.mrf.mxu0
        %v1013 = vadd.f32 0.0, %v1012
        %1014 = vdwg.mxu0
        %v1015 = vadd.f32 %v862, %v1013
        %1016 = vmatpush.msra.mxu0 0.0
        %1017 = vmatpush.msra.mxu0 0.0
        %1018 = vmatpush.msra.mxu0 0.0
        %1019 = vmatpush.msra.mxu0 0.0
        %1020 = vmatpush.msra.mxu0 0.0
        %1021 = vmatpush.msra.mxu0 0.0
        %1022 = vmatpush.msra.mxu0 0.0
        %1023 = vmatpush.msra.mxu0 0.0
        %1024 = vmatpush.msra.mxu0 0.0
        %1025 = vmatpush.msra.mxu0 0.0
        %1026 = vmatpush.msra.mxu0 0.0
        %1027 = vmatpush.msra.mxu0 0.0
        %1028 = vmatpush.msra.mxu0 0.0
        %1029 = vmatpush.msra.mxu0 0.0
        %1030 = vmatpush.msra.mxu0 %v952
        %1031 = vmatpush.msra.mxu0 %v951
        %1032 = vmatmul.f32.gmra.mxu0 %v661
        %v1033 = vpop.f32.mrf.mxu0
        %v1034 = vadd.f32 0.0, %v1033
        %1035 = vdwg.mxu0
        %v1036 = vadd.f32 %v883, %v1034
        %1037 = vmatpush.msra.mxu0 0.0
        %1038 = vmatpush.msra.mxu0 0.0
        %1039 = vmatpush.msra.mxu0 0.0
        %1040 = vmatpush.msra.mxu0 0.0
        %1041 = vmatpush.msra.mxu0 0.0
        %1042 = vmatpush.msra.mxu0 0.0
        %1043 = vmatpush.msra.mxu0 0.0
        %1044 = vmatpush.msra.mxu0 0.0
        %1045 = vmatpush.msra.mxu0 0.0
        %1046 = vmatpush.msra.mxu0 0.0
        %1047 = vmatpush.msra.mxu0 0.0
        %1048 = vmatpush.msra.mxu0 0.0
        %1049 = vmatpush.msra.mxu0 0.0
        %1050 = vmatpush.msra.mxu0 0.0
        %1051 = vmatpush.msra.mxu0 %v952
        %1052 = vmatpush.msra.mxu0 %v951
        %1053 = vmatmul.f32.gmra.mxu0 %v707
        %v1054 = vpop.f32.mrf.mxu0
        %v1055 = vadd.f32 0.0, %v1054
        %1056 = vdwg.mxu0
        %v1057 = vadd.f32 %v904, %v1055
        %1058 = vmatpush.msra.mxu0 0.0
        %1059 = vmatpush.msra.mxu0 0.0
        %1060 = vmatpush.msra.mxu0 0.0
        %1061 = vmatpush.msra.mxu0 0.0
        %1062 = vmatpush.msra.mxu0 0.0
        %1063 = vmatpush.msra.mxu0 0.0
        %1064 = vmatpush.msra.mxu0 0.0
        %1065 = vmatpush.msra.mxu0 0.0
        %1066 = vmatpush.msra.mxu0 0.0
        %1067 = vmatpush.msra.mxu0 0.0
        %1068 = vmatpush.msra.mxu0 0.0
        %1069 = vmatpush.msra.mxu0 0.0
        %1070 = vmatpush.msra.mxu0 0.0
        %1071 = vmatpush.msra.mxu0 0.0
        %1072 = vmatpush.msra.mxu0 %v952
        %1073 = vmatpush.msra.mxu0 %v951
        %1074 = vmatmul.f32.gmra.mxu0 %v753
        %v1075 = vpop.f32.mrf.mxu0
        %v1076 = vadd.f32 0.0, %v1075
        %1077 = vdwg.mxu0
        %v1078 = vadd.f32 %v925, %v1076
        %v1079 = vrot.slane %v467, 1
        %v1080 = vsel %vm476, %v1079, 0
        %1082 = vmatpush.msra.mxu0 0.0
        %1083 = vmatpush.msra.mxu0 0.0
        %1084 = vmatpush.msra.mxu0 0.0
        %1085 = vmatpush.msra.mxu0 0.0
        %1086 = vmatpush.msra.mxu0 0.0
        %1087 = vmatpush.msra.mxu0 0.0
        %1088 = vmatpush.msra.mxu0 0.0
        %1089 = vmatpush.msra.mxu0 0.0
        %1090 = vmatpush.msra.mxu0 0.0
        %1091 = vmatpush.msra.mxu0 0.0
        %1092 = vmatpush.msra.mxu0 0.0
        %1093 = vmatpush.msra.mxu0 0.0
        %1094 = vmatpush.msra.mxu0 0.0
        %1095 = vmatpush.msra.mxu0 0.0
        %1096 = vmatpush.msra.mxu0 %v952
        %1097 = vmatpush.msra.mxu0 %v951
        %1098 = vmatmul.f32.gmra.mxu0 %v1080
        %v1099 = vpop.f32.mrf.mxu0
        %v1100 = vadd.f32 0.0, %v1099
        %1101 = vdwg.mxu0
        %v1102 = vadd.f32 %v949, %v1100
        %v1104 = vperm.slane %v468, 0
        %v1106 = vadd.f32 %v973, %v1104
        %v1107 = vmax.f32 %v1106, 0.0
        %v1108 = vadd.f32 %v994, %v1104
        %v1109 = vmax.f32 %v1108, 0.0
        %v1110 = vadd.f32 %v1015, %v1104
        %v1111 = vmax.f32 %v1110, 0.0
        %v1112 = vadd.f32 %v1036, %v1104
        %v1113 = vmax.f32 %v1112, 0.0
        %v1114 = vadd.f32 %v1057, %v1104
        %v1115 = vmax.f32 %v1114, 0.0
        %v1116 = vadd.f32 %v1078, %v1104
        %v1117 = vmax.f32 %v1116, 0.0
        %v1118 = vadd.f32 %v1102, %v1104
        %v1119 = vmax.f32 %v1118, 0.0
        %v1120 = vld [vmem:[#allocation8] sm:$0x1]
        %v1121 = vld [vmem:[#allocation7] sm:$0xff]
        %v1122 = vld [vmem:[#allocation7 + $0x8] sm:$0xff]
        %v1123 = vld [vmem:[#allocation7 + $0x10] sm:$0xff]
        %v1124 = vld [vmem:[#allocation7 + $0x18] sm:$0xff]
        %v1125 = vld [vmem:[#allocation7 + $0x20] sm:$0xff]
        %v1126 = vld [vmem:[#allocation7 + $0x28] sm:$0xff]
        %v1127 = vld [vmem:[#allocation7 + $0x30] sm:$0xff]
        %v1128 = vld [vmem:[#allocation7 + $0x38] sm:$0xff]
        %v1129 = vld [vmem:[#allocation7 + $0x40] sm:$0xff]
        %v1130 = vld [vmem:[#allocation7 + $0x48] sm:$0xff]
        %v1131 = vld [vmem:[#allocation7 + $0x50] sm:$0xff]
        %v1132 = vld [vmem:[#allocation7 + $0x58] sm:$0xff]
        %v1133 = vld [vmem:[#allocation7 + $0x60] sm:$0xff]
        %v1134 = vld [vmem:[#allocation7 + $0x68] sm:$0xff]
        %v1135 = vld [vmem:[#allocation7 + $0x70] sm:$0xff]
        %v1136 = vld [vmem:[#allocation7 + $0x78] sm:$0xff]
        %s1137 = scalar_lea.vmem [#allocation7], 128
        %v1138 = vld [vmem:[%s1137] sm:$0xff]
        %v1139 = vld [vmem:[%s1137 + $0x8] sm:$0xff]
        %v1140 = vld [vmem:[%s1137 + $0x10] sm:$0xff]
        %v1141 = vld [vmem:[%s1137 + $0x18] sm:$0xff]
        %v1142 = vld [vmem:[%s1137 + $0x20] sm:$0xff]
        %v1143 = vld [vmem:[%s1137 + $0x28] sm:$0xff]
        %v1144 = vld [vmem:[%s1137 + $0x30] sm:$0xff]
        %v1145 = vld [vmem:[%s1137 + $0x38] sm:$0xff]
        %v1146 = vld [vmem:[%s1137 + $0x40] sm:$0xff]
        %v1147 = vld [vmem:[%s1137 + $0x48] sm:$0xff]
        %v1148 = vld [vmem:[%s1137 + $0x50] sm:$0xff]
        %v1149 = vld [vmem:[%s1137 + $0x58] sm:$0xff]
        %v1150 = vld [vmem:[%s1137 + $0x60] sm:$0xff]
        %v1151 = vld [vmem:[%s1137 + $0x68] sm:$0xff]
        %v1152 = vld [vmem:[%s1137 + $0x70] sm:$0xff]
        %v1153 = vld [vmem:[%s1137 + $0x78] sm:$0xff]
        %v1155 = vrot.slane %v1107, 1
        %1157 = vmatpush.msra.mxu0 %v1153
        %1158 = vmatpush.msra.mxu0 %v1152
        %1159 = vmatpush.msra.mxu0 %v1151
        %1160 = vmatpush.msra.mxu0 %v1150
        %1161 = vmatpush.msra.mxu0 %v1149
        %1162 = vmatpush.msra.mxu0 %v1148
        %1163 = vmatpush.msra.mxu0 %v1147
        %1164 = vmatpush.msra.mxu0 %v1146
        %1165 = vmatpush.msra.mxu0 %v1145
        %1166 = vmatpush.msra.mxu0 %v1144
        %1167 = vmatpush.msra.mxu0 %v1143
        %1168 = vmatpush.msra.mxu0 %v1142
        %1169 = vmatpush.msra.mxu0 %v1141
        %1170 = vmatpush.msra.mxu0 %v1140
        %1171 = vmatpush.msra.mxu0 %v1139
        %1172 = vmatpush.msra.mxu0 %v1138
        %1173 = vmatmul.f32.gmra.mxu0 %v1155
        %v1174 = vpop.f32.mrf.mxu0
        %v1175 = vadd.f32 0.0, %v1174
        %1176 = vdwg.mxu0
        %1177 = vmatpush.msra.mxu0 %v1136
        %1178 = vmatpush.msra.mxu0 %v1135
        %1179 = vmatpush.msra.mxu0 %v1134
        %1180 = vmatpush.msra.mxu0 %v1133
        %1181 = vmatpush.msra.mxu0 %v1132
        %1182 = vmatpush.msra.mxu0 %v1131
        %1183 = vmatpush.msra.mxu0 %v1130
        %1184 = vmatpush.msra.mxu0 %v1129
        %1185 = vmatpush.msra.mxu0 %v1128
        %1186 = vmatpush.msra.mxu0 %v1127
        %1187 = vmatpush.msra.mxu0 %v1126
        %1188 = vmatpush.msra.mxu0 %v1125
        %1189 = vmatpush.msra.mxu0 %v1124
        %1190 = vmatpush.msra.mxu0 %v1123
        %1191 = vmatpush.msra.mxu0 %v1122
        %1192 = vmatpush.msra.mxu0 %v1121
        %1193 = vmatmul.f32.gmra.mxu0 %v1107
        %v1194 = vpop.f32.mrf.mxu0
        %v1195 = vadd.f32 %v1175, %v1194
        %1196 = vdwg.mxu0
        %v1198 = vrot.slane %v1109, 1
        %1200 = vmatpush.msra.mxu0 %v1153
        %1201 = vmatpush.msra.mxu0 %v1152
        %1202 = vmatpush.msra.mxu0 %v1151
        %1203 = vmatpush.msra.mxu0 %v1150
        %1204 = vmatpush.msra.mxu0 %v1149
        %1205 = vmatpush.msra.mxu0 %v1148
        %1206 = vmatpush.msra.mxu0 %v1147
        %1207 = vmatpush.msra.mxu0 %v1146
        %1208 = vmatpush.msra.mxu0 %v1145
        %1209 = vmatpush.msra.mxu0 %v1144
        %1210 = vmatpush.msra.mxu0 %v1143
        %1211 = vmatpush.msra.mxu0 %v1142
        %1212 = vmatpush.msra.mxu0 %v1141
        %1213 = vmatpush.msra.mxu0 %v1140
        %1214 = vmatpush.msra.mxu0 %v1139
        %1215 = vmatpush.msra.mxu0 %v1138
        %1216 = vmatmul.f32.gmra.mxu0 %v1198
        %v1217 = vpop.f32.mrf.mxu0
        %v1218 = vadd.f32 0.0, %v1217
        %1219 = vdwg.mxu0
        %1220 = vmatpush.msra.mxu0 %v1136
        %1221 = vmatpush.msra.mxu0 %v1135
        %1222 = vmatpush.msra.mxu0 %v1134
        %1223 = vmatpush.msra.mxu0 %v1133
        %1224 = vmatpush.msra.mxu0 %v1132
        %1225 = vmatpush.msra.mxu0 %v1131
        %1226 = vmatpush.msra.mxu0 %v1130
        %1227 = vmatpush.msra.mxu0 %v1129
        %1228 = vmatpush.msra.mxu0 %v1128
        %1229 = vmatpush.msra.mxu0 %v1127
        %1230 = vmatpush.msra.mxu0 %v1126
        %1231 = vmatpush.msra.mxu0 %v1125
        %1232 = vmatpush.msra.mxu0 %v1124
        %1233 = vmatpush.msra.mxu0 %v1123
        %1234 = vmatpush.msra.mxu0 %v1122
        %1235 = vmatpush.msra.mxu0 %v1121
        %1236 = vmatmul.f32.gmra.mxu0 %v1109
        %v1237 = vpop.f32.mrf.mxu0
        %v1238 = vadd.f32 %v1218, %v1237
        %1239 = vdwg.mxu0
        %v1241 = vrot.slane %v1111, 1
        %1243 = vmatpush.msra.mxu0 %v1153
        %1244 = vmatpush.msra.mxu0 %v1152
        %1245 = vmatpush.msra.mxu0 %v1151
        %1246 = vmatpush.msra.mxu0 %v1150
        %1247 = vmatpush.msra.mxu0 %v1149
        %1248 = vmatpush.msra.mxu0 %v1148
        %1249 = vmatpush.msra.mxu0 %v1147
        %1250 = vmatpush.msra.mxu0 %v1146
        %1251 = vmatpush.msra.mxu0 %v1145
        %1252 = vmatpush.msra.mxu0 %v1144
        %1253 = vmatpush.msra.mxu0 %v1143
        %1254 = vmatpush.msra.mxu0 %v1142
        %1255 = vmatpush.msra.mxu0 %v1141
        %1256 = vmatpush.msra.mxu0 %v1140
        %1257 = vmatpush.msra.mxu0 %v1139
        %1258 = vmatpush.msra.mxu0 %v1138
        %1259 = vmatmul.f32.gmra.mxu0 %v1241
        %v1260 = vpop.f32.mrf.mxu0
        %v1261 = vadd.f32 0.0, %v1260
        %1262 = vdwg.mxu0
        %1263 = vmatpush.msra.mxu0 %v1136
        %1264 = vmatpush.msra.mxu0 %v1135
        %1265 = vmatpush.msra.mxu0 %v1134
        %1266 = vmatpush.msra.mxu0 %v1133
        %1267 = vmatpush.msra.mxu0 %v1132
        %1268 = vmatpush.msra.mxu0 %v1131
        %1269 = vmatpush.msra.mxu0 %v1130
        %1270 = vmatpush.msra.mxu0 %v1129
        %1271 = vmatpush.msra.mxu0 %v1128
        %1272 = vmatpush.msra.mxu0 %v1127
        %1273 = vmatpush.msra.mxu0 %v1126
        %1274 = vmatpush.msra.mxu0 %v1125
        %1275 = vmatpush.msra.mxu0 %v1124
        %1276 = vmatpush.msra.mxu0 %v1123
        %1277 = vmatpush.msra.mxu0 %v1122
        %1278 = vmatpush.msra.mxu0 %v1121
        %1279 = vmatmul.f32.gmra.mxu0 %v1111
        %v1280 = vpop.f32.mrf.mxu0
        %v1281 = vadd.f32 %v1261, %v1280
        %1282 = vdwg.mxu0
        %v1284 = vrot.slane %v1113, 1
        %1286 = vmatpush.msra.mxu0 %v1153
        %1287 = vmatpush.msra.mxu0 %v1152
        %1288 = vmatpush.msra.mxu0 %v1151
        %1289 = vmatpush.msra.mxu0 %v1150
        %1290 = vmatpush.msra.mxu0 %v1149
        %1291 = vmatpush.msra.mxu0 %v1148
        %1292 = vmatpush.msra.mxu0 %v1147
        %1293 = vmatpush.msra.mxu0 %v1146
        %1294 = vmatpush.msra.mxu0 %v1145
        %1295 = vmatpush.msra.mxu0 %v1144
        %1296 = vmatpush.msra.mxu0 %v1143
        %1297 = vmatpush.msra.mxu0 %v1142
        %1298 = vmatpush.msra.mxu0 %v1141
        %1299 = vmatpush.msra.mxu0 %v1140
        %1300 = vmatpush.msra.mxu0 %v1139
        %1301 = vmatpush.msra.mxu0 %v1138
        %1302 = vmatmul.f32.gmra.mxu0 %v1284
        %v1303 = vpop.f32.mrf.mxu0
        %v1304 = vadd.f32 0.0, %v1303
        %1305 = vdwg.mxu0
        %1306 = vmatpush.msra.mxu0 %v1136
        %1307 = vmatpush.msra.mxu0 %v1135
        %1308 = vmatpush.msra.mxu0 %v1134
        %1309 = vmatpush.msra.mxu0 %v1133
        %1310 = vmatpush.msra.mxu0 %v1132
        %1311 = vmatpush.msra.mxu0 %v1131
        %1312 = vmatpush.msra.mxu0 %v1130
        %1313 = vmatpush.msra.mxu0 %v1129
        %1314 = vmatpush.msra.mxu0 %v1128
        %1315 = vmatpush.msra.mxu0 %v1127
        %1316 = vmatpush.msra.mxu0 %v1126
        %1317 = vmatpush.msra.mxu0 %v1125
        %1318 = vmatpush.msra.mxu0 %v1124
        %1319 = vmatpush.msra.mxu0 %v1123
        %1320 = vmatpush.msra.mxu0 %v1122
        %1321 = vmatpush.msra.mxu0 %v1121
        %1322 = vmatmul.f32.gmra.mxu0 %v1113
        %v1323 = vpop.f32.mrf.mxu0
        %v1324 = vadd.f32 %v1304, %v1323
        %1325 = vdwg.mxu0
        %v1327 = vrot.slane %v1115, 1
        %1329 = vmatpush.msra.mxu0 %v1153
        %1330 = vmatpush.msra.mxu0 %v1152
        %1331 = vmatpush.msra.mxu0 %v1151
        %1332 = vmatpush.msra.mxu0 %v1150
        %1333 = vmatpush.msra.mxu0 %v1149
        %1334 = vmatpush.msra.mxu0 %v1148
        %1335 = vmatpush.msra.mxu0 %v1147
        %1336 = vmatpush.msra.mxu0 %v1146
        %1337 = vmatpush.msra.mxu0 %v1145
        %1338 = vmatpush.msra.mxu0 %v1144
        %1339 = vmatpush.msra.mxu0 %v1143
        %1340 = vmatpush.msra.mxu0 %v1142
        %1341 = vmatpush.msra.mxu0 %v1141
        %1342 = vmatpush.msra.mxu0 %v1140
        %1343 = vmatpush.msra.mxu0 %v1139
        %1344 = vmatpush.msra.mxu0 %v1138
        %1345 = vmatmul.f32.gmra.mxu0 %v1327
        %v1346 = vpop.f32.mrf.mxu0
        %v1347 = vadd.f32 0.0, %v1346
        %1348 = vdwg.mxu0
        %1349 = vmatpush.msra.mxu0 %v1136
        %1350 = vmatpush.msra.mxu0 %v1135
        %1351 = vmatpush.msra.mxu0 %v1134
        %1352 = vmatpush.msra.mxu0 %v1133
        %1353 = vmatpush.msra.mxu0 %v1132
        %1354 = vmatpush.msra.mxu0 %v1131
        %1355 = vmatpush.msra.mxu0 %v1130
        %1356 = vmatpush.msra.mxu0 %v1129
        %1357 = vmatpush.msra.mxu0 %v1128
        %1358 = vmatpush.msra.mxu0 %v1127
        %1359 = vmatpush.msra.mxu0 %v1126
        %1360 = vmatpush.msra.mxu0 %v1125
        %1361 = vmatpush.msra.mxu0 %v1124
        %1362 = vmatpush.msra.mxu0 %v1123
        %1363 = vmatpush.msra.mxu0 %v1122
        %1364 = vmatpush.msra.mxu0 %v1121
        %1365 = vmatmul.f32.gmra.mxu0 %v1115
        %v1366 = vpop.f32.mrf.mxu0
        %v1367 = vadd.f32 %v1347, %v1366
        %1368 = vdwg.mxu0
        %s1369 = scalar_lea.vmem [#allocation7], 256
        %v1370 = vld [vmem:[%s1369] sm:$0xff]
        %v1371 = vld [vmem:[%s1369 + $0x8] sm:$0xff]
        %v1372 = vld [vmem:[%s1369 + $0x10] sm:$0xff]
        %v1373 = vld [vmem:[%s1369 + $0x18] sm:$0xff]
        %v1374 = vld [vmem:[%s1369 + $0x20] sm:$0xff]
        %v1375 = vld [vmem:[%s1369 + $0x28] sm:$0xff]
        %v1376 = vld [vmem:[%s1369 + $0x30] sm:$0xff]
        %v1377 = vld [vmem:[%s1369 + $0x38] sm:$0xff]
        %v1378 = vld [vmem:[%s1369 + $0x40] sm:$0xff]
        %v1379 = vld [vmem:[%s1369 + $0x48] sm:$0xff]
        %v1380 = vld [vmem:[%s1369 + $0x50] sm:$0xff]
        %v1381 = vld [vmem:[%s1369 + $0x58] sm:$0xff]
        %v1382 = vld [vmem:[%s1369 + $0x60] sm:$0xff]
        %v1383 = vld [vmem:[%s1369 + $0x68] sm:$0xff]
        %v1384 = vld [vmem:[%s1369 + $0x70] sm:$0xff]
        %v1385 = vld [vmem:[%s1369 + $0x78] sm:$0xff]
        %v1386 = vrot.slane %v1107, 2
        %1388 = vmatpush.msra.mxu0 %v1385
        %1389 = vmatpush.msra.mxu0 %v1384
        %1390 = vmatpush.msra.mxu0 %v1383
        %1391 = vmatpush.msra.mxu0 %v1382
        %1392 = vmatpush.msra.mxu0 %v1381
        %1393 = vmatpush.msra.mxu0 %v1380
        %1394 = vmatpush.msra.mxu0 %v1379
        %1395 = vmatpush.msra.mxu0 %v1378
        %1396 = vmatpush.msra.mxu0 %v1377
        %1397 = vmatpush.msra.mxu0 %v1376
        %1398 = vmatpush.msra.mxu0 %v1375
        %1399 = vmatpush.msra.mxu0 %v1374
        %1400 = vmatpush.msra.mxu0 %v1373
        %1401 = vmatpush.msra.mxu0 %v1372
        %1402 = vmatpush.msra.mxu0 %v1371
        %1403 = vmatpush.msra.mxu0 %v1370
        %1404 = vmatmul.f32.gmra.mxu0 %v1386
        %v1405 = vpop.f32.mrf.mxu0
        %v1406 = vadd.f32 0.0, %v1405
        %1407 = vdwg.mxu0
        %v1408 = vadd.f32 %v1195, %v1406
        %v1409 = vrot.slane %v1109, 2
        %1411 = vmatpush.msra.mxu0 %v1385
        %1412 = vmatpush.msra.mxu0 %v1384
        %1413 = vmatpush.msra.mxu0 %v1383
        %1414 = vmatpush.msra.mxu0 %v1382
        %1415 = vmatpush.msra.mxu0 %v1381
        %1416 = vmatpush.msra.mxu0 %v1380
        %1417 = vmatpush.msra.mxu0 %v1379
        %1418 = vmatpush.msra.mxu0 %v1378
        %1419 = vmatpush.msra.mxu0 %v1377
        %1420 = vmatpush.msra.mxu0 %v1376
        %1421 = vmatpush.msra.mxu0 %v1375
        %1422 = vmatpush.msra.mxu0 %v1374
        %1423 = vmatpush.msra.mxu0 %v1373
        %1424 = vmatpush.msra.mxu0 %v1372
        %1425 = vmatpush.msra.mxu0 %v1371
        %1426 = vmatpush.msra.mxu0 %v1370
        %1427 = vmatmul.f32.gmra.mxu0 %v1409
        %v1428 = vpop.f32.mrf.mxu0
        %v1429 = vadd.f32 0.0, %v1428
        %1430 = vdwg.mxu0
        %v1431 = vadd.f32 %v1238, %v1429
        %v1432 = vrot.slane %v1111, 2
        %1434 = vmatpush.msra.mxu0 %v1385
        %1435 = vmatpush.msra.mxu0 %v1384
        %1436 = vmatpush.msra.mxu0 %v1383
        %1437 = vmatpush.msra.mxu0 %v1382
        %1438 = vmatpush.msra.mxu0 %v1381
        %1439 = vmatpush.msra.mxu0 %v1380
        %1440 = vmatpush.msra.mxu0 %v1379
        %1441 = vmatpush.msra.mxu0 %v1378
        %1442 = vmatpush.msra.mxu0 %v1377
        %1443 = vmatpush.msra.mxu0 %v1376
        %1444 = vmatpush.msra.mxu0 %v1375
        %1445 = vmatpush.msra.mxu0 %v1374
        %1446 = vmatpush.msra.mxu0 %v1373
        %1447 = vmatpush.msra.mxu0 %v1372
        %1448 = vmatpush.msra.mxu0 %v1371
        %1449 = vmatpush.msra.mxu0 %v1370
        %1450 = vmatmul.f32.gmra.mxu0 %v1432
        %v1451 = vpop.f32.mrf.mxu0
        %v1452 = vadd.f32 0.0, %v1451
        %1453 = vdwg.mxu0
        %v1454 = vadd.f32 %v1281, %v1452
        %v1455 = vrot.slane %v1113, 2
        %1457 = vmatpush.msra.mxu0 %v1385
        %1458 = vmatpush.msra.mxu0 %v1384
        %1459 = vmatpush.msra.mxu0 %v1383
        %1460 = vmatpush.msra.mxu0 %v1382
        %1461 = vmatpush.msra.mxu0 %v1381
        %1462 = vmatpush.msra.mxu0 %v1380
        %1463 = vmatpush.msra.mxu0 %v1379
        %1464 = vmatpush.msra.mxu0 %v1378
        %1465 = vmatpush.msra.mxu0 %v1377
        %1466 = vmatpush.msra.mxu0 %v1376
        %1467 = vmatpush.msra.mxu0 %v1375
        %1468 = vmatpush.msra.mxu0 %v1374
        %1469 = vmatpush.msra.mxu0 %v1373
        %1470 = vmatpush.msra.mxu0 %v1372
        %1471 = vmatpush.msra.mxu0 %v1371
        %1472 = vmatpush.msra.mxu0 %v1370
        %1473 = vmatmul.f32.gmra.mxu0 %v1455
        %v1474 = vpop.f32.mrf.mxu0
        %v1475 = vadd.f32 0.0, %v1474
        %1476 = vdwg.mxu0
        %v1477 = vadd.f32 %v1324, %v1475
        %v1478 = vrot.slane %v1115, 2
        %1480 = vmatpush.msra.mxu0 %v1385
        %1481 = vmatpush.msra.mxu0 %v1384
        %1482 = vmatpush.msra.mxu0 %v1383
        %1483 = vmatpush.msra.mxu0 %v1382
        %1484 = vmatpush.msra.mxu0 %v1381
        %1485 = vmatpush.msra.mxu0 %v1380
        %1486 = vmatpush.msra.mxu0 %v1379
        %1487 = vmatpush.msra.mxu0 %v1378
        %1488 = vmatpush.msra.mxu0 %v1377
        %1489 = vmatpush.msra.mxu0 %v1376
        %1490 = vmatpush.msra.mxu0 %v1375
        %1491 = vmatpush.msra.mxu0 %v1374
        %1492 = vmatpush.msra.mxu0 %v1373
        %1493 = vmatpush.msra.mxu0 %v1372
        %1494 = vmatpush.msra.mxu0 %v1371
        %1495 = vmatpush.msra.mxu0 %v1370
        %1496 = vmatmul.f32.gmra.mxu0 %v1478
        %v1497 = vpop.f32.mrf.mxu0
        %v1498 = vadd.f32 0.0, %v1497
        %1499 = vdwg.mxu0
        %v1500 = vadd.f32 %v1367, %v1498
        %s1501 = scalar_lea.vmem [#allocation7], 384
        %v1502 = vld [vmem:[%s1501] sm:$0xff]
        %v1503 = vld [vmem:[%s1501 + $0x8] sm:$0xff]
        %v1504 = vld [vmem:[%s1501 + $0x10] sm:$0xff]
        %v1505 = vld [vmem:[%s1501 + $0x18] sm:$0xff]
        %v1506 = vld [vmem:[%s1501 + $0x20] sm:$0xff]
        %v1507 = vld [vmem:[%s1501 + $0x28] sm:$0xff]
        %v1508 = vld [vmem:[%s1501 + $0x30] sm:$0xff]
        %v1509 = vld [vmem:[%s1501 + $0x38] sm:$0xff]
        %v1510 = vld [vmem:[%s1501 + $0x40] sm:$0xff]
        %v1511 = vld [vmem:[%s1501 + $0x48] sm:$0xff]
        %v1512 = vld [vmem:[%s1501 + $0x50] sm:$0xff]
        %v1513 = vld [vmem:[%s1501 + $0x58] sm:$0xff]
        %v1514 = vld [vmem:[%s1501 + $0x60] sm:$0xff]
        %v1515 = vld [vmem:[%s1501 + $0x68] sm:$0xff]
        %v1516 = vld [vmem:[%s1501 + $0x70] sm:$0xff]
        %v1517 = vld [vmem:[%s1501 + $0x78] sm:$0xff]
        %1518 = vmatpush.msra.mxu0 %v1517
        %1519 = vmatpush.msra.mxu0 %v1516
        %1520 = vmatpush.msra.mxu0 %v1515
        %1521 = vmatpush.msra.mxu0 %v1514
        %1522 = vmatpush.msra.mxu0 %v1513
        %1523 = vmatpush.msra.mxu0 %v1512
        %1524 = vmatpush.msra.mxu0 %v1511
        %1525 = vmatpush.msra.mxu0 %v1510
        %1526 = vmatpush.msra.mxu0 %v1509
        %1527 = vmatpush.msra.mxu0 %v1508
        %1528 = vmatpush.msra.mxu0 %v1507
        %1529 = vmatpush.msra.mxu0 %v1506
        %1530 = vmatpush.msra.mxu0 %v1505
        %1531 = vmatpush.msra.mxu0 %v1504
        %1532 = vmatpush.msra.mxu0 %v1503
        %1533 = vmatpush.msra.mxu0 %v1502
        %1534 = vmatmul.f32.gmra.mxu0 %v1109
        %v1535 = vpop.f32.mrf.mxu0
        %v1536 = vadd.f32 0.0, %v1535
        %1537 = vdwg.mxu0
        %v1538 = vadd.f32 %v1408, %v1536
        %1539 = vmatpush.msra.mxu0 %v1517
        %1540 = vmatpush.msra.mxu0 %v1516
        %1541 = vmatpush.msra.mxu0 %v1515
        %1542 = vmatpush.msra.mxu0 %v1514
        %1543 = vmatpush.msra.mxu0 %v1513
        %1544 = vmatpush.msra.mxu0 %v1512
        %1545 = vmatpush.msra.mxu0 %v1511
        %1546 = vmatpush.msra.mxu0 %v1510
        %1547 = vmatpush.msra.mxu0 %v1509
        %1548 = vmatpush.msra.mxu0 %v1508
        %1549 = vmatpush.msra.mxu0 %v1507
        %1550 = vmatpush.msra.mxu0 %v1506
        %1551 = vmatpush.msra.mxu0 %v1505
        %1552 = vmatpush.msra.mxu0 %v1504
        %1553 = vmatpush.msra.mxu0 %v1503
        %1554 = vmatpush.msra.mxu0 %v1502
        %1555 = vmatmul.f32.gmra.mxu0 %v1111
        %v1556 = vpop.f32.mrf.mxu0
        %v1557 = vadd.f32 0.0, %v1556
        %1558 = vdwg.mxu0
        %v1559 = vadd.f32 %v1431, %v1557
        %1560 = vmatpush.msra.mxu0 %v1517
        %1561 = vmatpush.msra.mxu0 %v1516
        %1562 = vmatpush.msra.mxu0 %v1515
        %1563 = vmatpush.msra.mxu0 %v1514
        %1564 = vmatpush.msra.mxu0 %v1513
        %1565 = vmatpush.msra.mxu0 %v1512
        %1566 = vmatpush.msra.mxu0 %v1511
        %1567 = vmatpush.msra.mxu0 %v1510
        %1568 = vmatpush.msra.mxu0 %v1509
        %1569 = vmatpush.msra.mxu0 %v1508
        %1570 = vmatpush.msra.mxu0 %v1507
        %1571 = vmatpush.msra.mxu0 %v1506
        %1572 = vmatpush.msra.mxu0 %v1505
        %1573 = vmatpush.msra.mxu0 %v1504
        %1574 = vmatpush.msra.mxu0 %v1503
        %1575 = vmatpush.msra.mxu0 %v1502
        %1576 = vmatmul.f32.gmra.mxu0 %v1113
        %v1577 = vpop.f32.mrf.mxu0
        %v1578 = vadd.f32 0.0, %v1577
        %1579 = vdwg.mxu0
        %v1580 = vadd.f32 %v1454, %v1578
        %1581 = vmatpush.msra.mxu0 %v1517
        %1582 = vmatpush.msra.mxu0 %v1516
        %1583 = vmatpush.msra.mxu0 %v1515
        %1584 = vmatpush.msra.mxu0 %v1514
        %1585 = vmatpush.msra.mxu0 %v1513
        %1586 = vmatpush.msra.mxu0 %v1512
        %1587 = vmatpush.msra.mxu0 %v1511
        %1588 = vmatpush.msra.mxu0 %v1510
        %1589 = vmatpush.msra.mxu0 %v1509
        %1590 = vmatpush.msra.mxu0 %v1508
        %1591 = vmatpush.msra.mxu0 %v1507
        %1592 = vmatpush.msra.mxu0 %v1506
        %1593 = vmatpush.msra.mxu0 %v1505
        %1594 = vmatpush.msra.mxu0 %v1504
        %1595 = vmatpush.msra.mxu0 %v1503
        %1596 = vmatpush.msra.mxu0 %v1502
        %1597 = vmatmul.f32.gmra.mxu0 %v1115
        %v1598 = vpop.f32.mrf.mxu0
        %v1599 = vadd.f32 0.0, %v1598
        %1600 = vdwg.mxu0
        %v1601 = vadd.f32 %v1477, %v1599
        %1602 = vmatpush.msra.mxu0 %v1517
        %1603 = vmatpush.msra.mxu0 %v1516
        %1604 = vmatpush.msra.mxu0 %v1515
        %1605 = vmatpush.msra.mxu0 %v1514
        %1606 = vmatpush.msra.mxu0 %v1513
        %1607 = vmatpush.msra.mxu0 %v1512
        %1608 = vmatpush.msra.mxu0 %v1511
        %1609 = vmatpush.msra.mxu0 %v1510
        %1610 = vmatpush.msra.mxu0 %v1509
        %1611 = vmatpush.msra.mxu0 %v1508
        %1612 = vmatpush.msra.mxu0 %v1507
        %1613 = vmatpush.msra.mxu0 %v1506
        %1614 = vmatpush.msra.mxu0 %v1505
        %1615 = vmatpush.msra.mxu0 %v1504
        %1616 = vmatpush.msra.mxu0 %v1503
        %1617 = vmatpush.msra.mxu0 %v1502
        %1618 = vmatmul.f32.gmra.mxu0 %v1117
        %v1619 = vpop.f32.mrf.mxu0
        %v1620 = vadd.f32 0.0, %v1619
        %1621 = vdwg.mxu0
        %v1622 = vadd.f32 %v1500, %v1620
        %s1623 = scalar_lea.vmem [#allocation7], 512
        %v1624 = vld [vmem:[%s1623] sm:$0xff]
        %v1625 = vld [vmem:[%s1623 + $0x8] sm:$0xff]
        %v1626 = vld [vmem:[%s1623 + $0x10] sm:$0xff]
        %v1627 = vld [vmem:[%s1623 + $0x18] sm:$0xff]
        %v1628 = vld [vmem:[%s1623 + $0x20] sm:$0xff]
        %v1629 = vld [vmem:[%s1623 + $0x28] sm:$0xff]
        %v1630 = vld [vmem:[%s1623 + $0x30] sm:$0xff]
        %v1631 = vld [vmem:[%s1623 + $0x38] sm:$0xff]
        %v1632 = vld [vmem:[%s1623 + $0x40] sm:$0xff]
        %v1633 = vld [vmem:[%s1623 + $0x48] sm:$0xff]
        %v1634 = vld [vmem:[%s1623 + $0x50] sm:$0xff]
        %v1635 = vld [vmem:[%s1623 + $0x58] sm:$0xff]
        %v1636 = vld [vmem:[%s1623 + $0x60] sm:$0xff]
        %v1637 = vld [vmem:[%s1623 + $0x68] sm:$0xff]
        %v1638 = vld [vmem:[%s1623 + $0x70] sm:$0xff]
        %v1639 = vld [vmem:[%s1623 + $0x78] sm:$0xff]
        %1640 = vmatpush.msra.mxu0 %v1639
        %1641 = vmatpush.msra.mxu0 %v1638
        %1642 = vmatpush.msra.mxu0 %v1637
        %1643 = vmatpush.msra.mxu0 %v1636
        %1644 = vmatpush.msra.mxu0 %v1635
        %1645 = vmatpush.msra.mxu0 %v1634
        %1646 = vmatpush.msra.mxu0 %v1633
        %1647 = vmatpush.msra.mxu0 %v1632
        %1648 = vmatpush.msra.mxu0 %v1631
        %1649 = vmatpush.msra.mxu0 %v1630
        %1650 = vmatpush.msra.mxu0 %v1629
        %1651 = vmatpush.msra.mxu0 %v1628
        %1652 = vmatpush.msra.mxu0 %v1627
        %1653 = vmatpush.msra.mxu0 %v1626
        %1654 = vmatpush.msra.mxu0 %v1625
        %1655 = vmatpush.msra.mxu0 %v1624
        %1656 = vmatmul.f32.gmra.mxu0 %v1198
        %v1657 = vpop.f32.mrf.mxu0
        %v1658 = vadd.f32 0.0, %v1657
        %1659 = vdwg.mxu0
        %v1660 = vadd.f32 %v1538, %v1658
        %1661 = vmatpush.msra.mxu0 %v1639
        %1662 = vmatpush.msra.mxu0 %v1638
        %1663 = vmatpush.msra.mxu0 %v1637
        %1664 = vmatpush.msra.mxu0 %v1636
        %1665 = vmatpush.msra.mxu0 %v1635
        %1666 = vmatpush.msra.mxu0 %v1634
        %1667 = vmatpush.msra.mxu0 %v1633
        %1668 = vmatpush.msra.mxu0 %v1632
        %1669 = vmatpush.msra.mxu0 %v1631
        %1670 = vmatpush.msra.mxu0 %v1630
        %1671 = vmatpush.msra.mxu0 %v1629
        %1672 = vmatpush.msra.mxu0 %v1628
        %1673 = vmatpush.msra.mxu0 %v1627
        %1674 = vmatpush.msra.mxu0 %v1626
        %1675 = vmatpush.msra.mxu0 %v1625
        %1676 = vmatpush.msra.mxu0 %v1624
        %1677 = vmatmul.f32.gmra.mxu0 %v1241
        %v1678 = vpop.f32.mrf.mxu0
        %v1679 = vadd.f32 0.0, %v1678
        %1680 = vdwg.mxu0
        %v1681 = vadd.f32 %v1559, %v1679
        %1682 = vmatpush.msra.mxu0 %v1639
        %1683 = vmatpush.msra.mxu0 %v1638
        %1684 = vmatpush.msra.mxu0 %v1637
        %1685 = vmatpush.msra.mxu0 %v1636
        %1686 = vmatpush.msra.mxu0 %v1635
        %1687 = vmatpush.msra.mxu0 %v1634
        %1688 = vmatpush.msra.mxu0 %v1633
        %1689 = vmatpush.msra.mxu0 %v1632
        %1690 = vmatpush.msra.mxu0 %v1631
        %1691 = vmatpush.msra.mxu0 %v1630
        %1692 = vmatpush.msra.mxu0 %v1629
        %1693 = vmatpush.msra.mxu0 %v1628
        %1694 = vmatpush.msra.mxu0 %v1627
        %1695 = vmatpush.msra.mxu0 %v1626
        %1696 = vmatpush.msra.mxu0 %v1625
        %1697 = vmatpush.msra.mxu0 %v1624
        %1698 = vmatmul.f32.gmra.mxu0 %v1284
        %v1699 = vpop.f32.mrf.mxu0
        %v1700 = vadd.f32 0.0, %v1699
        %1701 = vdwg.mxu0
        %v1702 = vadd.f32 %v1580, %v1700
        %1703 = vmatpush.msra.mxu0 %v1639
        %1704 = vmatpush.msra.mxu0 %v1638
        %1705 = vmatpush.msra.mxu0 %v1637
        %1706 = vmatpush.msra.mxu0 %v1636
        %1707 = vmatpush.msra.mxu0 %v1635
        %1708 = vmatpush.msra.mxu0 %v1634
        %1709 = vmatpush.msra.mxu0 %v1633
        %1710 = vmatpush.msra.mxu0 %v1632
        %1711 = vmatpush.msra.mxu0 %v1631
        %1712 = vmatpush.msra.mxu0 %v1630
        %1713 = vmatpush.msra.mxu0 %v1629
        %1714 = vmatpush.msra.mxu0 %v1628
        %1715 = vmatpush.msra.mxu0 %v1627
        %1716 = vmatpush.msra.mxu0 %v1626
        %1717 = vmatpush.msra.mxu0 %v1625
        %1718 = vmatpush.msra.mxu0 %v1624
        %1719 = vmatmul.f32.gmra.mxu0 %v1327
        %v1720 = vpop.f32.mrf.mxu0
        %v1721 = vadd.f32 0.0, %v1720
        %1722 = vdwg.mxu0
        %v1723 = vadd.f32 %v1601, %v1721
        %v1725 = vrot.slane %v1117, 1
        %1727 = vmatpush.msra.mxu0 %v1639
        %1728 = vmatpush.msra.mxu0 %v1638
        %1729 = vmatpush.msra.mxu0 %v1637
        %1730 = vmatpush.msra.mxu0 %v1636
        %1731 = vmatpush.msra.mxu0 %v1635
        %1732 = vmatpush.msra.mxu0 %v1634
        %1733 = vmatpush.msra.mxu0 %v1633
        %1734 = vmatpush.msra.mxu0 %v1632
        %1735 = vmatpush.msra.mxu0 %v1631
        %1736 = vmatpush.msra.mxu0 %v1630
        %1737 = vmatpush.msra.mxu0 %v1629
        %1738 = vmatpush.msra.mxu0 %v1628
        %1739 = vmatpush.msra.mxu0 %v1627
        %1740 = vmatpush.msra.mxu0 %v1626
        %1741 = vmatpush.msra.mxu0 %v1625
        %1742 = vmatpush.msra.mxu0 %v1624
        %1743 = vmatmul.f32.gmra.mxu0 %v1725
        %v1744 = vpop.f32.mrf.mxu0
        %v1745 = vadd.f32 0.0, %v1744
        %1746 = vdwg.mxu0
        %v1747 = vadd.f32 %v1622, %v1745
        %s1748 = scalar_lea.vmem [#allocation7], 640
        %v1749 = vld [vmem:[%s1748] sm:$0xff]
        %v1750 = vld [vmem:[%s1748 + $0x8] sm:$0xff]
        %v1751 = vld [vmem:[%s1748 + $0x10] sm:$0xff]
        %v1752 = vld [vmem:[%s1748 + $0x18] sm:$0xff]
        %v1753 = vld [vmem:[%s1748 + $0x20] sm:$0xff]
        %v1754 = vld [vmem:[%s1748 + $0x28] sm:$0xff]
        %v1755 = vld [vmem:[%s1748 + $0x30] sm:$0xff]
        %v1756 = vld [vmem:[%s1748 + $0x38] sm:$0xff]
        %v1757 = vld [vmem:[%s1748 + $0x40] sm:$0xff]
        %v1758 = vld [vmem:[%s1748 + $0x48] sm:$0xff]
        %v1759 = vld [vmem:[%s1748 + $0x50] sm:$0xff]
        %v1760 = vld [vmem:[%s1748 + $0x58] sm:$0xff]
        %v1761 = vld [vmem:[%s1748 + $0x60] sm:$0xff]
        %v1762 = vld [vmem:[%s1748 + $0x68] sm:$0xff]
        %v1763 = vld [vmem:[%s1748 + $0x70] sm:$0xff]
        %v1764 = vld [vmem:[%s1748 + $0x78] sm:$0xff]
        %1765 = vmatpush.msra.mxu0 %v1764
        %1766 = vmatpush.msra.mxu0 %v1763
        %1767 = vmatpush.msra.mxu0 %v1762
        %1768 = vmatpush.msra.mxu0 %v1761
        %1769 = vmatpush.msra.mxu0 %v1760
        %1770 = vmatpush.msra.mxu0 %v1759
        %1771 = vmatpush.msra.mxu0 %v1758
        %1772 = vmatpush.msra.mxu0 %v1757
        %1773 = vmatpush.msra.mxu0 %v1756
        %1774 = vmatpush.msra.mxu0 %v1755
        %1775 = vmatpush.msra.mxu0 %v1754
        %1776 = vmatpush.msra.mxu0 %v1753
        %1777 = vmatpush.msra.mxu0 %v1752
        %1778 = vmatpush.msra.mxu0 %v1751
        %1779 = vmatpush.msra.mxu0 %v1750
        %1780 = vmatpush.msra.mxu0 %v1749
        %1781 = vmatmul.f32.gmra.mxu0 %v1409
        %v1782 = vpop.f32.mrf.mxu0
        %v1783 = vadd.f32 0.0, %v1782
        %1784 = vdwg.mxu0
        %v1785 = vadd.f32 %v1660, %v1783
        %1786 = vmatpush.msra.mxu0 %v1764
        %1787 = vmatpush.msra.mxu0 %v1763
        %1788 = vmatpush.msra.mxu0 %v1762
        %1789 = vmatpush.msra.mxu0 %v1761
        %1790 = vmatpush.msra.mxu0 %v1760
        %1791 = vmatpush.msra.mxu0 %v1759
        %1792 = vmatpush.msra.mxu0 %v1758
        %1793 = vmatpush.msra.mxu0 %v1757
        %1794 = vmatpush.msra.mxu0 %v1756
        %1795 = vmatpush.msra.mxu0 %v1755
        %1796 = vmatpush.msra.mxu0 %v1754
        %1797 = vmatpush.msra.mxu0 %v1753
        %1798 = vmatpush.msra.mxu0 %v1752
        %1799 = vmatpush.msra.mxu0 %v1751
        %1800 = vmatpush.msra.mxu0 %v1750
        %1801 = vmatpush.msra.mxu0 %v1749
        %1802 = vmatmul.f32.gmra.mxu0 %v1432
        %v1803 = vpop.f32.mrf.mxu0
        %v1804 = vadd.f32 0.0, %v1803
        %1805 = vdwg.mxu0
        %v1806 = vadd.f32 %v1681, %v1804
        %1807 = vmatpush.msra.mxu0 %v1764
        %1808 = vmatpush.msra.mxu0 %v1763
        %1809 = vmatpush.msra.mxu0 %v1762
        %1810 = vmatpush.msra.mxu0 %v1761
        %1811 = vmatpush.msra.mxu0 %v1760
        %1812 = vmatpush.msra.mxu0 %v1759
        %1813 = vmatpush.msra.mxu0 %v1758
        %1814 = vmatpush.msra.mxu0 %v1757
        %1815 = vmatpush.msra.mxu0 %v1756
        %1816 = vmatpush.msra.mxu0 %v1755
        %1817 = vmatpush.msra.mxu0 %v1754
        %1818 = vmatpush.msra.mxu0 %v1753
        %1819 = vmatpush.msra.mxu0 %v1752
        %1820 = vmatpush.msra.mxu0 %v1751
        %1821 = vmatpush.msra.mxu0 %v1750
        %1822 = vmatpush.msra.mxu0 %v1749
        %1823 = vmatmul.f32.gmra.mxu0 %v1455
        %v1824 = vpop.f32.mrf.mxu0
        %v1825 = vadd.f32 0.0, %v1824
        %1826 = vdwg.mxu0
        %v1827 = vadd.f32 %v1702, %v1825
        %1828 = vmatpush.msra.mxu0 %v1764
        %1829 = vmatpush.msra.mxu0 %v1763
        %1830 = vmatpush.msra.mxu0 %v1762
        %1831 = vmatpush.msra.mxu0 %v1761
        %1832 = vmatpush.msra.mxu0 %v1760
        %1833 = vmatpush.msra.mxu0 %v1759
        %1834 = vmatpush.msra.mxu0 %v1758
        %1835 = vmatpush.msra.mxu0 %v1757
        %1836 = vmatpush.msra.mxu0 %v1756
        %1837 = vmatpush.msra.mxu0 %v1755
        %1838 = vmatpush.msra.mxu0 %v1754
        %1839 = vmatpush.msra.mxu0 %v1753
        %1840 = vmatpush.msra.mxu0 %v1752
        %1841 = vmatpush.msra.mxu0 %v1751
        %1842 = vmatpush.msra.mxu0 %v1750
        %1843 = vmatpush.msra.mxu0 %v1749
        %1844 = vmatmul.f32.gmra.mxu0 %v1478
        %v1845 = vpop.f32.mrf.mxu0
        %v1846 = vadd.f32 0.0, %v1845
        %1847 = vdwg.mxu0
        %v1848 = vadd.f32 %v1723, %v1846
        %v1849 = vrot.slane %v1117, 2
        %1851 = vmatpush.msra.mxu0 %v1764
        %1852 = vmatpush.msra.mxu0 %v1763
        %1853 = vmatpush.msra.mxu0 %v1762
        %1854 = vmatpush.msra.mxu0 %v1761
        %1855 = vmatpush.msra.mxu0 %v1760
        %1856 = vmatpush.msra.mxu0 %v1759
        %1857 = vmatpush.msra.mxu0 %v1758
        %1858 = vmatpush.msra.mxu0 %v1757
        %1859 = vmatpush.msra.mxu0 %v1756
        %1860 = vmatpush.msra.mxu0 %v1755
        %1861 = vmatpush.msra.mxu0 %v1754
        %1862 = vmatpush.msra.mxu0 %v1753
        %1863 = vmatpush.msra.mxu0 %v1752
        %1864 = vmatpush.msra.mxu0 %v1751
        %1865 = vmatpush.msra.mxu0 %v1750
        %1866 = vmatpush.msra.mxu0 %v1749
        %1867 = vmatmul.f32.gmra.mxu0 %v1849
        %v1868 = vpop.f32.mrf.mxu0
        %v1869 = vadd.f32 0.0, %v1868
        %1870 = vdwg.mxu0
        %v1871 = vadd.f32 %v1747, %v1869
        %s1872 = scalar_lea.vmem [#allocation7], 768
        %v1873 = vld [vmem:[%s1872] sm:$0xff]
        %v1874 = vld [vmem:[%s1872 + $0x8] sm:$0xff]
        %v1875 = vld [vmem:[%s1872 + $0x10] sm:$0xff]
        %v1876 = vld [vmem:[%s1872 + $0x18] sm:$0xff]
        %v1877 = vld [vmem:[%s1872 + $0x20] sm:$0xff]
        %v1878 = vld [vmem:[%s1872 + $0x28] sm:$0xff]
        %v1879 = vld [vmem:[%s1872 + $0x30] sm:$0xff]
        %v1880 = vld [vmem:[%s1872 + $0x38] sm:$0xff]
        %v1881 = vld [vmem:[%s1872 + $0x40] sm:$0xff]
        %v1882 = vld [vmem:[%s1872 + $0x48] sm:$0xff]
        %v1883 = vld [vmem:[%s1872 + $0x50] sm:$0xff]
        %v1884 = vld [vmem:[%s1872 + $0x58] sm:$0xff]
        %v1885 = vld [vmem:[%s1872 + $0x60] sm:$0xff]
        %v1886 = vld [vmem:[%s1872 + $0x68] sm:$0xff]
        %v1887 = vld [vmem:[%s1872 + $0x70] sm:$0xff]
        %v1888 = vld [vmem:[%s1872 + $0x78] sm:$0xff]
        %1889 = vmatpush.msra.mxu0 %v1888
        %1890 = vmatpush.msra.mxu0 %v1887
        %1891 = vmatpush.msra.mxu0 %v1886
        %1892 = vmatpush.msra.mxu0 %v1885
        %1893 = vmatpush.msra.mxu0 %v1884
        %1894 = vmatpush.msra.mxu0 %v1883
        %1895 = vmatpush.msra.mxu0 %v1882
        %1896 = vmatpush.msra.mxu0 %v1881
        %1897 = vmatpush.msra.mxu0 %v1880
        %1898 = vmatpush.msra.mxu0 %v1879
        %1899 = vmatpush.msra.mxu0 %v1878
        %1900 = vmatpush.msra.mxu0 %v1877
        %1901 = vmatpush.msra.mxu0 %v1876
        %1902 = vmatpush.msra.mxu0 %v1875
        %1903 = vmatpush.msra.mxu0 %v1874
        %1904 = vmatpush.msra.mxu0 %v1873
        %1905 = vmatmul.f32.gmra.mxu0 %v1111
        %v1906 = vpop.f32.mrf.mxu0
        %v1907 = vadd.f32 0.0, %v1906
        %1908 = vdwg.mxu0
        %v1909 = vadd.f32 %v1785, %v1907
        %1910 = vmatpush.msra.mxu0 %v1888
        %1911 = vmatpush.msra.mxu0 %v1887
        %1912 = vmatpush.msra.mxu0 %v1886
        %1913 = vmatpush.msra.mxu0 %v1885
        %1914 = vmatpush.msra.mxu0 %v1884
        %1915 = vmatpush.msra.mxu0 %v1883
        %1916 = vmatpush.msra.mxu0 %v1882
        %1917 = vmatpush.msra.mxu0 %v1881
        %1918 = vmatpush.msra.mxu0 %v1880
        %1919 = vmatpush.msra.mxu0 %v1879
        %1920 = vmatpush.msra.mxu0 %v1878
        %1921 = vmatpush.msra.mxu0 %v1877
        %1922 = vmatpush.msra.mxu0 %v1876
        %1923 = vmatpush.msra.mxu0 %v1875
        %1924 = vmatpush.msra.mxu0 %v1874
        %1925 = vmatpush.msra.mxu0 %v1873
        %1926 = vmatmul.f32.gmra.mxu0 %v1113
        %v1927 = vpop.f32.mrf.mxu0
        %v1928 = vadd.f32 0.0, %v1927
        %1929 = vdwg.mxu0
        %v1930 = vadd.f32 %v1806, %v1928
        %1931 = vmatpush.msra.mxu0 %v1888
        %1932 = vmatpush.msra.mxu0 %v1887
        %1933 = vmatpush.msra.mxu0 %v1886
        %1934 = vmatpush.msra.mxu0 %v1885
        %1935 = vmatpush.msra.mxu0 %v1884
        %1936 = vmatpush.msra.mxu0 %v1883
        %1937 = vmatpush.msra.mxu0 %v1882
        %1938 = vmatpush.msra.mxu0 %v1881
        %1939 = vmatpush.msra.mxu0 %v1880
        %1940 = vmatpush.msra.mxu0 %v1879
        %1941 = vmatpush.msra.mxu0 %v1878
        %1942 = vmatpush.msra.mxu0 %v1877
        %1943 = vmatpush.msra.mxu0 %v1876
        %1944 = vmatpush.msra.mxu0 %v1875
        %1945 = vmatpush.msra.mxu0 %v1874
        %1946 = vmatpush.msra.mxu0 %v1873
        %1947 = vmatmul.f32.gmra.mxu0 %v1115
        %v1948 = vpop.f32.mrf.mxu0
        %v1949 = vadd.f32 0.0, %v1948
        %1950 = vdwg.mxu0
        %v1951 = vadd.f32 %v1827, %v1949
        %1952 = vmatpush.msra.mxu0 %v1888
        %1953 = vmatpush.msra.mxu0 %v1887
        %1954 = vmatpush.msra.mxu0 %v1886
        %1955 = vmatpush.msra.mxu0 %v1885
        %1956 = vmatpush.msra.mxu0 %v1884
        %1957 = vmatpush.msra.mxu0 %v1883
        %1958 = vmatpush.msra.mxu0 %v1882
        %1959 = vmatpush.msra.mxu0 %v1881
        %1960 = vmatpush.msra.mxu0 %v1880
        %1961 = vmatpush.msra.mxu0 %v1879
        %1962 = vmatpush.msra.mxu0 %v1878
        %1963 = vmatpush.msra.mxu0 %v1877
        %1964 = vmatpush.msra.mxu0 %v1876
        %1965 = vmatpush.msra.mxu0 %v1875
        %1966 = vmatpush.msra.mxu0 %v1874
        %1967 = vmatpush.msra.mxu0 %v1873
        %1968 = vmatmul.f32.gmra.mxu0 %v1117
        %v1969 = vpop.f32.mrf.mxu0
        %v1970 = vadd.f32 0.0, %v1969
        %1971 = vdwg.mxu0
        %v1972 = vadd.f32 %v1848, %v1970
        %1973 = vmatpush.msra.mxu0 %v1888
        %1974 = vmatpush.msra.mxu0 %v1887
        %1975 = vmatpush.msra.mxu0 %v1886
        %1976 = vmatpush.msra.mxu0 %v1885
        %1977 = vmatpush.msra.mxu0 %v1884
        %1978 = vmatpush.msra.mxu0 %v1883
        %1979 = vmatpush.msra.mxu0 %v1882
        %1980 = vmatpush.msra.mxu0 %v1881
        %1981 = vmatpush.msra.mxu0 %v1880
        %1982 = vmatpush.msra.mxu0 %v1879
        %1983 = vmatpush.msra.mxu0 %v1878
        %1984 = vmatpush.msra.mxu0 %v1877
        %1985 = vmatpush.msra.mxu0 %v1876
        %1986 = vmatpush.msra.mxu0 %v1875
        %1987 = vmatpush.msra.mxu0 %v1874
        %1988 = vmatpush.msra.mxu0 %v1873
        %1989 = vmatmul.f32.gmra.mxu0 %v1119
        %v1990 = vpop.f32.mrf.mxu0
        %v1991 = vadd.f32 0.0, %v1990
        %1992 = vdwg.mxu0
        %v1993 = vadd.f32 %v1871, %v1991
        %s1994 = scalar_lea.vmem [#allocation7], 896
        %v1995 = vld [vmem:[%s1994] sm:$0xff]
        %v1996 = vld [vmem:[%s1994 + $0x8] sm:$0xff]
        %v1997 = vld [vmem:[%s1994 + $0x10] sm:$0xff]
        %v1998 = vld [vmem:[%s1994 + $0x18] sm:$0xff]
        %v1999 = vld [vmem:[%s1994 + $0x20] sm:$0xff]
        %v2000 = vld [vmem:[%s1994 + $0x28] sm:$0xff]
        %v2001 = vld [vmem:[%s1994 + $0x30] sm:$0xff]
        %v2002 = vld [vmem:[%s1994 + $0x38] sm:$0xff]
        %v2003 = vld [vmem:[%s1994 + $0x40] sm:$0xff]
        %v2004 = vld [vmem:[%s1994 + $0x48] sm:$0xff]
        %v2005 = vld [vmem:[%s1994 + $0x50] sm:$0xff]
        %v2006 = vld [vmem:[%s1994 + $0x58] sm:$0xff]
        %v2007 = vld [vmem:[%s1994 + $0x60] sm:$0xff]
        %v2008 = vld [vmem:[%s1994 + $0x68] sm:$0xff]
        %v2009 = vld [vmem:[%s1994 + $0x70] sm:$0xff]
        %v2010 = vld [vmem:[%s1994 + $0x78] sm:$0xff]
        %2011 = vmatpush.msra.mxu0 %v2010
        %2012 = vmatpush.msra.mxu0 %v2009
        %2013 = vmatpush.msra.mxu0 %v2008
        %2014 = vmatpush.msra.mxu0 %v2007
        %2015 = vmatpush.msra.mxu0 %v2006
        %2016 = vmatpush.msra.mxu0 %v2005
        %2017 = vmatpush.msra.mxu0 %v2004
        %2018 = vmatpush.msra.mxu0 %v2003
        %2019 = vmatpush.msra.mxu0 %v2002
        %2020 = vmatpush.msra.mxu0 %v2001
        %2021 = vmatpush.msra.mxu0 %v2000
        %2022 = vmatpush.msra.mxu0 %v1999
        %2023 = vmatpush.msra.mxu0 %v1998
        %2024 = vmatpush.msra.mxu0 %v1997
        %2025 = vmatpush.msra.mxu0 %v1996
        %2026 = vmatpush.msra.mxu0 %v1995
        %2027 = vmatmul.f32.gmra.mxu0 %v1241
        %v2028 = vpop.f32.mrf.mxu0
        %v2029 = vadd.f32 0.0, %v2028
        %2030 = vdwg.mxu0
        %v2031 = vadd.f32 %v1909, %v2029
        %2032 = vmatpush.msra.mxu0 %v2010
        %2033 = vmatpush.msra.mxu0 %v2009
        %2034 = vmatpush.msra.mxu0 %v2008
        %2035 = vmatpush.msra.mxu0 %v2007
        %2036 = vmatpush.msra.mxu0 %v2006
        %2037 = vmatpush.msra.mxu0 %v2005
        %2038 = vmatpush.msra.mxu0 %v2004
        %2039 = vmatpush.msra.mxu0 %v2003
        %2040 = vmatpush.msra.mxu0 %v2002
        %2041 = vmatpush.msra.mxu0 %v2001
        %2042 = vmatpush.msra.mxu0 %v2000
        %2043 = vmatpush.msra.mxu0 %v1999
        %2044 = vmatpush.msra.mxu0 %v1998
        %2045 = vmatpush.msra.mxu0 %v1997
        %2046 = vmatpush.msra.mxu0 %v1996
        %2047 = vmatpush.msra.mxu0 %v1995
        %2048 = vmatmul.f32.gmra.mxu0 %v1284
        %v2049 = vpop.f32.mrf.mxu0
        %v2050 = vadd.f32 0.0, %v2049
        %2051 = vdwg.mxu0
        %v2052 = vadd.f32 %v1930, %v2050
        %2053 = vmatpush.msra.mxu0 %v2010
        %2054 = vmatpush.msra.mxu0 %v2009
        %2055 = vmatpush.msra.mxu0 %v2008
        %2056 = vmatpush.msra.mxu0 %v2007
        %2057 = vmatpush.msra.mxu0 %v2006
        %2058 = vmatpush.msra.mxu0 %v2005
        %2059 = vmatpush.msra.mxu0 %v2004
        %2060 = vmatpush.msra.mxu0 %v2003
        %2061 = vmatpush.msra.mxu0 %v2002
        %2062 = vmatpush.msra.mxu0 %v2001
        %2063 = vmatpush.msra.mxu0 %v2000
        %2064 = vmatpush.msra.mxu0 %v1999
        %2065 = vmatpush.msra.mxu0 %v1998
        %2066 = vmatpush.msra.mxu0 %v1997
        %2067 = vmatpush.msra.mxu0 %v1996
        %2068 = vmatpush.msra.mxu0 %v1995
        %2069 = vmatmul.f32.gmra.mxu0 %v1327
        %v2070 = vpop.f32.mrf.mxu0
        %v2071 = vadd.f32 0.0, %v2070
        %2072 = vdwg.mxu0
        %v2073 = vadd.f32 %v1951, %v2071
        %2074 = vmatpush.msra.mxu0 %v2010
        %2075 = vmatpush.msra.mxu0 %v2009
        %2076 = vmatpush.msra.mxu0 %v2008
        %2077 = vmatpush.msra.mxu0 %v2007
        %2078 = vmatpush.msra.mxu0 %v2006
        %2079 = vmatpush.msra.mxu0 %v2005
        %2080 = vmatpush.msra.mxu0 %v2004
        %2081 = vmatpush.msra.mxu0 %v2003
        %2082 = vmatpush.msra.mxu0 %v2002
        %2083 = vmatpush.msra.mxu0 %v2001
        %2084 = vmatpush.msra.mxu0 %v2000
        %2085 = vmatpush.msra.mxu0 %v1999
        %2086 = vmatpush.msra.mxu0 %v1998
        %2087 = vmatpush.msra.mxu0 %v1997
        %2088 = vmatpush.msra.mxu0 %v1996
        %2089 = vmatpush.msra.mxu0 %v1995
        %2090 = vmatmul.f32.gmra.mxu0 %v1725
        %v2091 = vpop.f32.mrf.mxu0
        %v2092 = vadd.f32 0.0, %v2091
        %2093 = vdwg.mxu0
        %v2094 = vadd.f32 %v1972, %v2092
        %v2096 = vrot.slane %v1119, 1
        %2098 = vmatpush.msra.mxu0 %v2010
        %2099 = vmatpush.msra.mxu0 %v2009
        %2100 = vmatpush.msra.mxu0 %v2008
        %2101 = vmatpush.msra.mxu0 %v2007
        %2102 = vmatpush.msra.mxu0 %v2006
        %2103 = vmatpush.msra.mxu0 %v2005
        %2104 = vmatpush.msra.mxu0 %v2004
        %2105 = vmatpush.msra.mxu0 %v2003
        %2106 = vmatpush.msra.mxu0 %v2002
        %2107 = vmatpush.msra.mxu0 %v2001
        %2108 = vmatpush.msra.mxu0 %v2000
        %2109 = vmatpush.msra.mxu0 %v1999
        %2110 = vmatpush.msra.mxu0 %v1998
        %2111 = vmatpush.msra.mxu0 %v1997
        %2112 = vmatpush.msra.mxu0 %v1996
        %2113 = vmatpush.msra.mxu0 %v1995
        %2114 = vmatmul.f32.gmra.mxu0 %v2096
        %v2115 = vpop.f32.mrf.mxu0
        %v2116 = vadd.f32 0.0, %v2115
        %2117 = vdwg.mxu0
        %v2118 = vadd.f32 %v1993, %v2116
        %s2119 = scalar_lea.vmem [#allocation7], 1024
        %v2120 = vld [vmem:[%s2119] sm:$0xff]
        %v2121 = vld [vmem:[%s2119 + $0x8] sm:$0xff]
        %v2122 = vld [vmem:[%s2119 + $0x10] sm:$0xff]
        %v2123 = vld [vmem:[%s2119 + $0x18] sm:$0xff]
        %v2124 = vld [vmem:[%s2119 + $0x20] sm:$0xff]
        %v2125 = vld [vmem:[%s2119 + $0x28] sm:$0xff]
        %v2126 = vld [vmem:[%s2119 + $0x30] sm:$0xff]
        %v2127 = vld [vmem:[%s2119 + $0x38] sm:$0xff]
        %v2128 = vld [vmem:[%s2119 + $0x40] sm:$0xff]
        %v2129 = vld [vmem:[%s2119 + $0x48] sm:$0xff]
        %v2130 = vld [vmem:[%s2119 + $0x50] sm:$0xff]
        %v2131 = vld [vmem:[%s2119 + $0x58] sm:$0xff]
        %v2132 = vld [vmem:[%s2119 + $0x60] sm:$0xff]
        %v2133 = vld [vmem:[%s2119 + $0x68] sm:$0xff]
        %v2134 = vld [vmem:[%s2119 + $0x70] sm:$0xff]
        %v2135 = vld [vmem:[%s2119 + $0x78] sm:$0xff]
        %2136 = vmatpush.msra.mxu0 %v2135
        %2137 = vmatpush.msra.mxu0 %v2134
        %2138 = vmatpush.msra.mxu0 %v2133
        %2139 = vmatpush.msra.mxu0 %v2132
        %2140 = vmatpush.msra.mxu0 %v2131
        %2141 = vmatpush.msra.mxu0 %v2130
        %2142 = vmatpush.msra.mxu0 %v2129
        %2143 = vmatpush.msra.mxu0 %v2128
        %2144 = vmatpush.msra.mxu0 %v2127
        %2145 = vmatpush.msra.mxu0 %v2126
        %2146 = vmatpush.msra.mxu0 %v2125
        %2147 = vmatpush.msra.mxu0 %v2124
        %2148 = vmatpush.msra.mxu0 %v2123
        %2149 = vmatpush.msra.mxu0 %v2122
        %2150 = vmatpush.msra.mxu0 %v2121
        %2151 = vmatpush.msra.mxu0 %v2120
        %2152 = vmatmul.f32.gmra.mxu0 %v1432
        %v2153 = vpop.f32.mrf.mxu0
        %v2154 = vadd.f32 0.0, %v2153
        %2155 = vdwg.mxu0
        %v2156 = vadd.f32 %v2031, %v2154
        %2157 = vmatpush.msra.mxu0 %v2135
        %2158 = vmatpush.msra.mxu0 %v2134
        %2159 = vmatpush.msra.mxu0 %v2133
        %2160 = vmatpush.msra.mxu0 %v2132
        %2161 = vmatpush.msra.mxu0 %v2131
        %2162 = vmatpush.msra.mxu0 %v2130
        %2163 = vmatpush.msra.mxu0 %v2129
        %2164 = vmatpush.msra.mxu0 %v2128
        %2165 = vmatpush.msra.mxu0 %v2127
        %2166 = vmatpush.msra.mxu0 %v2126
        %2167 = vmatpush.msra.mxu0 %v2125
        %2168 = vmatpush.msra.mxu0 %v2124
        %2169 = vmatpush.msra.mxu0 %v2123
        %2170 = vmatpush.msra.mxu0 %v2122
        %2171 = vmatpush.msra.mxu0 %v2121
        %2172 = vmatpush.msra.mxu0 %v2120
        %2173 = vmatmul.f32.gmra.mxu0 %v1455
        %v2174 = vpop.f32.mrf.mxu0
        %v2175 = vadd.f32 0.0, %v2174
        %2176 = vdwg.mxu0
        %v2177 = vadd.f32 %v2052, %v2175
        %2178 = vmatpush.msra.mxu0 %v2135
        %2179 = vmatpush.msra.mxu0 %v2134
        %2180 = vmatpush.msra.mxu0 %v2133
        %2181 = vmatpush.msra.mxu0 %v2132
        %2182 = vmatpush.msra.mxu0 %v2131
        %2183 = vmatpush.msra.mxu0 %v2130
        %2184 = vmatpush.msra.mxu0 %v2129
        %2185 = vmatpush.msra.mxu0 %v2128
        %2186 = vmatpush.msra.mxu0 %v2127
        %2187 = vmatpush.msra.mxu0 %v2126
        %2188 = vmatpush.msra.mxu0 %v2125
        %2189 = vmatpush.msra.mxu0 %v2124
        %2190 = vmatpush.msra.mxu0 %v2123
        %2191 = vmatpush.msra.mxu0 %v2122
        %2192 = vmatpush.msra.mxu0 %v2121
        %2193 = vmatpush.msra.mxu0 %v2120
        %2194 = vmatmul.f32.gmra.mxu0 %v1478
        %v2195 = vpop.f32.mrf.mxu0
        %v2196 = vadd.f32 0.0, %v2195
        %2197 = vdwg.mxu0
        %v2198 = vadd.f32 %v2073, %v2196
        %2199 = vmatpush.msra.mxu0 %v2135
        %2200 = vmatpush.msra.mxu0 %v2134
        %2201 = vmatpush.msra.mxu0 %v2133
        %2202 = vmatpush.msra.mxu0 %v2132
        %2203 = vmatpush.msra.mxu0 %v2131
        %2204 = vmatpush.msra.mxu0 %v2130
        %2205 = vmatpush.msra.mxu0 %v2129
        %2206 = vmatpush.msra.mxu0 %v2128
        %2207 = vmatpush.msra.mxu0 %v2127
        %2208 = vmatpush.msra.mxu0 %v2126
        %2209 = vmatpush.msra.mxu0 %v2125
        %2210 = vmatpush.msra.mxu0 %v2124
        %2211 = vmatpush.msra.mxu0 %v2123
        %2212 = vmatpush.msra.mxu0 %v2122
        %2213 = vmatpush.msra.mxu0 %v2121
        %2214 = vmatpush.msra.mxu0 %v2120
        %2215 = vmatmul.f32.gmra.mxu0 %v1849
        %v2216 = vpop.f32.mrf.mxu0
        %v2217 = vadd.f32 0.0, %v2216
        %2218 = vdwg.mxu0
        %v2219 = vadd.f32 %v2094, %v2217
        %v2220 = vrot.slane %v1119, 2
        %2222 = vmatpush.msra.mxu0 %v2135
        %2223 = vmatpush.msra.mxu0 %v2134
        %2224 = vmatpush.msra.mxu0 %v2133
        %2225 = vmatpush.msra.mxu0 %v2132
        %2226 = vmatpush.msra.mxu0 %v2131
        %2227 = vmatpush.msra.mxu0 %v2130
        %2228 = vmatpush.msra.mxu0 %v2129
        %2229 = vmatpush.msra.mxu0 %v2128
        %2230 = vmatpush.msra.mxu0 %v2127
        %2231 = vmatpush.msra.mxu0 %v2126
        %2232 = vmatpush.msra.mxu0 %v2125
        %2233 = vmatpush.msra.mxu0 %v2124
        %2234 = vmatpush.msra.mxu0 %v2123
        %2235 = vmatpush.msra.mxu0 %v2122
        %2236 = vmatpush.msra.mxu0 %v2121
        %2237 = vmatpush.msra.mxu0 %v2120
        %2238 = vmatmul.f32.gmra.mxu0 %v2220
        %v2239 = vpop.f32.mrf.mxu0
        %v2240 = vadd.f32 0.0, %v2239
        %2241 = vdwg.mxu0
        %v2242 = vadd.f32 %v2118, %v2240
        %v2244 = vperm.slane %v1120, 0
        %v2246 = vadd.f32 %v2156, %v2244
        %v2247 = vmax.f32 %v2246, 0.0
        %v2248 = vadd.f32 %v2177, %v2244
        %v2249 = vmax.f32 %v2248, 0.0
        %v2250 = vadd.f32 %v2198, %v2244
        %v2251 = vmax.f32 %v2250, 0.0
        %v2252 = vadd.f32 %v2219, %v2244
        %v2253 = vmax.f32 %v2252, 0.0
        %v2254 = vadd.f32 %v2242, %v2244
        %v2255 = vmax.f32 %v2254, 0.0
        %v2256 = vld [vmem:[#allocation11] sm:$0x1]
        %v2257 = vld [vmem:[#allocation10] sm:$0xff]
        %v2258 = vld [vmem:[#allocation10 + $0x8] sm:$0xff]
        %v2259 = vld [vmem:[#allocation10 + $0x10] sm:$0xff]
        %v2260 = vld [vmem:[#allocation10 + $0x18] sm:$0xff]
        %v2261 = vld [vmem:[#allocation10 + $0x20] sm:$0xff]
        %v2262 = vld [vmem:[#allocation10 + $0x28] sm:$0xff]
        %v2263 = vld [vmem:[#allocation10 + $0x30] sm:$0xff]
        %v2264 = vld [vmem:[#allocation10 + $0x38] sm:$0xff]
        %v2265 = vld [vmem:[#allocation10 + $0x40] sm:$0xff]
        %v2266 = vld [vmem:[#allocation10 + $0x48] sm:$0xff]
        %v2267 = vld [vmem:[#allocation10 + $0x50] sm:$0xff]
        %v2268 = vld [vmem:[#allocation10 + $0x58] sm:$0xff]
        %v2269 = vld [vmem:[#allocation10 + $0x60] sm:$0xff]
        %v2270 = vld [vmem:[#allocation10 + $0x68] sm:$0xff]
        %v2271 = vld [vmem:[#allocation10 + $0x70] sm:$0xff]
        %v2272 = vld [vmem:[#allocation10 + $0x78] sm:$0xff]
        %2273 = vmatpush.msra.mxu0 %v2272
        %2274 = vmatpush.msra.mxu0 %v2271
        %2275 = vmatpush.msra.mxu0 %v2270
        %2276 = vmatpush.msra.mxu0 %v2269
        %2277 = vmatpush.msra.mxu0 %v2268
        %2278 = vmatpush.msra.mxu0 %v2267
        %2279 = vmatpush.msra.mxu0 %v2266
        %2280 = vmatpush.msra.mxu0 %v2265
        %2281 = vmatpush.msra.mxu0 %v2264
        %2282 = vmatpush.msra.mxu0 %v2263
        %2283 = vmatpush.msra.mxu0 %v2262
        %2284 = vmatpush.msra.mxu0 %v2261
        %2285 = vmatpush.msra.mxu0 %v2260
        %2286 = vmatpush.msra.mxu0 %v2259
        %2287 = vmatpush.msra.mxu0 %v2258
        %2288 = vmatpush.msra.mxu0 %v2257
        %2289 = vmatmul.f32.gmra.mxu0 %v2247
        %v2290 = vpop.f32.mrf.mxu0
        %v2291 = vadd.f32 0.0, %v2290
        %2292 = vdwg.mxu0
        %v2293 = vadd.f32 %v2256, %v2291
        %s2294 = scalar_lea.vmem [#allocation10], 128
        %v2295 = vld [vmem:[%s2294] sm:$0xff]
        %v2296 = vld [vmem:[%s2294 + $0x8] sm:$0xff]
        %v2297 = vld [vmem:[%s2294 + $0x10] sm:$0xff]
        %v2298 = vld [vmem:[%s2294 + $0x18] sm:$0xff]
        %v2299 = vld [vmem:[%s2294 + $0x20] sm:$0xff]
        %v2300 = vld [vmem:[%s2294 + $0x28] sm:$0xff]
        %v2301 = vld [vmem:[%s2294 + $0x30] sm:$0xff]
        %v2302 = vld [vmem:[%s2294 + $0x38] sm:$0xff]
        %v2303 = vld [vmem:[%s2294 + $0x40] sm:$0xff]
        %v2304 = vld [vmem:[%s2294 + $0x48] sm:$0xff]
        %v2305 = vld [vmem:[%s2294 + $0x50] sm:$0xff]
        %v2306 = vld [vmem:[%s2294 + $0x58] sm:$0xff]
        %v2307 = vld [vmem:[%s2294 + $0x60] sm:$0xff]
        %v2308 = vld [vmem:[%s2294 + $0x68] sm:$0xff]
        %v2309 = vld [vmem:[%s2294 + $0x70] sm:$0xff]
        %v2310 = vld [vmem:[%s2294 + $0x78] sm:$0xff]
        %v2312 = vrot.slane %v2247, 1
        %2314 = vmatpush.msra.mxu0 %v2310
        %2315 = vmatpush.msra.mxu0 %v2309
        %2316 = vmatpush.msra.mxu0 %v2308
        %2317 = vmatpush.msra.mxu0 %v2307
        %2318 = vmatpush.msra.mxu0 %v2306
        %2319 = vmatpush.msra.mxu0 %v2305
        %2320 = vmatpush.msra.mxu0 %v2304
        %2321 = vmatpush.msra.mxu0 %v2303
        %2322 = vmatpush.msra.mxu0 %v2302
        %2323 = vmatpush.msra.mxu0 %v2301
        %2324 = vmatpush.msra.mxu0 %v2300
        %2325 = vmatpush.msra.mxu0 %v2299
        %2326 = vmatpush.msra.mxu0 %v2298
        %2327 = vmatpush.msra.mxu0 %v2297
        %2328 = vmatpush.msra.mxu0 %v2296
        %2329 = vmatpush.msra.mxu0 %v2295
        %2330 = vmatmul.f32.gmra.mxu0 %v2312
        %v2331 = vpop.f32.mrf.mxu0
        %v2332 = vadd.f32 0.0, %v2331
        %2333 = vdwg.mxu0
        %v2334 = vadd.f32 %v2293, %v2332
        %s2335 = scalar_lea.vmem [#allocation10], 256
        %v2336 = vld [vmem:[%s2335] sm:$0xff]
        %v2337 = vld [vmem:[%s2335 + $0x8] sm:$0xff]
        %v2338 = vld [vmem:[%s2335 + $0x10] sm:$0xff]
        %v2339 = vld [vmem:[%s2335 + $0x18] sm:$0xff]
        %v2340 = vld [vmem:[%s2335 + $0x20] sm:$0xff]
        %v2341 = vld [vmem:[%s2335 + $0x28] sm:$0xff]
        %v2342 = vld [vmem:[%s2335 + $0x30] sm:$0xff]
        %v2343 = vld [vmem:[%s2335 + $0x38] sm:$0xff]
        %v2344 = vld [vmem:[%s2335 + $0x40] sm:$0xff]
        %v2345 = vld [vmem:[%s2335 + $0x48] sm:$0xff]
        %v2346 = vld [vmem:[%s2335 + $0x50] sm:$0xff]
        %v2347 = vld [vmem:[%s2335 + $0x58] sm:$0xff]
        %v2348 = vld [vmem:[%s2335 + $0x60] sm:$0xff]
        %v2349 = vld [vmem:[%s2335 + $0x68] sm:$0xff]
        %v2350 = vld [vmem:[%s2335 + $0x70] sm:$0xff]
        %v2351 = vld [vmem:[%s2335 + $0x78] sm:$0xff]
        %v2352 = vrot.slane %v2247, 2
        %2354 = vmatpush.msra.mxu0 %v2351
        %2355 = vmatpush.msra.mxu0 %v2350
        %2356 = vmatpush.msra.mxu0 %v2349
        %2357 = vmatpush.msra.mxu0 %v2348
        %2358 = vmatpush.msra.mxu0 %v2347
        %2359 = vmatpush.msra.mxu0 %v2346
        %2360 = vmatpush.msra.mxu0 %v2345
        %2361 = vmatpush.msra.mxu0 %v2344
        %2362 = vmatpush.msra.mxu0 %v2343
        %2363 = vmatpush.msra.mxu0 %v2342
        %2364 = vmatpush.msra.mxu0 %v2341
        %2365 = vmatpush.msra.mxu0 %v2340
        %2366 = vmatpush.msra.mxu0 %v2339
        %2367 = vmatpush.msra.mxu0 %v2338
        %2368 = vmatpush.msra.mxu0 %v2337
        %2369 = vmatpush.msra.mxu0 %v2336
        %2370 = vmatmul.f32.gmra.mxu0 %v2352
        %v2371 = vpop.f32.mrf.mxu0
        %v2372 = vadd.f32 0.0, %v2371
        %2373 = vdwg.mxu0
        %v2374 = vadd.f32 %v2334, %v2372
        %s2375 = scalar_lea.vmem [#allocation10], 384
        %v2376 = vld [vmem:[%s2375] sm:$0xff]
        %v2377 = vld [vmem:[%s2375 + $0x8] sm:$0xff]
        %v2378 = vld [vmem:[%s2375 + $0x10] sm:$0xff]
        %v2379 = vld [vmem:[%s2375 + $0x18] sm:$0xff]
        %v2380 = vld [vmem:[%s2375 + $0x20] sm:$0xff]
        %v2381 = vld [vmem:[%s2375 + $0x28] sm:$0xff]
        %v2382 = vld [vmem:[%s2375 + $0x30] sm:$0xff]
        %v2383 = vld [vmem:[%s2375 + $0x38] sm:$0xff]
        %v2384 = vld [vmem:[%s2375 + $0x40] sm:$0xff]
        %v2385 = vld [vmem:[%s2375 + $0x48] sm:$0xff]
        %v2386 = vld [vmem:[%s2375 + $0x50] sm:$0xff]
        %v2387 = vld [vmem:[%s2375 + $0x58] sm:$0xff]
        %v2388 = vld [vmem:[%s2375 + $0x60] sm:$0xff]
        %v2389 = vld [vmem:[%s2375 + $0x68] sm:$0xff]
        %v2390 = vld [vmem:[%s2375 + $0x70] sm:$0xff]
        %v2391 = vld [vmem:[%s2375 + $0x78] sm:$0xff]
        %v2392 = vrot.slane %v2247, 3
        %2394 = vmatpush.msra.mxu0 %v2391
        %2395 = vmatpush.msra.mxu0 %v2390
        %2396 = vmatpush.msra.mxu0 %v2389
        %2397 = vmatpush.msra.mxu0 %v2388
        %2398 = vmatpush.msra.mxu0 %v2387
        %2399 = vmatpush.msra.mxu0 %v2386
        %2400 = vmatpush.msra.mxu0 %v2385
        %2401 = vmatpush.msra.mxu0 %v2384
        %2402 = vmatpush.msra.mxu0 %v2383
        %2403 = vmatpush.msra.mxu0 %v2382
        %2404 = vmatpush.msra.mxu0 %v2381
        %2405 = vmatpush.msra.mxu0 %v2380
        %2406 = vmatpush.msra.mxu0 %v2379
        %2407 = vmatpush.msra.mxu0 %v2378
        %2408 = vmatpush.msra.mxu0 %v2377
        %2409 = vmatpush.msra.mxu0 %v2376
        %2410 = vmatmul.f32.gmra.mxu0 %v2392
        %v2411 = vpop.f32.mrf.mxu0
        %v2412 = vadd.f32 0.0, %v2411
        %2413 = vdwg.mxu0
        %v2414 = vadd.f32 %v2374, %v2412
        %s2415 = scalar_lea.vmem [#allocation10], 512
        %v2416 = vld [vmem:[%s2415] sm:$0xff]
        %v2417 = vld [vmem:[%s2415 + $0x8] sm:$0xff]
        %v2418 = vld [vmem:[%s2415 + $0x10] sm:$0xff]
        %v2419 = vld [vmem:[%s2415 + $0x18] sm:$0xff]
        %v2420 = vld [vmem:[%s2415 + $0x20] sm:$0xff]
        %v2421 = vld [vmem:[%s2415 + $0x28] sm:$0xff]
        %v2422 = vld [vmem:[%s2415 + $0x30] sm:$0xff]
        %v2423 = vld [vmem:[%s2415 + $0x38] sm:$0xff]
        %v2424 = vld [vmem:[%s2415 + $0x40] sm:$0xff]
        %v2425 = vld [vmem:[%s2415 + $0x48] sm:$0xff]
        %v2426 = vld [vmem:[%s2415 + $0x50] sm:$0xff]
        %v2427 = vld [vmem:[%s2415 + $0x58] sm:$0xff]
        %v2428 = vld [vmem:[%s2415 + $0x60] sm:$0xff]
        %v2429 = vld [vmem:[%s2415 + $0x68] sm:$0xff]
        %v2430 = vld [vmem:[%s2415 + $0x70] sm:$0xff]
        %v2431 = vld [vmem:[%s2415 + $0x78] sm:$0xff]
        %v2432 = vrot.slane %v2247, 4
        %2434 = vmatpush.msra.mxu0 %v2431
        %2435 = vmatpush.msra.mxu0 %v2430
        %2436 = vmatpush.msra.mxu0 %v2429
        %2437 = vmatpush.msra.mxu0 %v2428
        %2438 = vmatpush.msra.mxu0 %v2427
        %2439 = vmatpush.msra.mxu0 %v2426
        %2440 = vmatpush.msra.mxu0 %v2425
        %2441 = vmatpush.msra.mxu0 %v2424
        %2442 = vmatpush.msra.mxu0 %v2423
        %2443 = vmatpush.msra.mxu0 %v2422
        %2444 = vmatpush.msra.mxu0 %v2421
        %2445 = vmatpush.msra.mxu0 %v2420
        %2446 = vmatpush.msra.mxu0 %v2419
        %2447 = vmatpush.msra.mxu0 %v2418
        %2448 = vmatpush.msra.mxu0 %v2417
        %2449 = vmatpush.msra.mxu0 %v2416
        %2450 = vmatmul.f32.gmra.mxu0 %v2432
        %v2451 = vpop.f32.mrf.mxu0
        %v2452 = vadd.f32 0.0, %v2451
        %2453 = vdwg.mxu0
        %v2454 = vadd.f32 %v2414, %v2452
        %s2455 = scalar_lea.vmem [#allocation10], 640
        %v2456 = vld [vmem:[%s2455] sm:$0xff]
        %v2457 = vld [vmem:[%s2455 + $0x8] sm:$0xff]
        %v2458 = vld [vmem:[%s2455 + $0x10] sm:$0xff]
        %v2459 = vld [vmem:[%s2455 + $0x18] sm:$0xff]
        %v2460 = vld [vmem:[%s2455 + $0x20] sm:$0xff]
        %v2461 = vld [vmem:[%s2455 + $0x28] sm:$0xff]
        %v2462 = vld [vmem:[%s2455 + $0x30] sm:$0xff]
        %v2463 = vld [vmem:[%s2455 + $0x38] sm:$0xff]
        %v2464 = vld [vmem:[%s2455 + $0x40] sm:$0xff]
        %v2465 = vld [vmem:[%s2455 + $0x48] sm:$0xff]
        %v2466 = vld [vmem:[%s2455 + $0x50] sm:$0xff]
        %v2467 = vld [vmem:[%s2455 + $0x58] sm:$0xff]
        %v2468 = vld [vmem:[%s2455 + $0x60] sm:$0xff]
        %v2469 = vld [vmem:[%s2455 + $0x68] sm:$0xff]
        %v2470 = vld [vmem:[%s2455 + $0x70] sm:$0xff]
        %v2471 = vld [vmem:[%s2455 + $0x78] sm:$0xff]
        %2472 = vmatpush.msra.mxu0 %v2471
        %2473 = vmatpush.msra.mxu0 %v2470
        %2474 = vmatpush.msra.mxu0 %v2469
        %2475 = vmatpush.msra.mxu0 %v2468
        %2476 = vmatpush.msra.mxu0 %v2467
        %2477 = vmatpush.msra.mxu0 %v2466
        %2478 = vmatpush.msra.mxu0 %v2465
        %2479 = vmatpush.msra.mxu0 %v2464
        %2480 = vmatpush.msra.mxu0 %v2463
        %2481 = vmatpush.msra.mxu0 %v2462
        %2482 = vmatpush.msra.mxu0 %v2461
        %2483 = vmatpush.msra.mxu0 %v2460
        %2484 = vmatpush.msra.mxu0 %v2459
        %2485 = vmatpush.msra.mxu0 %v2458
        %2486 = vmatpush.msra.mxu0 %v2457
        %2487 = vmatpush.msra.mxu0 %v2456
        %2488 = vmatmul.f32.gmra.mxu0 %v2249
        %v2489 = vpop.f32.mrf.mxu0
        %v2490 = vadd.f32 0.0, %v2489
        %2491 = vdwg.mxu0
        %v2492 = vadd.f32 %v2454, %v2490
        %s2493 = scalar_lea.vmem [#allocation10], 768
        %v2494 = vld [vmem:[%s2493] sm:$0xff]
        %v2495 = vld [vmem:[%s2493 + $0x8] sm:$0xff]
        %v2496 = vld [vmem:[%s2493 + $0x10] sm:$0xff]
        %v2497 = vld [vmem:[%s2493 + $0x18] sm:$0xff]
        %v2498 = vld [vmem:[%s2493 + $0x20] sm:$0xff]
        %v2499 = vld [vmem:[%s2493 + $0x28] sm:$0xff]
        %v2500 = vld [vmem:[%s2493 + $0x30] sm:$0xff]
        %v2501 = vld [vmem:[%s2493 + $0x38] sm:$0xff]
        %v2502 = vld [vmem:[%s2493 + $0x40] sm:$0xff]
        %v2503 = vld [vmem:[%s2493 + $0x48] sm:$0xff]
        %v2504 = vld [vmem:[%s2493 + $0x50] sm:$0xff]
        %v2505 = vld [vmem:[%s2493 + $0x58] sm:$0xff]
        %v2506 = vld [vmem:[%s2493 + $0x60] sm:$0xff]
        %v2507 = vld [vmem:[%s2493 + $0x68] sm:$0xff]
        %v2508 = vld [vmem:[%s2493 + $0x70] sm:$0xff]
        %v2509 = vld [vmem:[%s2493 + $0x78] sm:$0xff]
        %v2511 = vrot.slane %v2249, 1
        %2513 = vmatpush.msra.mxu0 %v2509
        %2514 = vmatpush.msra.mxu0 %v2508
        %2515 = vmatpush.msra.mxu0 %v2507
        %2516 = vmatpush.msra.mxu0 %v2506
        %2517 = vmatpush.msra.mxu0 %v2505
        %2518 = vmatpush.msra.mxu0 %v2504
        %2519 = vmatpush.msra.mxu0 %v2503
        %2520 = vmatpush.msra.mxu0 %v2502
        %2521 = vmatpush.msra.mxu0 %v2501
        %2522 = vmatpush.msra.mxu0 %v2500
        %2523 = vmatpush.msra.mxu0 %v2499
        %2524 = vmatpush.msra.mxu0 %v2498
        %2525 = vmatpush.msra.mxu0 %v2497
        %2526 = vmatpush.msra.mxu0 %v2496
        %2527 = vmatpush.msra.mxu0 %v2495
        %2528 = vmatpush.msra.mxu0 %v2494
        %2529 = vmatmul.f32.gmra.mxu0 %v2511
        %v2530 = vpop.f32.mrf.mxu0
        %v2531 = vadd.f32 0.0, %v2530
        %2532 = vdwg.mxu0
        %v2533 = vadd.f32 %v2492, %v2531
        %s2534 = scalar_lea.vmem [#allocation10], 896
        %v2535 = vld [vmem:[%s2534] sm:$0xff]
        %v2536 = vld [vmem:[%s2534 + $0x8] sm:$0xff]
        %v2537 = vld [vmem:[%s2534 + $0x10] sm:$0xff]
        %v2538 = vld [vmem:[%s2534 + $0x18] sm:$0xff]
        %v2539 = vld [vmem:[%s2534 + $0x20] sm:$0xff]
        %v2540 = vld [vmem:[%s2534 + $0x28] sm:$0xff]
        %v2541 = vld [vmem:[%s2534 + $0x30] sm:$0xff]
        %v2542 = vld [vmem:[%s2534 + $0x38] sm:$0xff]
        %v2543 = vld [vmem:[%s2534 + $0x40] sm:$0xff]
        %v2544 = vld [vmem:[%s2534 + $0x48] sm:$0xff]
        %v2545 = vld [vmem:[%s2534 + $0x50] sm:$0xff]
        %v2546 = vld [vmem:[%s2534 + $0x58] sm:$0xff]
        %v2547 = vld [vmem:[%s2534 + $0x60] sm:$0xff]
        %v2548 = vld [vmem:[%s2534 + $0x68] sm:$0xff]
        %v2549 = vld [vmem:[%s2534 + $0x70] sm:$0xff]
        %v2550 = vld [vmem:[%s2534 + $0x78] sm:$0xff]
        %v2551 = vrot.slane %v2249, 2
        %2553 = vmatpush.msra.mxu0 %v2550
        %2554 = vmatpush.msra.mxu0 %v2549
        %2555 = vmatpush.msra.mxu0 %v2548
        %2556 = vmatpush.msra.mxu0 %v2547
        %2557 = vmatpush.msra.mxu0 %v2546
        %2558 = vmatpush.msra.mxu0 %v2545
        %2559 = vmatpush.msra.mxu0 %v2544
        %2560 = vmatpush.msra.mxu0 %v2543
        %2561 = vmatpush.msra.mxu0 %v2542
        %2562 = vmatpush.msra.mxu0 %v2541
        %2563 = vmatpush.msra.mxu0 %v2540
        %2564 = vmatpush.msra.mxu0 %v2539
        %2565 = vmatpush.msra.mxu0 %v2538
        %2566 = vmatpush.msra.mxu0 %v2537
        %2567 = vmatpush.msra.mxu0 %v2536
        %2568 = vmatpush.msra.mxu0 %v2535
        %2569 = vmatmul.f32.gmra.mxu0 %v2551
        %v2570 = vpop.f32.mrf.mxu0
        %v2571 = vadd.f32 0.0, %v2570
        %2572 = vdwg.mxu0
        %v2573 = vadd.f32 %v2533, %v2571
        %s2574 = scalar_lea.vmem [#allocation10], 1024
        %v2575 = vld [vmem:[%s2574] sm:$0xff]
        %v2576 = vld [vmem:[%s2574 + $0x8] sm:$0xff]
        %v2577 = vld [vmem:[%s2574 + $0x10] sm:$0xff]
        %v2578 = vld [vmem:[%s2574 + $0x18] sm:$0xff]
        %v2579 = vld [vmem:[%s2574 + $0x20] sm:$0xff]
        %v2580 = vld [vmem:[%s2574 + $0x28] sm:$0xff]
        %v2581 = vld [vmem:[%s2574 + $0x30] sm:$0xff]
        %v2582 = vld [vmem:[%s2574 + $0x38] sm:$0xff]
        %v2583 = vld [vmem:[%s2574 + $0x40] sm:$0xff]
        %v2584 = vld [vmem:[%s2574 + $0x48] sm:$0xff]
        %v2585 = vld [vmem:[%s2574 + $0x50] sm:$0xff]
        %v2586 = vld [vmem:[%s2574 + $0x58] sm:$0xff]
        %v2587 = vld [vmem:[%s2574 + $0x60] sm:$0xff]
        %v2588 = vld [vmem:[%s2574 + $0x68] sm:$0xff]
        %v2589 = vld [vmem:[%s2574 + $0x70] sm:$0xff]
        %v2590 = vld [vmem:[%s2574 + $0x78] sm:$0xff]
        %v2591 = vrot.slane %v2249, 3
        %2593 = vmatpush.msra.mxu0 %v2590
        %2594 = vmatpush.msra.mxu0 %v2589
        %2595 = vmatpush.msra.mxu0 %v2588
        %2596 = vmatpush.msra.mxu0 %v2587
        %2597 = vmatpush.msra.mxu0 %v2586
        %2598 = vmatpush.msra.mxu0 %v2585
        %2599 = vmatpush.msra.mxu0 %v2584
        %2600 = vmatpush.msra.mxu0 %v2583
        %2601 = vmatpush.msra.mxu0 %v2582
        %2602 = vmatpush.msra.mxu0 %v2581
        %2603 = vmatpush.msra.mxu0 %v2580
        %2604 = vmatpush.msra.mxu0 %v2579
        %2605 = vmatpush.msra.mxu0 %v2578
        %2606 = vmatpush.msra.mxu0 %v2577
        %2607 = vmatpush.msra.mxu0 %v2576
        %2608 = vmatpush.msra.mxu0 %v2575
        %2609 = vmatmul.f32.gmra.mxu0 %v2591
        %v2610 = vpop.f32.mrf.mxu0
        %v2611 = vadd.f32 0.0, %v2610
        %2612 = vdwg.mxu0
        %v2613 = vadd.f32 %v2573, %v2611
        %s2614 = scalar_lea.vmem [#allocation10], 1152
        %v2615 = vld [vmem:[%s2614] sm:$0xff]
        %v2616 = vld [vmem:[%s2614 + $0x8] sm:$0xff]
        %v2617 = vld [vmem:[%s2614 + $0x10] sm:$0xff]
        %v2618 = vld [vmem:[%s2614 + $0x18] sm:$0xff]
        %v2619 = vld [vmem:[%s2614 + $0x20] sm:$0xff]
        %v2620 = vld [vmem:[%s2614 + $0x28] sm:$0xff]
        %v2621 = vld [vmem:[%s2614 + $0x30] sm:$0xff]
        %v2622 = vld [vmem:[%s2614 + $0x38] sm:$0xff]
        %v2623 = vld [vmem:[%s2614 + $0x40] sm:$0xff]
        %v2624 = vld [vmem:[%s2614 + $0x48] sm:$0xff]
        %v2625 = vld [vmem:[%s2614 + $0x50] sm:$0xff]
        %v2626 = vld [vmem:[%s2614 + $0x58] sm:$0xff]
        %v2627 = vld [vmem:[%s2614 + $0x60] sm:$0xff]
        %v2628 = vld [vmem:[%s2614 + $0x68] sm:$0xff]
        %v2629 = vld [vmem:[%s2614 + $0x70] sm:$0xff]
        %v2630 = vld [vmem:[%s2614 + $0x78] sm:$0xff]
        %v2631 = vrot.slane %v2249, 4
        %2633 = vmatpush.msra.mxu0 %v2630
        %2634 = vmatpush.msra.mxu0 %v2629
        %2635 = vmatpush.msra.mxu0 %v2628
        %2636 = vmatpush.msra.mxu0 %v2627
        %2637 = vmatpush.msra.mxu0 %v2626
        %2638 = vmatpush.msra.mxu0 %v2625
        %2639 = vmatpush.msra.mxu0 %v2624
        %2640 = vmatpush.msra.mxu0 %v2623
        %2641 = vmatpush.msra.mxu0 %v2622
        %2642 = vmatpush.msra.mxu0 %v2621
        %2643 = vmatpush.msra.mxu0 %v2620
        %2644 = vmatpush.msra.mxu0 %v2619
        %2645 = vmatpush.msra.mxu0 %v2618
        %2646 = vmatpush.msra.mxu0 %v2617
        %2647 = vmatpush.msra.mxu0 %v2616
        %2648 = vmatpush.msra.mxu0 %v2615
        %2649 = vmatmul.f32.gmra.mxu0 %v2631
        %v2650 = vpop.f32.mrf.mxu0
        %v2651 = vadd.f32 0.0, %v2650
        %2652 = vdwg.mxu0
        %v2653 = vadd.f32 %v2613, %v2651
        %s2654 = scalar_lea.vmem [#allocation10], 1280
        %v2655 = vld [vmem:[%s2654] sm:$0xff]
        %v2656 = vld [vmem:[%s2654 + $0x8] sm:$0xff]
        %v2657 = vld [vmem:[%s2654 + $0x10] sm:$0xff]
        %v2658 = vld [vmem:[%s2654 + $0x18] sm:$0xff]
        %v2659 = vld [vmem:[%s2654 + $0x20] sm:$0xff]
        %v2660 = vld [vmem:[%s2654 + $0x28] sm:$0xff]
        %v2661 = vld [vmem:[%s2654 + $0x30] sm:$0xff]
        %v2662 = vld [vmem:[%s2654 + $0x38] sm:$0xff]
        %v2663 = vld [vmem:[%s2654 + $0x40] sm:$0xff]
        %v2664 = vld [vmem:[%s2654 + $0x48] sm:$0xff]
        %v2665 = vld [vmem:[%s2654 + $0x50] sm:$0xff]
        %v2666 = vld [vmem:[%s2654 + $0x58] sm:$0xff]
        %v2667 = vld [vmem:[%s2654 + $0x60] sm:$0xff]
        %v2668 = vld [vmem:[%s2654 + $0x68] sm:$0xff]
        %v2669 = vld [vmem:[%s2654 + $0x70] sm:$0xff]
        %v2670 = vld [vmem:[%s2654 + $0x78] sm:$0xff]
        %2671 = vmatpush.msra.mxu0 %v2670
        %2672 = vmatpush.msra.mxu0 %v2669
        %2673 = vmatpush.msra.mxu0 %v2668
        %2674 = vmatpush.msra.mxu0 %v2667
        %2675 = vmatpush.msra.mxu0 %v2666
        %2676 = vmatpush.msra.mxu0 %v2665
        %2677 = vmatpush.msra.mxu0 %v2664
        %2678 = vmatpush.msra.mxu0 %v2663
        %2679 = vmatpush.msra.mxu0 %v2662
        %2680 = vmatpush.msra.mxu0 %v2661
        %2681 = vmatpush.msra.mxu0 %v2660
        %2682 = vmatpush.msra.mxu0 %v2659
        %2683 = vmatpush.msra.mxu0 %v2658
        %2684 = vmatpush.msra.mxu0 %v2657
        %2685 = vmatpush.msra.mxu0 %v2656
        %2686 = vmatpush.msra.mxu0 %v2655
        %2687 = vmatmul.f32.gmra.mxu0 %v2251
        %v2688 = vpop.f32.mrf.mxu0
        %v2689 = vadd.f32 0.0, %v2688
        %2690 = vdwg.mxu0
        %v2691 = vadd.f32 %v2653, %v2689
        %s2692 = scalar_lea.vmem [#allocation10], 1408
        %v2693 = vld [vmem:[%s2692] sm:$0xff]
        %v2694 = vld [vmem:[%s2692 + $0x8] sm:$0xff]
        %v2695 = vld [vmem:[%s2692 + $0x10] sm:$0xff]
        %v2696 = vld [vmem:[%s2692 + $0x18] sm:$0xff]
        %v2697 = vld [vmem:[%s2692 + $0x20] sm:$0xff]
        %v2698 = vld [vmem:[%s2692 + $0x28] sm:$0xff]
        %v2699 = vld [vmem:[%s2692 + $0x30] sm:$0xff]
        %v2700 = vld [vmem:[%s2692 + $0x38] sm:$0xff]
        %v2701 = vld [vmem:[%s2692 + $0x40] sm:$0xff]
        %v2702 = vld [vmem:[%s2692 + $0x48] sm:$0xff]
        %v2703 = vld [vmem:[%s2692 + $0x50] sm:$0xff]
        %v2704 = vld [vmem:[%s2692 + $0x58] sm:$0xff]
        %v2705 = vld [vmem:[%s2692 + $0x60] sm:$0xff]
        %v2706 = vld [vmem:[%s2692 + $0x68] sm:$0xff]
        %v2707 = vld [vmem:[%s2692 + $0x70] sm:$0xff]
        %v2708 = vld [vmem:[%s2692 + $0x78] sm:$0xff]
        %v2710 = vrot.slane %v2251, 1
        %2712 = vmatpush.msra.mxu0 %v2708
        %2713 = vmatpush.msra.mxu0 %v2707
        %2714 = vmatpush.msra.mxu0 %v2706
        %2715 = vmatpush.msra.mxu0 %v2705
        %2716 = vmatpush.msra.mxu0 %v2704
        %2717 = vmatpush.msra.mxu0 %v2703
        %2718 = vmatpush.msra.mxu0 %v2702
        %2719 = vmatpush.msra.mxu0 %v2701
        %2720 = vmatpush.msra.mxu0 %v2700
        %2721 = vmatpush.msra.mxu0 %v2699
        %2722 = vmatpush.msra.mxu0 %v2698
        %2723 = vmatpush.msra.mxu0 %v2697
        %2724 = vmatpush.msra.mxu0 %v2696
        %2725 = vmatpush.msra.mxu0 %v2695
        %2726 = vmatpush.msra.mxu0 %v2694
        %2727 = vmatpush.msra.mxu0 %v2693
        %2728 = vmatmul.f32.gmra.mxu0 %v2710
        %v2729 = vpop.f32.mrf.mxu0
        %v2730 = vadd.f32 0.0, %v2729
        %2731 = vdwg.mxu0
        %v2732 = vadd.f32 %v2691, %v2730
        %s2733 = scalar_lea.vmem [#allocation10], 1536
        %v2734 = vld [vmem:[%s2733] sm:$0xff]
        %v2735 = vld [vmem:[%s2733 + $0x8] sm:$0xff]
        %v2736 = vld [vmem:[%s2733 + $0x10] sm:$0xff]
        %v2737 = vld [vmem:[%s2733 + $0x18] sm:$0xff]
        %v2738 = vld [vmem:[%s2733 + $0x20] sm:$0xff]
        %v2739 = vld [vmem:[%s2733 + $0x28] sm:$0xff]
        %v2740 = vld [vmem:[%s2733 + $0x30] sm:$0xff]
        %v2741 = vld [vmem:[%s2733 + $0x38] sm:$0xff]
        %v2742 = vld [vmem:[%s2733 + $0x40] sm:$0xff]
        %v2743 = vld [vmem:[%s2733 + $0x48] sm:$0xff]
        %v2744 = vld [vmem:[%s2733 + $0x50] sm:$0xff]
        %v2745 = vld [vmem:[%s2733 + $0x58] sm:$0xff]
        %v2746 = vld [vmem:[%s2733 + $0x60] sm:$0xff]
        %v2747 = vld [vmem:[%s2733 + $0x68] sm:$0xff]
        %v2748 = vld [vmem:[%s2733 + $0x70] sm:$0xff]
        %v2749 = vld [vmem:[%s2733 + $0x78] sm:$0xff]
        %v2750 = vrot.slane %v2251, 2
        %2752 = vmatpush.msra.mxu0 %v2749
        %2753 = vmatpush.msra.mxu0 %v2748
        %2754 = vmatpush.msra.mxu0 %v2747
        %2755 = vmatpush.msra.mxu0 %v2746
        %2756 = vmatpush.msra.mxu0 %v2745
        %2757 = vmatpush.msra.mxu0 %v2744
        %2758 = vmatpush.msra.mxu0 %v2743
        %2759 = vmatpush.msra.mxu0 %v2742
        %2760 = vmatpush.msra.mxu0 %v2741
        %2761 = vmatpush.msra.mxu0 %v2740
        %2762 = vmatpush.msra.mxu0 %v2739
        %2763 = vmatpush.msra.mxu0 %v2738
        %2764 = vmatpush.msra.mxu0 %v2737
        %2765 = vmatpush.msra.mxu0 %v2736
        %2766 = vmatpush.msra.mxu0 %v2735
        %2767 = vmatpush.msra.mxu0 %v2734
        %2768 = vmatmul.f32.gmra.mxu0 %v2750
        %v2769 = vpop.f32.mrf.mxu0
        %v2770 = vadd.f32 0.0, %v2769
        %2771 = vdwg.mxu0
        %v2772 = vadd.f32 %v2732, %v2770
        %s2773 = scalar_lea.vmem [#allocation10], 1664
        %v2774 = vld [vmem:[%s2773] sm:$0xff]
        %v2775 = vld [vmem:[%s2773 + $0x8] sm:$0xff]
        %v2776 = vld [vmem:[%s2773 + $0x10] sm:$0xff]
        %v2777 = vld [vmem:[%s2773 + $0x18] sm:$0xff]
        %v2778 = vld [vmem:[%s2773 + $0x20] sm:$0xff]
        %v2779 = vld [vmem:[%s2773 + $0x28] sm:$0xff]
        %v2780 = vld [vmem:[%s2773 + $0x30] sm:$0xff]
        %v2781 = vld [vmem:[%s2773 + $0x38] sm:$0xff]
        %v2782 = vld [vmem:[%s2773 + $0x40] sm:$0xff]
        %v2783 = vld [vmem:[%s2773 + $0x48] sm:$0xff]
        %v2784 = vld [vmem:[%s2773 + $0x50] sm:$0xff]
        %v2785 = vld [vmem:[%s2773 + $0x58] sm:$0xff]
        %v2786 = vld [vmem:[%s2773 + $0x60] sm:$0xff]
        %v2787 = vld [vmem:[%s2773 + $0x68] sm:$0xff]
        %v2788 = vld [vmem:[%s2773 + $0x70] sm:$0xff]
        %v2789 = vld [vmem:[%s2773 + $0x78] sm:$0xff]
        %v2790 = vrot.slane %v2251, 3
        %2792 = vmatpush.msra.mxu0 %v2789
        %2793 = vmatpush.msra.mxu0 %v2788
        %2794 = vmatpush.msra.mxu0 %v2787
        %2795 = vmatpush.msra.mxu0 %v2786
        %2796 = vmatpush.msra.mxu0 %v2785
        %2797 = vmatpush.msra.mxu0 %v2784
        %2798 = vmatpush.msra.mxu0 %v2783
        %2799 = vmatpush.msra.mxu0 %v2782
        %2800 = vmatpush.msra.mxu0 %v2781
        %2801 = vmatpush.msra.mxu0 %v2780
        %2802 = vmatpush.msra.mxu0 %v2779
        %2803 = vmatpush.msra.mxu0 %v2778
        %2804 = vmatpush.msra.mxu0 %v2777
        %2805 = vmatpush.msra.mxu0 %v2776
        %2806 = vmatpush.msra.mxu0 %v2775
        %2807 = vmatpush.msra.mxu0 %v2774
        %2808 = vmatmul.f32.gmra.mxu0 %v2790
        %v2809 = vpop.f32.mrf.mxu0
        %v2810 = vadd.f32 0.0, %v2809
        %2811 = vdwg.mxu0
        %v2812 = vadd.f32 %v2772, %v2810
        %s2813 = scalar_lea.vmem [#allocation10], 1792
        %v2814 = vld [vmem:[%s2813] sm:$0xff]
        %v2815 = vld [vmem:[%s2813 + $0x8] sm:$0xff]
        %v2816 = vld [vmem:[%s2813 + $0x10] sm:$0xff]
        %v2817 = vld [vmem:[%s2813 + $0x18] sm:$0xff]
        %v2818 = vld [vmem:[%s2813 + $0x20] sm:$0xff]
        %v2819 = vld [vmem:[%s2813 + $0x28] sm:$0xff]
        %v2820 = vld [vmem:[%s2813 + $0x30] sm:$0xff]
        %v2821 = vld [vmem:[%s2813 + $0x38] sm:$0xff]
        %v2822 = vld [vmem:[%s2813 + $0x40] sm:$0xff]
        %v2823 = vld [vmem:[%s2813 + $0x48] sm:$0xff]
        %v2824 = vld [vmem:[%s2813 + $0x50] sm:$0xff]
        %v2825 = vld [vmem:[%s2813 + $0x58] sm:$0xff]
        %v2826 = vld [vmem:[%s2813 + $0x60] sm:$0xff]
        %v2827 = vld [vmem:[%s2813 + $0x68] sm:$0xff]
        %v2828 = vld [vmem:[%s2813 + $0x70] sm:$0xff]
        %v2829 = vld [vmem:[%s2813 + $0x78] sm:$0xff]
        %v2830 = vrot.slane %v2251, 4
        %2832 = vmatpush.msra.mxu0 %v2829
        %2833 = vmatpush.msra.mxu0 %v2828
        %2834 = vmatpush.msra.mxu0 %v2827
        %2835 = vmatpush.msra.mxu0 %v2826
        %2836 = vmatpush.msra.mxu0 %v2825
        %2837 = vmatpush.msra.mxu0 %v2824
        %2838 = vmatpush.msra.mxu0 %v2823
        %2839 = vmatpush.msra.mxu0 %v2822
        %2840 = vmatpush.msra.mxu0 %v2821
        %2841 = vmatpush.msra.mxu0 %v2820
        %2842 = vmatpush.msra.mxu0 %v2819
        %2843 = vmatpush.msra.mxu0 %v2818
        %2844 = vmatpush.msra.mxu0 %v2817
        %2845 = vmatpush.msra.mxu0 %v2816
        %2846 = vmatpush.msra.mxu0 %v2815
        %2847 = vmatpush.msra.mxu0 %v2814
        %2848 = vmatmul.f32.gmra.mxu0 %v2830
        %v2849 = vpop.f32.mrf.mxu0
        %v2850 = vadd.f32 0.0, %v2849
        %2851 = vdwg.mxu0
        %v2852 = vadd.f32 %v2812, %v2850
        %s2853 = scalar_lea.vmem [#allocation10], 1920
        %v2854 = vld [vmem:[%s2853] sm:$0xff]
        %v2855 = vld [vmem:[%s2853 + $0x8] sm:$0xff]
        %v2856 = vld [vmem:[%s2853 + $0x10] sm:$0xff]
        %v2857 = vld [vmem:[%s2853 + $0x18] sm:$0xff]
        %v2858 = vld [vmem:[%s2853 + $0x20] sm:$0xff]
        %v2859 = vld [vmem:[%s2853 + $0x28] sm:$0xff]
        %v2860 = vld [vmem:[%s2853 + $0x30] sm:$0xff]
        %v2861 = vld [vmem:[%s2853 + $0x38] sm:$0xff]
        %v2862 = vld [vmem:[%s2853 + $0x40] sm:$0xff]
        %v2863 = vld [vmem:[%s2853 + $0x48] sm:$0xff]
        %v2864 = vld [vmem:[%s2853 + $0x50] sm:$0xff]
        %v2865 = vld [vmem:[%s2853 + $0x58] sm:$0xff]
        %v2866 = vld [vmem:[%s2853 + $0x60] sm:$0xff]
        %v2867 = vld [vmem:[%s2853 + $0x68] sm:$0xff]
        %v2868 = vld [vmem:[%s2853 + $0x70] sm:$0xff]
        %v2869 = vld [vmem:[%s2853 + $0x78] sm:$0xff]
        %2870 = vmatpush.msra.mxu0 %v2869
        %2871 = vmatpush.msra.mxu0 %v2868
        %2872 = vmatpush.msra.mxu0 %v2867
        %2873 = vmatpush.msra.mxu0 %v2866
        %2874 = vmatpush.msra.mxu0 %v2865
        %2875 = vmatpush.msra.mxu0 %v2864
        %2876 = vmatpush.msra.mxu0 %v2863
        %2877 = vmatpush.msra.mxu0 %v2862
        %2878 = vmatpush.msra.mxu0 %v2861
        %2879 = vmatpush.msra.mxu0 %v2860
        %2880 = vmatpush.msra.mxu0 %v2859
        %2881 = vmatpush.msra.mxu0 %v2858
        %2882 = vmatpush.msra.mxu0 %v2857
        %2883 = vmatpush.msra.mxu0 %v2856
        %2884 = vmatpush.msra.mxu0 %v2855
        %2885 = vmatpush.msra.mxu0 %v2854
        %2886 = vmatmul.f32.gmra.mxu0 %v2253
        %v2887 = vpop.f32.mrf.mxu0
        %v2888 = vadd.f32 0.0, %v2887
        %2889 = vdwg.mxu0
        %v2890 = vadd.f32 %v2852, %v2888
        %s2891 = scalar_lea.vmem [#allocation10], 2048
        %v2892 = vld [vmem:[%s2891] sm:$0xff]
        %v2893 = vld [vmem:[%s2891 + $0x8] sm:$0xff]
        %v2894 = vld [vmem:[%s2891 + $0x10] sm:$0xff]
        %v2895 = vld [vmem:[%s2891 + $0x18] sm:$0xff]
        %v2896 = vld [vmem:[%s2891 + $0x20] sm:$0xff]
        %v2897 = vld [vmem:[%s2891 + $0x28] sm:$0xff]
        %v2898 = vld [vmem:[%s2891 + $0x30] sm:$0xff]
        %v2899 = vld [vmem:[%s2891 + $0x38] sm:$0xff]
        %v2900 = vld [vmem:[%s2891 + $0x40] sm:$0xff]
        %v2901 = vld [vmem:[%s2891 + $0x48] sm:$0xff]
        %v2902 = vld [vmem:[%s2891 + $0x50] sm:$0xff]
        %v2903 = vld [vmem:[%s2891 + $0x58] sm:$0xff]
        %v2904 = vld [vmem:[%s2891 + $0x60] sm:$0xff]
        %v2905 = vld [vmem:[%s2891 + $0x68] sm:$0xff]
        %v2906 = vld [vmem:[%s2891 + $0x70] sm:$0xff]
        %v2907 = vld [vmem:[%s2891 + $0x78] sm:$0xff]
        %v2909 = vrot.slane %v2253, 1
        %2911 = vmatpush.msra.mxu0 %v2907
        %2912 = vmatpush.msra.mxu0 %v2906
        %2913 = vmatpush.msra.mxu0 %v2905
        %2914 = vmatpush.msra.mxu0 %v2904
        %2915 = vmatpush.msra.mxu0 %v2903
        %2916 = vmatpush.msra.mxu0 %v2902
        %2917 = vmatpush.msra.mxu0 %v2901
        %2918 = vmatpush.msra.mxu0 %v2900
        %2919 = vmatpush.msra.mxu0 %v2899
        %2920 = vmatpush.msra.mxu0 %v2898
        %2921 = vmatpush.msra.mxu0 %v2897
        %2922 = vmatpush.msra.mxu0 %v2896
        %2923 = vmatpush.msra.mxu0 %v2895
        %2924 = vmatpush.msra.mxu0 %v2894
        %2925 = vmatpush.msra.mxu0 %v2893
        %2926 = vmatpush.msra.mxu0 %v2892
        %2927 = vmatmul.f32.gmra.mxu0 %v2909
        %v2928 = vpop.f32.mrf.mxu0
        %v2929 = vadd.f32 0.0, %v2928
        %2930 = vdwg.mxu0
        %v2931 = vadd.f32 %v2890, %v2929
        %s2932 = scalar_lea.vmem [#allocation10], 2176
        %v2933 = vld [vmem:[%s2932] sm:$0xff]
        %v2934 = vld [vmem:[%s2932 + $0x8] sm:$0xff]
        %v2935 = vld [vmem:[%s2932 + $0x10] sm:$0xff]
        %v2936 = vld [vmem:[%s2932 + $0x18] sm:$0xff]
        %v2937 = vld [vmem:[%s2932 + $0x20] sm:$0xff]
        %v2938 = vld [vmem:[%s2932 + $0x28] sm:$0xff]
        %v2939 = vld [vmem:[%s2932 + $0x30] sm:$0xff]
        %v2940 = vld [vmem:[%s2932 + $0x38] sm:$0xff]
        %v2941 = vld [vmem:[%s2932 + $0x40] sm:$0xff]
        %v2942 = vld [vmem:[%s2932 + $0x48] sm:$0xff]
        %v2943 = vld [vmem:[%s2932 + $0x50] sm:$0xff]
        %v2944 = vld [vmem:[%s2932 + $0x58] sm:$0xff]
        %v2945 = vld [vmem:[%s2932 + $0x60] sm:$0xff]
        %v2946 = vld [vmem:[%s2932 + $0x68] sm:$0xff]
        %v2947 = vld [vmem:[%s2932 + $0x70] sm:$0xff]
        %v2948 = vld [vmem:[%s2932 + $0x78] sm:$0xff]
        %v2949 = vrot.slane %v2253, 2
        %2951 = vmatpush.msra.mxu0 %v2948
        %2952 = vmatpush.msra.mxu0 %v2947
        %2953 = vmatpush.msra.mxu0 %v2946
        %2954 = vmatpush.msra.mxu0 %v2945
        %2955 = vmatpush.msra.mxu0 %v2944
        %2956 = vmatpush.msra.mxu0 %v2943
        %2957 = vmatpush.msra.mxu0 %v2942
        %2958 = vmatpush.msra.mxu0 %v2941
        %2959 = vmatpush.msra.mxu0 %v2940
        %2960 = vmatpush.msra.mxu0 %v2939
        %2961 = vmatpush.msra.mxu0 %v2938
        %2962 = vmatpush.msra.mxu0 %v2937
        %2963 = vmatpush.msra.mxu0 %v2936
        %2964 = vmatpush.msra.mxu0 %v2935
        %2965 = vmatpush.msra.mxu0 %v2934
        %2966 = vmatpush.msra.mxu0 %v2933
        %2967 = vmatmul.f32.gmra.mxu0 %v2949
        %v2968 = vpop.f32.mrf.mxu0
        %v2969 = vadd.f32 0.0, %v2968
        %2970 = vdwg.mxu0
        %v2971 = vadd.f32 %v2931, %v2969
        %s2972 = scalar_lea.vmem [#allocation10], 2304
        %v2973 = vld [vmem:[%s2972] sm:$0xff]
        %v2974 = vld [vmem:[%s2972 + $0x8] sm:$0xff]
        %v2975 = vld [vmem:[%s2972 + $0x10] sm:$0xff]
        %v2976 = vld [vmem:[%s2972 + $0x18] sm:$0xff]
        %v2977 = vld [vmem:[%s2972 + $0x20] sm:$0xff]
        %v2978 = vld [vmem:[%s2972 + $0x28] sm:$0xff]
        %v2979 = vld [vmem:[%s2972 + $0x30] sm:$0xff]
        %v2980 = vld [vmem:[%s2972 + $0x38] sm:$0xff]
        %v2981 = vld [vmem:[%s2972 + $0x40] sm:$0xff]
        %v2982 = vld [vmem:[%s2972 + $0x48] sm:$0xff]
        %v2983 = vld [vmem:[%s2972 + $0x50] sm:$0xff]
        %v2984 = vld [vmem:[%s2972 + $0x58] sm:$0xff]
        %v2985 = vld [vmem:[%s2972 + $0x60] sm:$0xff]
        %v2986 = vld [vmem:[%s2972 + $0x68] sm:$0xff]
        %v2987 = vld [vmem:[%s2972 + $0x70] sm:$0xff]
        %v2988 = vld [vmem:[%s2972 + $0x78] sm:$0xff]
        %v2989 = vrot.slane %v2253, 3
        %2991 = vmatpush.msra.mxu0 %v2988
        %2992 = vmatpush.msra.mxu0 %v2987
        %2993 = vmatpush.msra.mxu0 %v2986
        %2994 = vmatpush.msra.mxu0 %v2985
        %2995 = vmatpush.msra.mxu0 %v2984
        %2996 = vmatpush.msra.mxu0 %v2983
        %2997 = vmatpush.msra.mxu0 %v2982
        %2998 = vmatpush.msra.mxu0 %v2981
        %2999 = vmatpush.msra.mxu0 %v2980
        %3000 = vmatpush.msra.mxu0 %v2979
        %3001 = vmatpush.msra.mxu0 %v2978
        %3002 = vmatpush.msra.mxu0 %v2977
        %3003 = vmatpush.msra.mxu0 %v2976
        %3004 = vmatpush.msra.mxu0 %v2975
        %3005 = vmatpush.msra.mxu0 %v2974
        %3006 = vmatpush.msra.mxu0 %v2973
        %3007 = vmatmul.f32.gmra.mxu0 %v2989
        %v3008 = vpop.f32.mrf.mxu0
        %v3009 = vadd.f32 0.0, %v3008
        %3010 = vdwg.mxu0
        %v3011 = vadd.f32 %v2971, %v3009
        %s3012 = scalar_lea.vmem [#allocation10], 2432
        %v3013 = vld [vmem:[%s3012] sm:$0xff]
        %v3014 = vld [vmem:[%s3012 + $0x8] sm:$0xff]
        %v3015 = vld [vmem:[%s3012 + $0x10] sm:$0xff]
        %v3016 = vld [vmem:[%s3012 + $0x18] sm:$0xff]
        %v3017 = vld [vmem:[%s3012 + $0x20] sm:$0xff]
        %v3018 = vld [vmem:[%s3012 + $0x28] sm:$0xff]
        %v3019 = vld [vmem:[%s3012 + $0x30] sm:$0xff]
        %v3020 = vld [vmem:[%s3012 + $0x38] sm:$0xff]
        %v3021 = vld [vmem:[%s3012 + $0x40] sm:$0xff]
        %v3022 = vld [vmem:[%s3012 + $0x48] sm:$0xff]
        %v3023 = vld [vmem:[%s3012 + $0x50] sm:$0xff]
        %v3024 = vld [vmem:[%s3012 + $0x58] sm:$0xff]
        %v3025 = vld [vmem:[%s3012 + $0x60] sm:$0xff]
        %v3026 = vld [vmem:[%s3012 + $0x68] sm:$0xff]
        %v3027 = vld [vmem:[%s3012 + $0x70] sm:$0xff]
        %v3028 = vld [vmem:[%s3012 + $0x78] sm:$0xff]
        %v3029 = vrot.slane %v2253, 4
        %3031 = vmatpush.msra.mxu0 %v3028
        %3032 = vmatpush.msra.mxu0 %v3027
        %3033 = vmatpush.msra.mxu0 %v3026
        %3034 = vmatpush.msra.mxu0 %v3025
        %3035 = vmatpush.msra.mxu0 %v3024
        %3036 = vmatpush.msra.mxu0 %v3023
        %3037 = vmatpush.msra.mxu0 %v3022
        %3038 = vmatpush.msra.mxu0 %v3021
        %3039 = vmatpush.msra.mxu0 %v3020
        %3040 = vmatpush.msra.mxu0 %v3019
        %3041 = vmatpush.msra.mxu0 %v3018
        %3042 = vmatpush.msra.mxu0 %v3017
        %3043 = vmatpush.msra.mxu0 %v3016
        %3044 = vmatpush.msra.mxu0 %v3015
        %3045 = vmatpush.msra.mxu0 %v3014
        %3046 = vmatpush.msra.mxu0 %v3013
        %3047 = vmatmul.f32.gmra.mxu0 %v3029
        %v3048 = vpop.f32.mrf.mxu0
        %v3049 = vadd.f32 0.0, %v3048
        %3050 = vdwg.mxu0
        %v3051 = vadd.f32 %v3011, %v3049
        %s3052 = scalar_lea.vmem [#allocation10], 2560
        %v3053 = vld [vmem:[%s3052] sm:$0xff]
        %v3054 = vld [vmem:[%s3052 + $0x8] sm:$0xff]
        %v3055 = vld [vmem:[%s3052 + $0x10] sm:$0xff]
        %v3056 = vld [vmem:[%s3052 + $0x18] sm:$0xff]
        %v3057 = vld [vmem:[%s3052 + $0x20] sm:$0xff]
        %v3058 = vld [vmem:[%s3052 + $0x28] sm:$0xff]
        %v3059 = vld [vmem:[%s3052 + $0x30] sm:$0xff]
        %v3060 = vld [vmem:[%s3052 + $0x38] sm:$0xff]
        %v3061 = vld [vmem:[%s3052 + $0x40] sm:$0xff]
        %v3062 = vld [vmem:[%s3052 + $0x48] sm:$0xff]
        %v3063 = vld [vmem:[%s3052 + $0x50] sm:$0xff]
        %v3064 = vld [vmem:[%s3052 + $0x58] sm:$0xff]
        %v3065 = vld [vmem:[%s3052 + $0x60] sm:$0xff]
        %v3066 = vld [vmem:[%s3052 + $0x68] sm:$0xff]
        %v3067 = vld [vmem:[%s3052 + $0x70] sm:$0xff]
        %v3068 = vld [vmem:[%s3052 + $0x78] sm:$0xff]
        %3069 = vmatpush.msra.mxu0 %v3068
        %3070 = vmatpush.msra.mxu0 %v3067
        %3071 = vmatpush.msra.mxu0 %v3066
        %3072 = vmatpush.msra.mxu0 %v3065
        %3073 = vmatpush.msra.mxu0 %v3064
        %3074 = vmatpush.msra.mxu0 %v3063
        %3075 = vmatpush.msra.mxu0 %v3062
        %3076 = vmatpush.msra.mxu0 %v3061
        %3077 = vmatpush.msra.mxu0 %v3060
        %3078 = vmatpush.msra.mxu0 %v3059
        %3079 = vmatpush.msra.mxu0 %v3058
        %3080 = vmatpush.msra.mxu0 %v3057
        %3081 = vmatpush.msra.mxu0 %v3056
        %3082 = vmatpush.msra.mxu0 %v3055
        %3083 = vmatpush.msra.mxu0 %v3054
        %3084 = vmatpush.msra.mxu0 %v3053
        %3085 = vmatmul.f32.gmra.mxu0 %v2255
        %v3086 = vpop.f32.mrf.mxu0
        %v3087 = vadd.f32 0.0, %v3086
        %3088 = vdwg.mxu0
        %v3089 = vadd.f32 %v3051, %v3087
        %s3090 = scalar_lea.vmem [#allocation10], 2688
        %v3091 = vld [vmem:[%s3090] sm:$0xff]
        %v3092 = vld [vmem:[%s3090 + $0x8] sm:$0xff]
        %v3093 = vld [vmem:[%s3090 + $0x10] sm:$0xff]
        %v3094 = vld [vmem:[%s3090 + $0x18] sm:$0xff]
        %v3095 = vld [vmem:[%s3090 + $0x20] sm:$0xff]
        %v3096 = vld [vmem:[%s3090 + $0x28] sm:$0xff]
        %v3097 = vld [vmem:[%s3090 + $0x30] sm:$0xff]
        %v3098 = vld [vmem:[%s3090 + $0x38] sm:$0xff]
        %v3099 = vld [vmem:[%s3090 + $0x40] sm:$0xff]
        %v3100 = vld [vmem:[%s3090 + $0x48] sm:$0xff]
        %v3101 = vld [vmem:[%s3090 + $0x50] sm:$0xff]
        %v3102 = vld [vmem:[%s3090 + $0x58] sm:$0xff]
        %v3103 = vld [vmem:[%s3090 + $0x60] sm:$0xff]
        %v3104 = vld [vmem:[%s3090 + $0x68] sm:$0xff]
        %v3105 = vld [vmem:[%s3090 + $0x70] sm:$0xff]
        %v3106 = vld [vmem:[%s3090 + $0x78] sm:$0xff]
        %v3108 = vrot.slane %v2255, 1
        %3110 = vmatpush.msra.mxu0 %v3106
        %3111 = vmatpush.msra.mxu0 %v3105
        %3112 = vmatpush.msra.mxu0 %v3104
        %3113 = vmatpush.msra.mxu0 %v3103
        %3114 = vmatpush.msra.mxu0 %v3102
        %3115 = vmatpush.msra.mxu0 %v3101
        %3116 = vmatpush.msra.mxu0 %v3100
        %3117 = vmatpush.msra.mxu0 %v3099
        %3118 = vmatpush.msra.mxu0 %v3098
        %3119 = vmatpush.msra.mxu0 %v3097
        %3120 = vmatpush.msra.mxu0 %v3096
        %3121 = vmatpush.msra.mxu0 %v3095
        %3122 = vmatpush.msra.mxu0 %v3094
        %3123 = vmatpush.msra.mxu0 %v3093
        %3124 = vmatpush.msra.mxu0 %v3092
        %3125 = vmatpush.msra.mxu0 %v3091
        %3126 = vmatmul.f32.gmra.mxu0 %v3108
        %v3127 = vpop.f32.mrf.mxu0
        %v3128 = vadd.f32 0.0, %v3127
        %3129 = vdwg.mxu0
        %v3130 = vadd.f32 %v3089, %v3128
        %s3131 = scalar_lea.vmem [#allocation10], 2816
        %v3132 = vld [vmem:[%s3131] sm:$0xff]
        %v3133 = vld [vmem:[%s3131 + $0x8] sm:$0xff]
        %v3134 = vld [vmem:[%s3131 + $0x10] sm:$0xff]
        %v3135 = vld [vmem:[%s3131 + $0x18] sm:$0xff]
        %v3136 = vld [vmem:[%s3131 + $0x20] sm:$0xff]
        %v3137 = vld [vmem:[%s3131 + $0x28] sm:$0xff]
        %v3138 = vld [vmem:[%s3131 + $0x30] sm:$0xff]
        %v3139 = vld [vmem:[%s3131 + $0x38] sm:$0xff]
        %v3140 = vld [vmem:[%s3131 + $0x40] sm:$0xff]
        %v3141 = vld [vmem:[%s3131 + $0x48] sm:$0xff]
        %v3142 = vld [vmem:[%s3131 + $0x50] sm:$0xff]
        %v3143 = vld [vmem:[%s3131 + $0x58] sm:$0xff]
        %v3144 = vld [vmem:[%s3131 + $0x60] sm:$0xff]
        %v3145 = vld [vmem:[%s3131 + $0x68] sm:$0xff]
        %v3146 = vld [vmem:[%s3131 + $0x70] sm:$0xff]
        %v3147 = vld [vmem:[%s3131 + $0x78] sm:$0xff]
        %v3148 = vrot.slane %v2255, 2
        %3150 = vmatpush.msra.mxu0 %v3147
        %3151 = vmatpush.msra.mxu0 %v3146
        %3152 = vmatpush.msra.mxu0 %v3145
        %3153 = vmatpush.msra.mxu0 %v3144
        %3154 = vmatpush.msra.mxu0 %v3143
        %3155 = vmatpush.msra.mxu0 %v3142
        %3156 = vmatpush.msra.mxu0 %v3141
        %3157 = vmatpush.msra.mxu0 %v3140
        %3158 = vmatpush.msra.mxu0 %v3139
        %3159 = vmatpush.msra.mxu0 %v3138
        %3160 = vmatpush.msra.mxu0 %v3137
        %3161 = vmatpush.msra.mxu0 %v3136
        %3162 = vmatpush.msra.mxu0 %v3135
        %3163 = vmatpush.msra.mxu0 %v3134
        %3164 = vmatpush.msra.mxu0 %v3133
        %3165 = vmatpush.msra.mxu0 %v3132
        %3166 = vmatmul.f32.gmra.mxu0 %v3148
        %v3167 = vpop.f32.mrf.mxu0
        %v3168 = vadd.f32 0.0, %v3167
        %3169 = vdwg.mxu0
        %v3170 = vadd.f32 %v3130, %v3168
        %s3171 = scalar_lea.vmem [#allocation10], 2944
        %v3172 = vld [vmem:[%s3171] sm:$0xff]
        %v3173 = vld [vmem:[%s3171 + $0x8] sm:$0xff]
        %v3174 = vld [vmem:[%s3171 + $0x10] sm:$0xff]
        %v3175 = vld [vmem:[%s3171 + $0x18] sm:$0xff]
        %v3176 = vld [vmem:[%s3171 + $0x20] sm:$0xff]
        %v3177 = vld [vmem:[%s3171 + $0x28] sm:$0xff]
        %v3178 = vld [vmem:[%s3171 + $0x30] sm:$0xff]
        %v3179 = vld [vmem:[%s3171 + $0x38] sm:$0xff]
        %v3180 = vld [vmem:[%s3171 + $0x40] sm:$0xff]
        %v3181 = vld [vmem:[%s3171 + $0x48] sm:$0xff]
        %v3182 = vld [vmem:[%s3171 + $0x50] sm:$0xff]
        %v3183 = vld [vmem:[%s3171 + $0x58] sm:$0xff]
        %v3184 = vld [vmem:[%s3171 + $0x60] sm:$0xff]
        %v3185 = vld [vmem:[%s3171 + $0x68] sm:$0xff]
        %v3186 = vld [vmem:[%s3171 + $0x70] sm:$0xff]
        %v3187 = vld [vmem:[%s3171 + $0x78] sm:$0xff]
        %v3188 = vrot.slane %v2255, 3
        %3190 = vmatpush.msra.mxu0 %v3187
        %3191 = vmatpush.msra.mxu0 %v3186
        %3192 = vmatpush.msra.mxu0 %v3185
        %3193 = vmatpush.msra.mxu0 %v3184
        %3194 = vmatpush.msra.mxu0 %v3183
        %3195 = vmatpush.msra.mxu0 %v3182
        %3196 = vmatpush.msra.mxu0 %v3181
        %3197 = vmatpush.msra.mxu0 %v3180
        %3198 = vmatpush.msra.mxu0 %v3179
        %3199 = vmatpush.msra.mxu0 %v3178
        %3200 = vmatpush.msra.mxu0 %v3177
        %3201 = vmatpush.msra.mxu0 %v3176
        %3202 = vmatpush.msra.mxu0 %v3175
        %3203 = vmatpush.msra.mxu0 %v3174
        %3204 = vmatpush.msra.mxu0 %v3173
        %3205 = vmatpush.msra.mxu0 %v3172
        %3206 = vmatmul.f32.gmra.mxu0 %v3188
        %v3207 = vpop.f32.mrf.mxu0
        %v3208 = vadd.f32 0.0, %v3207
        %3209 = vdwg.mxu0
        %v3210 = vadd.f32 %v3170, %v3208
        %s3211 = scalar_lea.vmem [#allocation10], 3072
        %v3212 = vld [vmem:[%s3211] sm:$0xff]
        %v3213 = vld [vmem:[%s3211 + $0x8] sm:$0xff]
        %v3214 = vld [vmem:[%s3211 + $0x10] sm:$0xff]
        %v3215 = vld [vmem:[%s3211 + $0x18] sm:$0xff]
        %v3216 = vld [vmem:[%s3211 + $0x20] sm:$0xff]
        %v3217 = vld [vmem:[%s3211 + $0x28] sm:$0xff]
        %v3218 = vld [vmem:[%s3211 + $0x30] sm:$0xff]
        %v3219 = vld [vmem:[%s3211 + $0x38] sm:$0xff]
        %v3220 = vld [vmem:[%s3211 + $0x40] sm:$0xff]
        %v3221 = vld [vmem:[%s3211 + $0x48] sm:$0xff]
        %v3222 = vld [vmem:[%s3211 + $0x50] sm:$0xff]
        %v3223 = vld [vmem:[%s3211 + $0x58] sm:$0xff]
        %v3224 = vld [vmem:[%s3211 + $0x60] sm:$0xff]
        %v3225 = vld [vmem:[%s3211 + $0x68] sm:$0xff]
        %v3226 = vld [vmem:[%s3211 + $0x70] sm:$0xff]
        %v3227 = vld [vmem:[%s3211 + $0x78] sm:$0xff]
        %v3228 = vrot.slane %v2255, 4
        %3230 = vmatpush.msra.mxu0 %v3227
        %3231 = vmatpush.msra.mxu0 %v3226
        %3232 = vmatpush.msra.mxu0 %v3225
        %3233 = vmatpush.msra.mxu0 %v3224
        %3234 = vmatpush.msra.mxu0 %v3223
        %3235 = vmatpush.msra.mxu0 %v3222
        %3236 = vmatpush.msra.mxu0 %v3221
        %3237 = vmatpush.msra.mxu0 %v3220
        %3238 = vmatpush.msra.mxu0 %v3219
        %3239 = vmatpush.msra.mxu0 %v3218
        %3240 = vmatpush.msra.mxu0 %v3217
        %3241 = vmatpush.msra.mxu0 %v3216
        %3242 = vmatpush.msra.mxu0 %v3215
        %3243 = vmatpush.msra.mxu0 %v3214
        %3244 = vmatpush.msra.mxu0 %v3213
        %3245 = vmatpush.msra.mxu0 %v3212
        %3246 = vmatmul.f32.gmra.mxu0 %v3228
        %v3247 = vpop.f32.mrf.mxu0
        %v3248 = vadd.f32 0.0, %v3247
        %3249 = vdwg.mxu0
        %v3250 = vadd.f32 %v3210, %v3248
        %v3251 = vlaneseq
        %v3252 = vand.u32 %v3251, 127
        %vm3253 = vcmp.lt.s32.totalorder %v3252, 32
        %v3254 = vsel %vm3253, %v3250, 0.0
        %vm3255 = vcmask 1040384
        %v3256 = vsel %vm3255, %v3254, 0.0
        %3257 = vadd.xlane.f32.xlu0 %v3256
        %v3258 = vpop.xlane.xlu0 %3257
        %v3259 = vmul.f32 %v3258, 0.03125
        %v3260 = vsub.f32 %v3250, %v3259
        %v3261 = vsel %vm3253, %v3260, 0.0
        %v3262 = vmul.f32 %v3261, %v3261
        %v3263 = vsel %vm3255, %v3262, 0.0
        %3264 = vadd.xlane.f32.xlu0 %v3263
        %v3265 = vpop.xlane.xlu0 %3264
        %v3266 = vmul.f32 %v3265, 0.03125
        %v3267 = vadd.f32 %v3266, 1e-05
        %v3268 = vrsqrt.pop %v3267
        %v3269 = vmul.f32 %v3268, %v3267
        %v3270 = vmul.f32 %v3269, %v3268
        %v3271 = vmul.f32 0.5, %v3270
        %v3272 = vsub.f32 1.5, %v3271
        %v3273 = vmul.f32 %v3268, %v3272
        %vm3274 = vweird.f32 %v3267
        %vm3275 = vweird.f32 %v3268
        %vm3276 = vmor %vm3274, %vm3275
        %v3277 = vsel %vm3276, %v3268, %v3273
        %v3278 = vmul.f32 %v3260, %v3277
        %v3279 = vld [vmem:[#allocation13] sm:$0x1]
        %v3280 = vmul.f32 %v3278, %v3279
        %v3281 = vld [vmem:[#allocation14] sm:$0x1]
        %v3282 = vadd.f32 %v3280, %v3281
        %v3283 = vtanh.pop %v3282
        %3284 = vst [vmem:[%s447] sm:$0x1] %v3283
        %s3285 = sand.u32 %s230, 1
        %s3286 = scalar_lea.sflag [#allocation4], %s3285
        %s3287 = sand.u32 %s230, 1
        %s3288 = scalar_lea.vmem [#allocation16], %s3287
        // Predicated region
        $region89: #{pixel_encoder_forward.1} parent=55 // pred_check
          %p3289 = pneg %p240
        $region90: #{pixel_encoder_forward.1} parent=55 // pred_check_branch
          %3291 = sbr.rel (%p3289) target = $region92
        $region91: #{pixel_encoder_forward.1} parent=55 // pred_region
          %3293 = vsyncadd %s3286, 0
          %s3294 = scalar_lea.hbm %s9, %s28
          %s3296 = sshll.u32 %s3288, 4
          %s3297 = int_to_ptr.vmem [resolvable:$true] %s3296
          %s3298 = sshll.u32 %s3294, 4
          %s3299 = int_to_ptr.hbm [resolvable:$true] %s3298
          %3301 = dma.vmem_to_hbm [thread:$0]  %s3297, 16, %s3299, %s3286
        $region92: #{pixel_encoder_forward.1} parent=55 // pred_fallthru
          _
      $region56: #{pixel_encoder_forward.1} parent=5 // pred_fallthru
        _
      %p3302 = scmp.le.s32.totalorder 2, %s23
      // Predicated region
      $region93: #{pixel_encoder_forward.1} parent=5 // pred_check
        %p3303 = pneg %p3302
      $region94: #{pixel_encoder_forward.1} parent=5 // pred_check_branch
        %3305 = sbr.rel (%p3303) target = $region96
      $region95: #{pixel_encoder_forward.1} parent=5 // pred_region
        %s3306 = ssub.s32 %s23, 2
        // Predicated region
        $region97: #{pixel_encoder_forward.1} parent=95 // pred_check
          %p3307 = pneg %p246
        $region98: #{pixel_encoder_forward.1} parent=95 // pred_check_branch
          %3309 = sbr.rel (%p3307) target = $region100
        $region99: #{pixel_encoder_forward.1} parent=95 // pred_region
          %s3310 = sand.u32 %s231, 1
          %s3311 = scalar_lea.sflag [#allocation4], %s3310
          %s3312 = sand.u32 %s231, 1
          %s3313 = scalar_lea.vmem [#allocation16], %s3312
          %3315 = dma.done %s3311, 16
        $region100: #{pixel_encoder_forward.1} parent=95 // pred_fallthru
          _
      $region96: #{pixel_encoder_forward.1} parent=5 // pred_fallthru
        _
    $region6: #{pixel_encoder_forward.1} parent=1 // loop_footer
      %s27 = sadd.s32 1, %s23
    $region7: #{pixel_encoder_forward.1} parent=1 // loop_footer_branch
      %22 = sbr.rel target = $region3
    $region8: #{pixel_encoder_forward.1} parent=1 // loop_exit
      _
    %3316 = vsyncpa [#allocation3], 1
    %s3317 = scalar_lea.sflag [#allocation3], 1
    %3318 = vsyncpa %s3317, 1
    %3319 = vsyncpa [#allocation6], 1
    %3320 = vsyncpa [#allocation9], 1
    %3321 = vsyncpa [#allocation12], 1
    %3322 = vsyncpa [#allocation15], 1
    %3323 = vsyncpa [#allocation4], 1
    %s3324 = scalar_lea.sflag [#allocation4], 1
    %3325 = vsyncpa %s3324, 1

</llo_original>
